<compile_context>
chip_gen: v6e
topology: v6e:2x2x1
jax: 0.10.0
libtpu: 0.0.40
codegen_flags: <defaults>
</compile_context>

<pallas_src>
import functools

import jax
import jax.numpy as jnp
import numpy as np
from jax import lax
from jax.experimental import pallas as pl
from jax.experimental.pallas import tpu as pltpu

EPS = 1e-5
LANE = 128
SUB = 8
FIN_TILE_TARGET = 2048          # finalize pass: big streaming tiles (bandwidth bound)


# --------------------------------------------------------------------------- helpers
def _round_up(x, m):
    return ((x + m - 1) // m) * m


def _pick_tile_rows(m, target=FIN_TILE_TARGET):
    """Largest multiple-of-8 divisor of m that is <= target (m is a multiple of 8)."""
    best = SUB
    d = SUB
    lim = min(m, target)
    while d <= lim:
        if m % d == 0:
            best = d
        d += SUB
    return best


def _prep_shifted(x_nhwc, *, kh, kw, stride, padding, wop):
    """Build the W-tap-shifted / H-phase-split conv input:
         xs[n, p*Hq + hq, j, wo, :] = x_pad[n, p + stride*hq, j + stride*wo, :]
       so in-kernel tap (i, j) is a *contiguous* row slice (no strided slicing):
         xs[n, (i % s)*Hq + (i // s) : ... + Ho, j, :, :]
    """
    n, h, w, c = x_nhwc.shape
    s = stride
    ho = (h + 2 * padding - kh) // s + 1
    wo = (w + 2 * padding - kw) // s + 1
    hq = ho + (kh - 1) // s
    hp_need = (s - 1) + s * (hq - 1) + 1
    wp_need = (kw - 1) + s * (wo - 1) + 1
    xp = jnp.pad(x_nhwc, ((0, 0),
                          (padding, max(0, hp_need - (h + padding))),
                          (padding, max(0, wp_need - (w + padding))),
                          (0, 0)))
    cols = []
    for j in range(kw):
        cj = xp[:, :, j:j + s * (wo - 1) + 1:s, :]            # (n, Hp, wo, c)
        if wop > wo:
            cj = jnp.pad(cj, ((0, 0), (0, 0), (0, wop - wo), (0, 0)))
        cols.append(cj)
    xw = jnp.stack(cols, axis=2)                              # (n, Hp, kw, wop, c)
    phases = [xw[:, p:p + s * (hq - 1) + 1:s] for p in range(s)]
    return jnp.concatenate(phases, axis=1)                    # (n, s*Hq, kw, wop, c)


def _w_conv(w_torch, cin_p, cout_p):
    """(C_out, C_in, kh, kw) -> (kw, kh, cin_p, cout_p) f32, zero padded."""
    co, ci, kh, kw = w_torch.shape
    w = jnp.transpose(w_torch.astype(jnp.float32), (3, 2, 1, 0))
    return jnp.pad(w, ((0, 0), (0, 0), (0, cin_p - ci), (0, cout_p - co)))


def _bn_fold(psum, pssq, m_true, gamma, beta, cw):
    """Reduce per-batch partials -> folded BN scale/shift (1, cw). f32 throughout."""
    s = jnp.sum(psum[::SUB], axis=0)                          # one row per batch block
    q = jnp.sum(pssq[::SUB], axis=0)
    mean = s / m_true
    var = jnp.maximum(q / m_true - mean * mean, 0.0)          # clamp E[y^2]-mean^2
    g = jnp.pad(gamma.reshape(-1).astype(jnp.float32), (0, cw - gamma.size))
    b = jnp.pad(beta.reshape(-1).astype(jnp.float32), (0, cw - beta.size))
    scale = g * lax.rsqrt(var + EPS)
    shift = b - mean * scale
    return scale.reshape(1, cw), shift.reshape(1, cw)


# --------------------------------------------------------------------------- kernels
def _conv_stats_kernel(x_ref, w_ref, y_ref, sum_ref, ssq_ref, acc_ref,
                       *, stride, kh, hq, ho, wop):
    """One (batch, W-tap) step: accumulate kh shifted MXU dots into the f32 acc;
    at the last tap, emit bf16 conv output + per-channel sum / sum-of-squares."""
    j = pl.program_id(1)

    @pl.when(j == 0)
    def _():
        acc_ref[...] = jnp.zeros_like(acc_ref)

    xb = x_ref[...]                                           # (1, s*hq, 1, wop, cin)
    xb = xb.reshape(xb.shape[1], wop, xb.shape[-1])
    wb = w_ref[...]                                           # (1, kh, cin, cnn)
    wb = wb.reshape(kh, wb.shape[-2], wb.shape[-1])

    part = None
    for i in range(kh):                                       # unrolled at trace time
        p, q = i % stride, i // stride
        lhs = xb[p * hq + q: p * hq + q + ho].reshape(ho * wop, -1)
        d = jnp.dot(lhs, wb[i], preferred_element_type=jnp.float32)
        part = d if part is None else part + d
    acc_ref[...] += part

    @pl.when(j == pl.num_programs(1) - 1)
    def _():
        acc = acc_ref[...]
        y_ref[...] = acc.astype(y_ref.dtype).reshape(y_ref.shape)
        s = jnp.sum(acc, axis=0, keepdims=True)
        q2 = jnp.sum(acc * acc, axis=0, keepdims=True)
        sum_ref[...] = jnp.broadcast_to(s, sum_ref.shape)     # (8, cnn) tile-aligned
        ssq_ref[...] = jnp.broadcast_to(q2, ssq_ref.shape)


def _finalize_kernel(*refs, res_mode, relu):
    """Fused BN (folded scale/shift) + optional residual (+ its folded BN) + ReLU."""
    if res_mode == "none":
        y_ref, sc_ref, sh_ref, o_ref = refs
    elif res_mode == "raw":
        y_ref, sc_ref, sh_ref, r_ref, o_ref = refs
    else:  # "bn": residual is a raw conv output that still needs its own scale/shift
        y_ref, sc_ref, sh_ref, r_ref, rsc_ref, rsh_ref, o_ref = refs

    y = y_ref[...].astype(jnp.float32) * sc_ref[...] + sh_ref[...]
    if res_mode == "raw":
        y = y + r_ref[...].astype(jnp.float32)
    elif res_mode == "bn":
        y = y + (r_ref[...].astype(jnp.float32) * rsc_ref[...] + rsh_ref[...])
    if relu:
        y = jnp.maximum(y, 0.0)
    o_ref[...] = y.astype(o_ref.dtype)


# ------------------------------------------------------------------- pallas wrappers
def _conv_stats_call(xs, w4d, *, stride, ho, wop):
    """xs: (N, s*Hq, kw, wop, cin) bf16, w4d: (kw, kh, cin, cnn) bf16
       -> (y (N, ho*wop, cnn) bf16, psum (N*8, cnn) f32, pssq (N*8, cnn) f32)."""
    n, shq, kw, _, cin = xs.shape
    hq = shq // stride
    kh = w4d.shape[1]
    cnn = w4d.shape[-1]
    kernel = functools.partial(_conv_stats_kernel, stride=stride, kh=kh,
                               hq=hq, ho=ho, wop=wop)
    return pl.pallas_call(
        kernel,
        out_shape=(jax.ShapeDtypeStruct((n, ho * wop, cnn), jnp.bfloat16),
                   jax.ShapeDtypeStruct((n * SUB, cnn), jnp.float32),
                   jax.ShapeDtypeStruct((n * SUB, cnn), jnp.float32)),
        grid=(n, kw),
        in_specs=[pl.BlockSpec((1, shq, 1, wop, cin), lambda b, j: (b, 0, j, 0, 0)),
                  pl.BlockSpec((1, kh, cin, cnn), lambda b, j: (j, 0, 0, 0))],
        out_specs=(pl.BlockSpec((1, ho * wop, cnn), lambda b, j: (b, 0, 0)),
                   pl.BlockSpec((SUB, cnn), lambda b, j: (b, 0)),
                   pl.BlockSpec((SUB, cnn), lambda b, j: (b, 0))),
        scratch_shapes=[pltpu.VMEM((ho * wop, cnn), jnp.float32)],
        compiler_params=pltpu.CompilerParams(
            dimension_semantics=("parallel", "arbitrary")),
    )(xs, w4d)


def _finalize_call(y, scale, shift, *, col, out_dtype, relu,
                   residual=None, res_col=0, res_scale=None, res_shift=None):
    m = y.shape[0]
    cp = scale.shape[1]
    tile = _pick_tile_rows(m)
    nt = m // tile

    def col_spec(c):
        return pl.BlockSpec((tile, cp), lambda i, c=c: (i, c))

    vec_spec = pl.BlockSpec((1, cp), lambda i: (0, 0))

    args = [y, scale, shift]
    in_specs = [col_spec(col), vec_spec, vec_spec]
    if residual is None:
        res_mode = "none"
    elif res_scale is None:
        res_mode = "raw"
        args += [residual]
        in_specs += [col_spec(res_col)]
    else:
        res_mode = "bn"
        args += [residual, res_scale, res_shift]
        in_specs += [col_spec(res_col), vec_spec, vec_spec]

    kernel = functools.partial(_finalize_kernel, res_mode=res_mode, relu=relu)
    return pl.pallas_call(
        kernel,
        out_shape=jax.ShapeDtypeStruct((m, cp), out_dtype),
        grid=(nt,),
        in_specs=in_specs,
        out_specs=pl.BlockSpec((tile, cp), lambda i: (i, 0)),
        compiler_params=pltpu.CompilerParams(dimension_semantics=("parallel",)),
    )(*args)


# ------------------------------------------------------------------------ forward
@functools.partial(jax.jit, static_argnames=("stride",))
def residual_block_forward(x_nchw, params, stride):
    """Forward pass of ResidualBlock. x_nchw: (N, C_in, H, W) f32 -> (N, C_out, Ho, Wo)."""
    x = jnp.transpose(x_nchw, (0, 2, 3, 1)).astype(jnp.float32)      # NHWC
    n, h, w, cin = x.shape
    cout = params["w1"].shape[0]
    cp = _round_up(cout, LANE)                   # lane-dense output channels
    has_ds = (stride != 1) or (cin != cout)

    ho = (h + 2 - 3) // stride + 1
    wo = (w + 2 - 3) // stride + 1
    wop = _round_up(wo, SUB)                     # W padded so rows stay (8,)-aligned
    m = n * ho * wop
    m_true = n * ho * wo                         # true BN element count (pads are 0)

    # ---- conv1 (3x3, stride) with the 1x1 downsample folded in as extra columns ----
    xs1 = _prep_shifted(x.astype(jnp.bfloat16), kh=3, kw=3, stride=stride,
                        padding=1, wop=wop)
    w1 = _w_conv(params["w1"], cin, cp)                              # (3,3,cin,cp)
    if has_ds:
        wds = jnp.zeros((3, 3, cin, cp), jnp.float32)
        wds = wds.at[1, 1].set(_w_conv(params["w_ds"], cin, cp)[0, 0])
        w1 = jnp.concatenate([w1, wds], axis=-1)                     # (3,3,cin,2cp)
    y1, s1, q1 = _conv_stats_call(xs1, w1.astype(jnp.bfloat16),
                                  stride=stride, ho=ho, wop=wop)
    y1 = y1.reshape(m, -1)                                           # (m, cp or 2cp)

    sc1, sh1 = _bn_fold(s1[:, :cp], q1[:, :cp], m_true, params["g1"], params["b1"], cp)
    out1 = _finalize_call(y1, sc1, sh1, col=0, out_dtype=jnp.bfloat16, relu=True)

    # ---- identity / downsample path (downsample BN fused into conv2's finalize) ----
    if has_ds:
        res, res_col = y1, 1                     # second column block of y1
        res_sc, res_sh = _bn_fold(s1[:, cp:], q1[:, cp:], m_true,
                                  params["g_ds"], params["b_ds"], cp)
    else:
        ident = jnp.pad(x.astype(jnp.bfloat16),
                        ((0, 0), (0, 0), (0, wop - wo), (0, cp - cin)))
        res, res_col = ident.reshape(m, cp), 0
        res_sc = res_sh = None

    # ---- conv2 (3x3, stride 1); BN2 + residual(+BN_ds) + final ReLU fused ----------
    out1_nhwc = out1.reshape(n, ho, wop, cp)[:, :, :wo, :]
    xs2 = _prep_shifted(out1_nhwc, kh=3, kw=3, stride=1, padding=1, wop=wop)
    w2 = _w_conv(params["w2"], cp, cp).astype(jnp.bfloat16)
    y2, s2, q2 = _conv_stats_call(xs2, w2, stride=1, ho=ho, wop=wop)
    y2 = y2.reshape(m, cp)
    sc2, sh2 = _bn_fold(s2, q2, m_true, params["g2"], params["b2"], cp)

    out = _finalize_call(y2, sc2, sh2, col=0, out_dtype=jnp.float32, relu=True,
                         residual=res, res_col=res_col,
                         res_scale=res_sc, res_shift=res_sh)

    out = out.reshape(n, ho, wop, cp)[:, :, :wo, :cout]
    return jnp.transpose(out, (0, 3, 1, 2))                          # back to NCHW


# ------------------------------------------------------------------ pure-JAX reference
def _ref_conv(x_nhwc, w_torch, stride, padding):
    w_hwio = jnp.transpose(w_torch, (2, 3, 1, 0))
    return lax.conv_general_dilated(
        x_nhwc, w_hwio, window_strides=(stride, stride),
        padding=((padding, padding), (padding, padding)),
        dimension_numbers=("NHWC", "HWIO", "NHWC"))


def _ref_bn(y, gamma, beta):
    mean = jnp.mean(y, axis=(0, 1, 2), keepdims=True)
    var = jnp.mean((y - mean) ** 2, axis=(0, 1, 2), keepdims=True)
    return (y - mean) * lax.rsqrt(var + EPS) * gamma.reshape(1, 1, 1, -1) \
        + beta.reshape(1, 1, 1, -1)


def residual_block_reference(x_nchw, params, stride):
    x = jnp.transpose(x_nchw, (0, 2, 3, 1)).astype(jnp.float32)
    cin, cout = x.shape[-1], params["w1"].shape[0]
    out = _ref_conv(x, params["w1"], stride, 1)
    out = jnp.maximum(_ref_bn(out, params["g1"], params["b1"]), 0.0)
    out = _ref_conv(out, params["w2"], 1, 1)
    out = _ref_bn(out, params["g2"], params["b2"])
    if stride != 1 or cin != cout:
        ident = _ref_conv(x, params["w_ds"], stride, 0)
        ident = _ref_bn(ident, params["g_ds"], params["b_ds"])
    else:
        ident = x
    out = jnp.maximum(ident + out, 0.0)
    return jnp.transpose(out, (0, 3, 1, 2))


# -------------------------------------------------------------------------------- main
if __name__ == "__main__":
    key = jax.random.PRNGKey(0)
    k_x, k_w1, k_w2, k_ds = jax.random.split(key, 4)

    N, Cin, Cout, H, W, stride = 2, 4, 8, 16, 16, 2

    x = jax.random.normal(k_x, (N, Cin, H, W), jnp.float32)

    params = {
        # conv weights in PyTorch layout (C_out, C_in, kh, kw)
        "w1": 0.1 * jax.random.normal(k_w1, (Cout, Cin, 3, 3), jnp.float32),
        "w2": 0.1 * jax.random.normal(k_w2, (Cout, Cout, 3, 3), jnp.float32),
        "w_ds": 0.1 * jax.random.normal(k_ds, (Cout, Cin, 1, 1), jnp.float32),
        # BatchNorm affine params, PyTorch default init (gamma=1, beta=0)
        "g1": jnp.ones((1, Cout), jnp.float32), "b1": jnp.zeros((1, Cout), jnp.float32),
        "g2": jnp.ones((1, Cout), jnp.float32), "b2": jnp.zeros((1, Cout), jnp.float32),
        "g_ds": jnp.ones((1, Cout), jnp.float32), "b_ds": jnp.zeros((1, Cout), jnp.float32),
    }

    out = residual_block_forward(x, params, stride=stride)
    out = jax.block_until_ready(out)

    ref = jax.block_until_ready(residual_block_reference(x, params, stride))
    assert out.shape == (N, Cout, H // stride, W // stride), out.shape
    # bf16 MXU operands / bf16 intermediates (f32 accumulation & BN math) vs f32 ref.
    np.testing.assert_allclose(np.asarray(out), np.asarray(ref), rtol=2e-2, atol=2e-2)

    print("KERNEL_OK")
</pallas_src>

<mosaic_0001>
module attributes {stable_mosaic.version = 11 : i64} {
  func.func @_conv_stats_kernel(%arg0: i32, %arg1: i32, %arg2: memref<1x18x1x8x4xbf16, #tpu.memory_space<vmem>>, %arg3: memref<1x3x4x256xbf16, #tpu.memory_space<vmem>>, %arg4: memref<1x64x256xbf16, #tpu.memory_space<vmem>>, %arg5: memref<8x256xf32, #tpu.memory_space<vmem>>, %arg6: memref<8x256xf32, #tpu.memory_space<vmem>>, %arg7: memref<64x256xf32, #tpu.memory_space<vmem>>) attributes {dimension_semantics = [#tpu.dimension_semantics<parallel>, #tpu.dimension_semantics<arbitrary>], iteration_bounds = array<i64: 2, 3>, scalar_prefetch = 0 : i64, scratch_operands = 1 : i64, tpu.core_type = #tpu.core_type<tc>, window_params = [{transform_indices = @transform_0, window_bounds = array<i64: 1, 18, 1, 8, 4>}, {transform_indices = @transform_1, window_bounds = array<i64: 1, 3, 4, 256>}, {transform_indices = @transform_2, window_bounds = array<i64: 1, 64, 256>}, {transform_indices = @transform_3, window_bounds = array<i64: 8, 256>}, {transform_indices = @transform_4, window_bounds = array<i64: 8, 256>}]} {
    %c0_i32 = arith.constant 0 : i32
    %0 = arith.cmpi eq, %arg1, %c0_i32 : i32
    %1 = arith.extui %0 : i1 to i32
    %c0_i32_0 = arith.constant 0 : i32
    %2 = arith.cmpi ne, %1, %c0_i32_0 : i32
    scf.if %2 {
      %cst_16 = arith.constant 0.000000e+00 : f32
      %30 = vector.broadcast %cst_16 : f32 to vector<64x256xf32>
      %c0_17 = arith.constant 0 : index
      %c0_18 = arith.constant 0 : index
      %31 = vector.load %arg7[%c0_17, %c0_18] : memref<64x256xf32, #tpu.memory_space<vmem>>, vector<64x256xf32>
      tpu.vector_store %arg7[%c0_17, %c0_18], %30 {strides = array<i32>} : memref<64x256xf32, #tpu.memory_space<vmem>>, vector<64x256xf32>,
    } else {
    }
    %c0 = arith.constant 0 : index
    %c0_1 = arith.constant 0 : index
    %c0_2 = arith.constant 0 : index
    %c0_3 = arith.constant 0 : index
    %c0_4 = arith.constant 0 : index
    %3 = vector.load %arg2[%c0, %c0_1, %c0_2, %c0_3, %c0_4] : memref<1x18x1x8x4xbf16, #tpu.memory_space<vmem>>, vector<1x18x1x8x4xbf16>
    %4 = vector.shape_cast %3 : vector<1x18x1x8x4xbf16> to vector<18x8x4xbf16>
    %c0_5 = arith.constant 0 : index
    %c0_6 = arith.constant 0 : index
    %c0_7 = arith.constant 0 : index
    %c0_8 = arith.constant 0 : index
    %5 = vector.load %arg3[%c0_5, %c0_6, %c0_7, %c0_8] : memref<1x3x4x256xbf16, #tpu.memory_space<vmem>>, vector<1x3x4x256xbf16>
    %6 = vector.shape_cast %5 : vector<1x3x4x256xbf16> to vector<3x4x256xbf16>
    %7 = vector.extract_strided_slice %4 {offsets = [0, 0, 0], sizes = [8, 8, 4], strides = [1, 1, 1]} : vector<18x8x4xbf16> to vector<8x8x4xbf16>
    %8 = vector.shape_cast %7 : vector<8x8x4xbf16> to vector<64x4xbf16>
    %9 = vector.extract_strided_slice %6 {offsets = [0, 0, 0], sizes = [1, 4, 256], strides = [1, 1, 1]} : vector<3x4x256xbf16> to vector<1x4x256xbf16>
    %10 = vector.shape_cast %9 : vector<1x4x256xbf16> to vector<4x256xbf16>
    %cst = arith.constant dense<0.000000e+00> : vector<64x256xf32>
    %11 = tpu.matmul %8, %10, %cst {dimension_numbers = #tpu.dot_dimension_numbers<[1], [0], [0], [1], [0, 0, 1, 1], [], []>} : vector<64x4xbf16>, vector<4x256xbf16>, vector<64x256xf32> -> vector<64x256xf32>
    %12 = vector.extract_strided_slice %4 {offsets = [9, 0, 0], sizes = [8, 8, 4], strides = [1, 1, 1]} : vector<18x8x4xbf16> to vector<8x8x4xbf16>
    %13 = vector.shape_cast %12 : vector<8x8x4xbf16> to vector<64x4xbf16>
    %14 = vector.extract_strided_slice %6 {offsets = [1, 0, 0], sizes = [1, 4, 256], strides = [1, 1, 1]} : vector<3x4x256xbf16> to vector<1x4x256xbf16>
    %15 = vector.shape_cast %14 : vector<1x4x256xbf16> to vector<4x256xbf16>
    %cst_9 = arith.constant dense<0.000000e+00> : vector<64x256xf32>
    %16 = tpu.matmul %13, %15, %cst_9 {dimension_numbers = #tpu.dot_dimension_numbers<[1], [0], [0], [1], [0, 0, 1, 1], [], []>} : vector<64x4xbf16>, vector<4x256xbf16>, vector<64x256xf32> -> vector<64x256xf32>
    %17 = arith.addf %11, %16 : vector<64x256xf32>
    %18 = vector.extract_strided_slice %4 {offsets = [1, 0, 0], sizes = [8, 8, 4], strides = [1, 1, 1]} : vector<18x8x4xbf16> to vector<8x8x4xbf16>
    %19 = vector.shape_cast %18 : vector<8x8x4xbf16> to vector<64x4xbf16>
    %20 = vector.extract_strided_slice %6 {offsets = [2, 0, 0], sizes = [1, 4, 256], strides = [1, 1, 1]} : vector<3x4x256xbf16> to vector<1x4x256xbf16>
    %21 = vector.shape_cast %20 : vector<1x4x256xbf16> to vector<4x256xbf16>
    %cst_10 = arith.constant dense<0.000000e+00> : vector<64x256xf32>
    %22 = tpu.matmul %19, %21, %cst_10 {dimension_numbers = #tpu.dot_dimension_numbers<[1], [0], [0], [1], [0, 0, 1, 1], [], []>} : vector<64x4xbf16>, vector<4x256xbf16>, vector<64x256xf32> -> vector<64x256xf32>
    %23 = arith.addf %17, %22 : vector<64x256xf32>
    %c0_11 = arith.constant 0 : index
    %c0_12 = arith.constant 0 : index
    %24 = vector.load %arg7[%c0_11, %c0_12] : memref<64x256xf32, #tpu.memory_space<vmem>>, vector<64x256xf32>
    %25 = arith.addf %24, %23 : vector<64x256xf32>
    %c0_13 = arith.constant 0 : index
    %c0_14 = arith.constant 0 : index
    %26 = vector.load %arg7[%c0_13, %c0_14] : memref<64x256xf32, #tpu.memory_space<vmem>>, vector<64x256xf32>
    tpu.vector_store %arg7[%c0_13, %c0_14], %25 {strides = array<i32>} : memref<64x256xf32, #tpu.memory_space<vmem>>, vector<64x256xf32>,
    %c2_i32 = arith.constant 2 : i32
    %27 = arith.cmpi eq, %arg1, %c2_i32 : i32
    %28 = arith.extui %27 : i1 to i32
    %c0_i32_15 = arith.constant 0 : i32
    %29 = arith.cmpi ne, %28, %c0_i32_15 : i32
    scf.if %29 {
      %c0_16 = arith.constant 0 : index
      %c0_17 = arith.constant 0 : index
      %30 = vector.load %arg7[%c0_16, %c0_17] : memref<64x256xf32, #tpu.memory_space<vmem>>, vector<64x256xf32>
      %31 = arith.truncf %30 : vector<64x256xf32> to vector<64x256xbf16>
      %32 = vector.shape_cast %31 : vector<64x256xbf16> to vector<1x64x256xbf16>
      %c0_18 = arith.constant 0 : index
      %c0_19 = arith.constant 0 : index
      %c0_20 = arith.constant 0 : index
      %33 = vector.load %arg4[%c0_18, %c0_19, %c0_20] : memref<1x64x256xbf16, #tpu.memory_space<vmem>>, vector<1x64x256xbf16>
      tpu.vector_store %arg4[%c0_18, %c0_19, %c0_20], %32 {strides = array<i32>} : memref<1x64x256xbf16, #tpu.memory_space<vmem>>, vector<1x64x256xbf16>,
      %cst_21 = arith.constant dense<0.000000e+00> : vector<256xf32>
      %34 = vector.multi_reduction <add>, %30, %cst_21 [0] : vector<64x256xf32> to vector<256xf32>
      %35 = vector.shape_cast %34 : vector<256xf32> to vector<1x256xf32>
      %36 = arith.mulf %30, %30 : vector<64x256xf32>
      %cst_22 = arith.constant dense<0.000000e+00> : vector<256xf32>
      %37 = vector.multi_reduction <add>, %36, %cst_22 [0] : vector<64x256xf32> to vector<256xf32>
      %38 = vector.shape_cast %37 : vector<256xf32> to vector<1x256xf32>
      %39 = vector.shape_cast %35 : vector<1x256xf32> to vector<1x256xf32>
      %40 = vector.broadcast %39 : vector<1x256xf32> to vector<8x256xf32>
      %c0_23 = arith.constant 0 : index
      %c0_24 = arith.constant 0 : index
      %41 = vector.load %arg5[%c0_23, %c0_24] : memref<8x256xf32, #tpu.memory_space<vmem>>, vector<8x256xf32>
      tpu.vector_store %arg5[%c0_23, %c0_24], %40 {strides = array<i32>} : memref<8x256xf32, #tpu.memory_space<vmem>>, vector<8x256xf32>,
      %42 = vector.shape_cast %38 : vector<1x256xf32> to vector<1x256xf32>
      %43 = vector.broadcast %42 : vector<1x256xf32> to vector<8x256xf32>
      %c0_25 = arith.constant 0 : index
      %c0_26 = arith.constant 0 : index
      %44 = vector.load %arg6[%c0_25, %c0_26] : memref<8x256xf32, #tpu.memory_space<vmem>>, vector<8x256xf32>
      tpu.vector_store %arg6[%c0_25, %c0_26], %43 {strides = array<i32>} : memref<8x256xf32, #tpu.memory_space<vmem>>, vector<8x256xf32>,
    } else {
    }
    return
  }
  func.func @transform_0(%arg0: i32, %arg1: i32) -> (i32, i32, i32, i32, i32) {
    %c0_i32 = arith.constant 0 : i32
    %c0_i32_0 = arith.constant 0 : i32
    %c0_i32_1 = arith.constant 0 : i32
    %c0_i32_2 = arith.constant 0 : i32
    return %arg0, %c0_i32, %arg1, %c0_i32_0, %c0_i32_1 : i32, i32, i32, i32, i32
  }
  func.func @transform_1(%arg0: i32, %arg1: i32) -> (i32, i32, i32, i32) {
    %c0_i32 = arith.constant 0 : i32
    %c0_i32_0 = arith.constant 0 : i32
    %c0_i32_1 = arith.constant 0 : i32
    %c0_i32_2 = arith.constant 0 : i32
    return %arg1, %c0_i32, %c0_i32_0, %c0_i32_1 : i32, i32, i32, i32
  }
  func.func @transform_2(%arg0: i32, %arg1: i32) -> (i32, i32, i32) {
    %c0_i32 = arith.constant 0 : i32
    %c0_i32_0 = arith.constant 0 : i32
    %c0_i32_1 = arith.constant 0 : i32
    return %arg0, %c0_i32, %c0_i32_0 : i32, i32, i32
  }
  func.func @transform_3(%arg0: i32, %arg1: i32) -> (i32, i32) {
    %c0_i32 = arith.constant 0 : i32
    %c0_i32_0 = arith.constant 0 : i32
    return %arg0, %c0_i32 : i32, i32
  }
  func.func @transform_4(%arg0: i32, %arg1: i32) -> (i32, i32) {
    %c0_i32 = arith.constant 0 : i32
    %c0_i32_0 = arith.constant 0 : i32
    return %arg0, %c0_i32 : i32, i32
  }
}

module attributes {stable_mosaic.version = 11 : i64} {
  func.func @_finalize_kernel(%arg0: i32, %arg1: memref<128x128xbf16, #tpu.memory_space<vmem>>, %arg2: memref<1x128xf32, #tpu.memory_space<vmem>>, %arg3: memref<1x128xf32, #tpu.memory_space<vmem>>, %arg4: memref<128x128xbf16, #tpu.memory_space<vmem>>) attributes {dimension_semantics = [#tpu.dimension_semantics<parallel>], iteration_bounds = array<i64: 1>, scalar_prefetch = 0 : i64, scratch_operands = 0 : i64, tpu.core_type = #tpu.core_type<tc>, window_params = [{transform_indices = @transform_0, window_bounds = array<i64: 128, 128>}, {pipeline_mode = #tpu.pipeline_mode<synchronous>, transform_indices = @transform_1, window_bounds = array<i64: 1, 128>}, {pipeline_mode = #tpu.pipeline_mode<synchronous>, transform_indices = @transform_2, window_bounds = array<i64: 1, 128>}, {transform_indices = @transform_3, window_bounds = array<i64: 128, 128>}]} {
    %c0 = arith.constant 0 : index
    %c0_0 = arith.constant 0 : index
    %0 = vector.load %arg1[%c0, %c0_0] : memref<128x128xbf16, #tpu.memory_space<vmem>>, vector<128x128xbf16>
    %1 = arith.extf %0 : vector<128x128xbf16> to vector<128x128xf32>
    %c0_1 = arith.constant 0 : index
    %c0_2 = arith.constant 0 : index
    %2 = vector.load %arg2[%c0_1, %c0_2] : memref<1x128xf32, #tpu.memory_space<vmem>>, vector<1x128xf32>
    %3 = vector.broadcast %2 : vector<1x128xf32> to vector<128x128xf32>
    %4 = arith.mulf %1, %3 : vector<128x128xf32>
    %c0_3 = arith.constant 0 : index
    %c0_4 = arith.constant 0 : index
    %5 = vector.load %arg3[%c0_3, %c0_4] : memref<1x128xf32, #tpu.memory_space<vmem>>, vector<1x128xf32>
    %6 = vector.broadcast %5 : vector<1x128xf32> to vector<128x128xf32>
    %7 = arith.addf %4, %6 : vector<128x128xf32>
    %cst = arith.constant 0.000000e+00 : f32
    %8 = vector.broadcast %cst : f32 to vector<128x128xf32>
    %9 = arith.maximumf %7, %8 : vector<128x128xf32>
    %10 = arith.truncf %9 : vector<128x128xf32> to vector<128x128xbf16>
    %c0_5 = arith.constant 0 : index
    %c0_6 = arith.constant 0 : index
    %11 = vector.load %arg4[%c0_5, %c0_6] : memref<128x128xbf16, #tpu.memory_space<vmem>>, vector<128x128xbf16>
    tpu.vector_store %arg4[%c0_5, %c0_6], %10 {strides = array<i32>} : memref<128x128xbf16, #tpu.memory_space<vmem>>, vector<128x128xbf16>,
    return
  }
  func.func @transform_0(%arg0: i32) -> (i32, i32) {
    %c0_i32 = arith.constant 0 : i32
    %c0_i32_0 = arith.constant 0 : i32
    return %arg0, %c0_i32 : i32, i32
  }
  func.func @transform_1(%arg0: i32) -> (i32, i32) {
    %c0_i32 = arith.constant 0 : i32
    %c0_i32_0 = arith.constant 0 : i32
    %c0_i32_1 = arith.constant 0 : i32
    return %c0_i32, %c0_i32_0 : i32, i32
  }
  func.func @transform_2(%arg0: i32) -> (i32, i32) {
    %c0_i32 = arith.constant 0 : i32
    %c0_i32_0 = arith.constant 0 : i32
    %c0_i32_1 = arith.constant 0 : i32
    return %c0_i32, %c0_i32_0 : i32, i32
  }
  func.func @transform_3(%arg0: i32) -> (i32, i32) {
    %c0_i32 = arith.constant 0 : i32
    %c0_i32_0 = arith.constant 0 : i32
    return %arg0, %c0_i32 : i32, i32
  }
}

module attributes {stable_mosaic.version = 11 : i64} {
  func.func @_conv_stats_kernel(%arg0: i32, %arg1: i32, %arg2: memref<1x10x1x8x128xbf16, #tpu.memory_space<vmem>>, %arg3: memref<1x3x128x128xbf16, #tpu.memory_space<vmem>>, %arg4: memref<1x64x128xbf16, #tpu.memory_space<vmem>>, %arg5: memref<8x128xf32, #tpu.memory_space<vmem>>, %arg6: memref<8x128xf32, #tpu.memory_space<vmem>>, %arg7: memref<64x128xf32, #tpu.memory_space<vmem>>) attributes {dimension_semantics = [#tpu.dimension_semantics<parallel>, #tpu.dimension_semantics<arbitrary>], iteration_bounds = array<i64: 2, 3>, scalar_prefetch = 0 : i64, scratch_operands = 1 : i64, tpu.core_type = #tpu.core_type<tc>, window_params = [{transform_indices = @transform_0, window_bounds = array<i64: 1, 10, 1, 8, 128>}, {transform_indices = @transform_1, window_bounds = array<i64: 1, 3, 128, 128>}, {transform_indices = @transform_2, window_bounds = array<i64: 1, 64, 128>}, {transform_indices = @transform_3, window_bounds = array<i64: 8, 128>}, {transform_indices = @transform_4, window_bounds = array<i64: 8, 128>}]} {
    %c0_i32 = arith.constant 0 : i32
    %0 = arith.cmpi eq, %arg1, %c0_i32 : i32
    %1 = arith.extui %0 : i1 to i32
    %c0_i32_0 = arith.constant 0 : i32
    %2 = arith.cmpi ne, %1, %c0_i32_0 : i32
    scf.if %2 {
      %cst_16 = arith.constant 0.000000e+00 : f32
      %30 = vector.broadcast %cst_16 : f32 to vector<64x128xf32>
      %c0_17 = arith.constant 0 : index
      %c0_18 = arith.constant 0 : index
      %31 = vector.load %arg7[%c0_17, %c0_18] : memref<64x128xf32, #tpu.memory_space<vmem>>, vector<64x128xf32>
      tpu.vector_store %arg7[%c0_17, %c0_18], %30 {strides = array<i32>} : memref<64x128xf32, #tpu.memory_space<vmem>>, vector<64x128xf32>,
    } else {
    }
    %c0 = arith.constant 0 : index
    %c0_1 = arith.constant 0 : index
    %c0_2 = arith.constant 0 : index
    %c0_3 = arith.constant 0 : index
    %c0_4 = arith.constant 0 : index
    %3 = vector.load %arg2[%c0, %c0_1, %c0_2, %c0_3, %c0_4] : memref<1x10x1x8x128xbf16, #tpu.memory_space<vmem>>, vector<1x10x1x8x128xbf16>
    %4 = vector.shape_cast %3 : vector<1x10x1x8x128xbf16> to vector<10x8x128xbf16>
    %c0_5 = arith.constant 0 : index
    %c0_6 = arith.constant 0 : index
    %c0_7 = arith.constant 0 : index
    %c0_8 = arith.constant 0 : index
    %5 = vector.load %arg3[%c0_5, %c0_6, %c0_7, %c0_8] : memref<1x3x128x128xbf16, #tpu.memory_space<vmem>>, vector<1x3x128x128xbf16>
    %6 = vector.shape_cast %5 : vector<1x3x128x128xbf16> to vector<3x128x128xbf16>
    %7 = vector.extract_strided_slice %4 {offsets = [0, 0, 0], sizes = [8, 8, 128], strides = [1, 1, 1]} : vector<10x8x128xbf16> to vector<8x8x128xbf16>
    %8 = vector.shape_cast %7 : vector<8x8x128xbf16> to vector<64x128xbf16>
    %9 = vector.extract_strided_slice %6 {offsets = [0, 0, 0], sizes = [1, 128, 128], strides = [1, 1, 1]} : vector<3x128x128xbf16> to vector<1x128x128xbf16>
    %10 = vector.shape_cast %9 : vector<1x128x128xbf16> to vector<128x128xbf16>
    %cst = arith.constant dense<0.000000e+00> : vector<64x128xf32>
    %11 = tpu.matmul %8, %10, %cst {dimension_numbers = #tpu.dot_dimension_numbers<[1], [0], [0], [1], [0, 0, 1, 1], [], []>} : vector<64x128xbf16>, vector<128x128xbf16>, vector<64x128xf32> -> vector<64x128xf32>
    %12 = vector.extract_strided_slice %4 {offsets = [1, 0, 0], sizes = [8, 8, 128], strides = [1, 1, 1]} : vector<10x8x128xbf16> to vector<8x8x128xbf16>
    %13 = vector.shape_cast %12 : vector<8x8x128xbf16> to vector<64x128xbf16>
    %14 = vector.extract_strided_slice %6 {offsets = [1, 0, 0], sizes = [1, 128, 128], strides = [1, 1, 1]} : vector<3x128x128xbf16> to vector<1x128x128xbf16>
    %15 = vector.shape_cast %14 : vector<1x128x128xbf16> to vector<128x128xbf16>
    %cst_9 = arith.constant dense<0.000000e+00> : vector<64x128xf32>
    %16 = tpu.matmul %13, %15, %cst_9 {dimension_numbers = #tpu.dot_dimension_numbers<[1], [0], [0], [1], [0, 0, 1, 1], [], []>} : vector<64x128xbf16>, vector<128x128xbf16>, vector<64x128xf32> -> vector<64x128xf32>
    %17 = arith.addf %11, %16 : vector<64x128xf32>
    %18 = vector.extract_strided_slice %4 {offsets = [2, 0, 0], sizes = [8, 8, 128], strides = [1, 1, 1]} : vector<10x8x128xbf16> to vector<8x8x128xbf16>
    %19 = vector.shape_cast %18 : vector<8x8x128xbf16> to vector<64x128xbf16>
    %20 = vector.extract_strided_slice %6 {offsets = [2, 0, 0], sizes = [1, 128, 128], strides = [1, 1, 1]} : vector<3x128x128xbf16> to vector<1x128x128xbf16>
    %21 = vector.shape_cast %20 : vector<1x128x128xbf16> to vector<128x128xbf16>
    %cst_10 = arith.constant dense<0.000000e+00> : vector<64x128xf32>
    %22 = tpu.matmul %19, %21, %cst_10 {dimension_numbers = #tpu.dot_dimension_numbers<[1], [0], [0], [1], [0, 0, 1, 1], [], []>} : vector<64x128xbf16>, vector<128x128xbf16>, vector<64x128xf32> -> vector<64x128xf32>
    %23 = arith.addf %17, %22 : vector<64x128xf32>
    %c0_11 = arith.constant 0 : index
    %c0_12 = arith.constant 0 : index
    %24 = vector.load %arg7[%c0_11, %c0_12] : memref<64x128xf32, #tpu.memory_space<vmem>>, vector<64x128xf32>
    %25 = arith.addf %24, %23 : vector<64x128xf32>
    %c0_13 = arith.constant 0 : index
    %c0_14 = arith.constant 0 : index
    %26 = vector.load %arg7[%c0_13, %c0_14] : memref<64x128xf32, #tpu.memory_space<vmem>>, vector<64x128xf32>
    tpu.vector_store %arg7[%c0_13, %c0_14], %25 {strides = array<i32>} : memref<64x128xf32, #tpu.memory_space<vmem>>, vector<64x128xf32>,
    %c2_i32 = arith.constant 2 : i32
    %27 = arith.cmpi eq, %arg1, %c2_i32 : i32
    %28 = arith.extui %27 : i1 to i32
    %c0_i32_15 = arith.constant 0 : i32
    %29 = arith.cmpi ne, %28, %c0_i32_15 : i32
    scf.if %29 {
      %c0_16 = arith.constant 0 : index
      %c0_17 = arith.constant 0 : index
      %30 = vector.load %arg7[%c0_16, %c0_17] : memref<64x128xf32, #tpu.memory_space<vmem>>, vector<64x128xf32>
      %31 = arith.truncf %30 : vector<64x128xf32> to vector<64x128xbf16>
      %32 = vector.shape_cast %31 : vector<64x128xbf16> to vector<1x64x128xbf16>
      %c0_18 = arith.constant 0 : index
      %c0_19 = arith.constant 0 : index
      %c0_20 = arith.constant 0 : index
      %33 = vector.load %arg4[%c0_18, %c0_19, %c0_20] : memref<1x64x128xbf16, #tpu.memory_space<vmem>>, vector<1x64x128xbf16>
      tpu.vector_store %arg4[%c0_18, %c0_19, %c0_20], %32 {strides = array<i32>} : memref<1x64x128xbf16, #tpu.memory_space<vmem>>, vector<1x64x128xbf16>,
      %cst_21 = arith.constant dense<0.000000e+00> : vector<128xf32>
      %34 = vector.multi_reduction <add>, %30, %cst_21 [0] : vector<64x128xf32> to vector<128xf32>
      %35 = vector.shape_cast %34 : vector<128xf32> to vector<1x128xf32>
      %36 = arith.mulf %30, %30 : vector<64x128xf32>
      %cst_22 = arith.constant dense<0.000000e+00> : vector<128xf32>
      %37 = vector.multi_reduction <add>, %36, %cst_22 [0] : vector<64x128xf32> to vector<128xf32>
      %38 = vector.shape_cast %37 : vector<128xf32> to vector<1x128xf32>
      %39 = vector.shape_cast %35 : vector<1x128xf32> to vector<1x128xf32>
      %40 = vector.broadcast %39 : vector<1x128xf32> to vector<8x128xf32>
      %c0_23 = arith.constant 0 : index
      %c0_24 = arith.constant 0 : index
      %41 = vector.load %arg5[%c0_23, %c0_24] : memref<8x128xf32, #tpu.memory_space<vmem>>, vector<8x128xf32>
      tpu.vector_store %arg5[%c0_23, %c0_24], %40 {strides = array<i32>} : memref<8x128xf32, #tpu.memory_space<vmem>>, vector<8x128xf32>,
      %42 = vector.shape_cast %38 : vector<1x128xf32> to vector<1x128xf32>
      %43 = vector.broadcast %42 : vector<1x128xf32> to vector<8x128xf32>
      %c0_25 = arith.constant 0 : index
      %c0_26 = arith.constant 0 : index
      %44 = vector.load %arg6[%c0_25, %c0_26] : memref<8x128xf32, #tpu.memory_space<vmem>>, vector<8x128xf32>
      tpu.vector_store %arg6[%c0_25, %c0_26], %43 {strides = array<i32>} : memref<8x128xf32, #tpu.memory_space<vmem>>, vector<8x128xf32>,
    } else {
    }
    return
  }
  func.func @transform_0(%arg0: i32, %arg1: i32) -> (i32, i32, i32, i32, i32) {
    %c0_i32 = arith.constant 0 : i32
    %c0_i32_0 = arith.constant 0 : i32
    %c0_i32_1 = arith.constant 0 : i32
    %c0_i32_2 = arith.constant 0 : i32
    return %arg0, %c0_i32, %arg1, %c0_i32_0, %c0_i32_1 : i32, i32, i32, i32, i32
  }
  func.func @transform_1(%arg0: i32, %arg1: i32) -> (i32, i32, i32, i32) {
    %c0_i32 = arith.constant 0 : i32
    %c0_i32_0 = arith.constant 0 : i32
    %c0_i32_1 = arith.constant 0 : i32
    %c0_i32_2 = arith.constant 0 : i32
    return %arg1, %c0_i32, %c0_i32_0, %c0_i32_1 : i32, i32, i32, i32
  }
  func.func @transform_2(%arg0: i32, %arg1: i32) -> (i32, i32, i32) {
    %c0_i32 = arith.constant 0 : i32
    %c0_i32_0 = arith.constant 0 : i32
    %c0_i32_1 = arith.constant 0 : i32
    return %arg0, %c0_i32, %c0_i32_0 : i32, i32, i32
  }
  func.func @transform_3(%arg0: i32, %arg1: i32) -> (i32, i32) {
    %c0_i32 = arith.constant 0 : i32
    %c0_i32_0 = arith.constant 0 : i32
    return %arg0, %c0_i32 : i32, i32
  }
  func.func @transform_4(%arg0: i32, %arg1: i32) -> (i32, i32) {
    %c0_i32 = arith.constant 0 : i32
    %c0_i32_0 = arith.constant 0 : i32
    return %arg0, %c0_i32 : i32, i32
  }
}

module attributes {stable_mosaic.version = 11 : i64} {
  func.func @_finalize_kernel(%arg0: i32, %arg1: memref<128x128xbf16, #tpu.memory_space<vmem>>, %arg2: memref<1x128xf32, #tpu.memory_space<vmem>>, %arg3: memref<1x128xf32, #tpu.memory_space<vmem>>, %arg4: memref<128x128xbf16, #tpu.memory_space<vmem>>, %arg5: memref<1x128xf32, #tpu.memory_space<vmem>>, %arg6: memref<1x128xf32, #tpu.memory_space<vmem>>, %arg7: memref<128x128xf32, #tpu.memory_space<vmem>>) attributes {dimension_semantics = [#tpu.dimension_semantics<parallel>], iteration_bounds = array<i64: 1>, scalar_prefetch = 0 : i64, scratch_operands = 0 : i64, tpu.core_type = #tpu.core_type<tc>, window_params = [{transform_indices = @transform_0, window_bounds = array<i64: 128, 128>}, {pipeline_mode = #tpu.pipeline_mode<synchronous>, transform_indices = @transform_1, window_bounds = array<i64: 1, 128>}, {pipeline_mode = #tpu.pipeline_mode<synchronous>, transform_indices = @transform_2, window_bounds = array<i64: 1, 128>}, {transform_indices = @transform_3, window_bounds = array<i64: 128, 128>}, {pipeline_mode = #tpu.pipeline_mode<synchronous>, transform_indices = @transform_4, window_bounds = array<i64: 1, 128>}, {pipeline_mode = #tpu.pipeline_mode<synchronous>, transform_indices = @transform_5, window_bounds = array<i64: 1, 128>}, {transform_indices = @transform_6, window_bounds = array<i64: 128, 128>}]} {
    %c0 = arith.constant 0 : index
    %c0_0 = arith.constant 0 : index
    %0 = vector.load %arg1[%c0, %c0_0] : memref<128x128xbf16, #tpu.memory_space<vmem>>, vector<128x128xbf16>
    %1 = arith.extf %0 : vector<128x128xbf16> to vector<128x128xf32>
    %c0_1 = arith.constant 0 : index
    %c0_2 = arith.constant 0 : index
    %2 = vector.load %arg2[%c0_1, %c0_2] : memref<1x128xf32, #tpu.memory_space<vmem>>, vector<1x128xf32>
    %3 = vector.broadcast %2 : vector<1x128xf32> to vector<128x128xf32>
    %4 = arith.mulf %1, %3 : vector<128x128xf32>
    %c0_3 = arith.constant 0 : index
    %c0_4 = arith.constant 0 : index
    %5 = vector.load %arg3[%c0_3, %c0_4] : memref<1x128xf32, #tpu.memory_space<vmem>>, vector<1x128xf32>
    %6 = vector.broadcast %5 : vector<1x128xf32> to vector<128x128xf32>
    %7 = arith.addf %4, %6 : vector<128x128xf32>
    %c0_5 = arith.constant 0 : index
    %c0_6 = arith.constant 0 : index
    %8 = vector.load %arg4[%c0_5, %c0_6] : memref<128x128xbf16, #tpu.memory_space<vmem>>, vector<128x128xbf16>
    %9 = arith.extf %8 : vector<128x128xbf16> to vector<128x128xf32>
    %c0_7 = arith.constant 0 : index
    %c0_8 = arith.constant 0 : index
    %10 = vector.load %arg5[%c0_7, %c0_8] : memref<1x128xf32, #tpu.memory_space<vmem>>, vector<1x128xf32>
    %11 = vector.broadcast %10 : vector<1x128xf32> to vector<128x128xf32>
    %12 = arith.mulf %9, %11 : vector<128x128xf32>
    %c0_9 = arith.constant 0 : index
    %c0_10 = arith.constant 0 : index
    %13 = vector.load %arg6[%c0_9, %c0_10] : memref<1x128xf32, #tpu.memory_space<vmem>>, vector<1x128xf32>
    %14 = vector.broadcast %13 : vector<1x128xf32> to vector<128x128xf32>
    %15 = arith.addf %12, %14 : vector<128x128xf32>
    %16 = arith.addf %7, %15 : vector<128x128xf32>
    %cst = arith.constant 0.000000e+00 : f32
    %17 = vector.broadcast %cst : f32 to vector<128x128xf32>
    %18 = arith.maximumf %16, %17 : vector<128x128xf32>
    %c0_11 = arith.constant 0 : index
    %c0_12 = arith.constant 0 : index
    %19 = vector.load %arg7[%c0_11, %c0_12] : memref<128x128xf32, #tpu.memory_space<vmem>>, vector<128x128xf32>
    tpu.vector_store %arg7[%c0_11, %c0_12], %18 {strides = array<i32>} : memref<128x128xf32, #tpu.memory_space<vmem>>, vector<128x128xf32>,
    return
  }
  func.func @transform_0(%arg0: i32) -> (i32, i32) {
    %c0_i32 = arith.constant 0 : i32
    %c0_i32_0 = arith.constant 0 : i32
    return %arg0, %c0_i32 : i32, i32
  }
  func.func @transform_1(%arg0: i32) -> (i32, i32) {
    %c0_i32 = arith.constant 0 : i32
    %c0_i32_0 = arith.constant 0 : i32
    %c0_i32_1 = arith.constant 0 : i32
    return %c0_i32, %c0_i32_0 : i32, i32
  }
  func.func @transform_2(%arg0: i32) -> (i32, i32) {
    %c0_i32 = arith.constant 0 : i32
    %c0_i32_0 = arith.constant 0 : i32
    %c0_i32_1 = arith.constant 0 : i32
    return %c0_i32, %c0_i32_0 : i32, i32
  }
  func.func @transform_3(%arg0: i32) -> (i32, i32) {
    %c1_i32 = arith.constant 1 : i32
    %c0_i32 = arith.constant 0 : i32
    return %arg0, %c1_i32 : i32, i32
  }
  func.func @transform_4(%arg0: i32) -> (i32, i32) {
    %c0_i32 = arith.constant 0 : i32
    %c0_i32_0 = arith.constant 0 : i32
    %c0_i32_1 = arith.constant 0 : i32
    return %c0_i32, %c0_i32_0 : i32, i32
  }
  func.func @transform_5(%arg0: i32) -> (i32, i32) {
    %c0_i32 = arith.constant 0 : i32
    %c0_i32_0 = arith.constant 0 : i32
    %c0_i32_1 = arith.constant 0 : i32
    return %c0_i32, %c0_i32_0 : i32, i32
  }
  func.func @transform_6(%arg0: i32) -> (i32, i32) {
    %c0_i32 = arith.constant 0 : i32
    %c0_i32_0 = arith.constant 0 : i32
    return %arg0, %c0_i32 : i32, i32
  }
}

</mosaic_0001>

<llo_original>
// kernel: residual_block_forward.5
$region0: #{residual_block_forward.5}
  #allocation0 [shape = 'u32[]', space=smem, size = 0x4, offset = 0x4, fixed_abs, tag = 'smem constant byte address 0x4 - core index']
  #allocation1 [shape = 'u32[144,128]{1,0:T(1,128)}', space=vmem, size = 0x12000, scoped, tag = 'internal scratch']
  %s0 = inlined_call_operand.vmem [shape: bf16[128,256], index: 0, kind: input, shape index: {}]
  %s1 = inlined_call_operand.vmem [shape: f32[1,128], index: 1, kind: input, shape index: {}]
  %s2 = inlined_call_operand.vmem [shape: f32[1,128], index: 2, kind: input, shape index: {}]
  %s3 = inlined_call_operand.vmem [shape: bf16[128,128], index: 3, kind: output, shape index: {}]
  %s4 = sld [smem:[#allocation0]]
  $region63: #{residual_block_forward.5} parent=0
    _
  %s6 = ssub.s32 1, %s4
  %s7 = scalar_select 0, %s6, %s4
  $region1: #{residual_block_forward.5} parent=0
    #allocation2 [shape = 'u8[32768]{0}', space=vmem, size = 0x8000, scoped, tag = 'input window, operand 0, single buffered']
    // Predicated region
    $region2: #{residual_block_forward.5} parent=1 // pred_check
      _
    $region3: #{residual_block_forward.5} parent=1 // pred_check_branch
      %9 = sbr.rel (0) target = $region5
    $region4: #{residual_block_forward.5} parent=1 // pred_region
      // Predicated region
      $region6: #{residual_block_forward.5} parent=4 // pred_check
        _
      $region7: #{residual_block_forward.5} parent=4 // pred_check_branch
        %11 = sbr.rel (0) target = $region9
      $region8: #{residual_block_forward.5} parent=4 // pred_region
        // Predicated region
        $region10: #{residual_block_forward.5} parent=8 // pred_check
          _
        $region11: #{residual_block_forward.5} parent=8 // pred_check_branch
          %13 = sbr.rel target = $region13
        $region12: #{residual_block_forward.5} parent=8 // pred_region
          // Predicated region
          $region25: #{residual_block_forward.5} parent=12 // pred_check
            _
          $region26: #{residual_block_forward.5} parent=12 // pred_check_branch
            %59 = sbr.rel (0) target = $region28
          $region27: #{residual_block_forward.5} parent=12 // pred_region
            loop: start=0, step=1, limit=1
            $region29: #{residual_block_forward.5} parent=27 // loop_pre_header
              _
            $region30: #{residual_block_forward.5} parent=27 // loop_header
              %s61 = sphi 0, %s65
              %p62 = scmp.ge.s32.totalorder %s61, 1
              %s66 = sphi %s0, %s0
              %s67 = sphi [#allocation2], [#allocation2]
            $region31: #{residual_block_forward.5} parent=27 // loop_header_branch
              %64 = sbr.rel (%p62) target = $region35
            $region32: #{residual_block_forward.5} parent=27 // loop_body
              _
            $region33: #{residual_block_forward.5} parent=27 // loop_footer
              %s65 = sadd.s32 1, %s61
            $region34: #{residual_block_forward.5} parent=27 // loop_footer_branch
              %60 = sbr.rel target = $region30
            $region35: #{residual_block_forward.5} parent=27 // loop_exit
              _
            %s69 = ssub.s32 16, 1
            loop: start=0, step=1, limit=1
            $region36: #{residual_block_forward.5} parent=27 // loop_pre_header
              _
            $region37: #{residual_block_forward.5} parent=27 // loop_header
              %s71 = sphi 0, %s75
              %p72 = scmp.ge.s32.totalorder %s71, 1
              %s76 = sphi %s0, %s0
              %s77 = sphi [#allocation2], [#allocation2]
            $region38: #{residual_block_forward.5} parent=27 // loop_header_branch
              %74 = sbr.rel (%p72) target = $region42
            $region39: #{residual_block_forward.5} parent=27 // loop_body
              %v78 = vld [vmem:[%s76] sm:%s69]
              %79 = vst [vmem:[%s77] sm:%s69] %v78
              %v80 = vld [vmem:[%s76 + $0x8] sm:%s69]
              %81 = vst [vmem:[%s77 + $0x4] sm:%s69] %v80
              %v82 = vld [vmem:[%s76 + $0x10] sm:%s69]
              %83 = vst [vmem:[%s77 + $0x8] sm:%s69] %v82
              %v84 = vld [vmem:[%s76 + $0x18] sm:%s69]
              %85 = vst [vmem:[%s77 + $0xc] sm:%s69] %v84
              %v86 = vld [vmem:[%s76 + $0x20] sm:%s69]
              %87 = vst [vmem:[%s77 + $0x10] sm:%s69] %v86
              %v88 = vld [vmem:[%s76 + $0x28] sm:%s69]
              %89 = vst [vmem:[%s77 + $0x14] sm:%s69] %v88
              %v90 = vld [vmem:[%s76 + $0x30] sm:%s69]
              %91 = vst [vmem:[%s77 + $0x18] sm:%s69] %v90
              %v92 = vld [vmem:[%s76 + $0x38] sm:%s69]
              %93 = vst [vmem:[%s77 + $0x1c] sm:%s69] %v92
              %v94 = vld [vmem:[%s76 + $0x40] sm:%s69]
              %95 = vst [vmem:[%s77 + $0x20] sm:%s69] %v94
              %v96 = vld [vmem:[%s76 + $0x48] sm:%s69]
              %97 = vst [vmem:[%s77 + $0x24] sm:%s69] %v96
              %v98 = vld [vmem:[%s76 + $0x50] sm:%s69]
              %99 = vst [vmem:[%s77 + $0x28] sm:%s69] %v98
              %v100 = vld [vmem:[%s76 + $0x58] sm:%s69]
              %101 = vst [vmem:[%s77 + $0x2c] sm:%s69] %v100
              %v102 = vld [vmem:[%s76 + $0x60] sm:%s69]
              %103 = vst [vmem:[%s77 + $0x30] sm:%s69] %v102
              %v104 = vld [vmem:[%s76 + $0x68] sm:%s69]
              %105 = vst [vmem:[%s77 + $0x34] sm:%s69] %v104
              %v106 = vld [vmem:[%s76 + $0x70] sm:%s69]
              %107 = vst [vmem:[%s77 + $0x38] sm:%s69] %v106
              %v108 = vld [vmem:[%s76 + $0x78] sm:%s69]
              %109 = vst [vmem:[%s77 + $0x3c] sm:%s69] %v108
            $region40: #{residual_block_forward.5} parent=27 // loop_footer
              %s75 = sadd.s32 1, %s71
            $region41: #{residual_block_forward.5} parent=27 // loop_footer_branch
              %70 = sbr.rel target = $region37
            $region42: #{residual_block_forward.5} parent=27 // loop_exit
              _
          $region28: #{residual_block_forward.5} parent=12 // pred_fallthru
            _
        $region13: #{residual_block_forward.5} parent=8 // pred_fallthru
          _
        // Predicated region
        $region14: #{residual_block_forward.5} parent=8 // pred_check
          _
        $region15: #{residual_block_forward.5} parent=8 // pred_check_branch
          %15 = sbr.rel (0) target = $region17
        $region16: #{residual_block_forward.5} parent=8 // pred_region
          %s17 = ssub.s32 16, 1
          loop: start=0, step=1, limit=1
          $region18: #{residual_block_forward.5} parent=16 // loop_pre_header
            _
          $region19: #{residual_block_forward.5} parent=16 // loop_header
            %s19 = sphi 0, %s23
            %p20 = scmp.ge.s32.totalorder %s19, 1
            %s24 = sphi %s0, %s0
            %s25 = sphi [#allocation2], [#allocation2]
          $region20: #{residual_block_forward.5} parent=16 // loop_header_branch
            %22 = sbr.rel (%p20) target = $region24
          $region21: #{residual_block_forward.5} parent=16 // loop_body
            %v26 = vld [vmem:[%s24] sm:%s17]
            %27 = vst [vmem:[%s25] sm:%s17] %v26
            %v28 = vld [vmem:[%s24 + $0x8] sm:%s17]
            %29 = vst [vmem:[%s25 + $0x4] sm:%s17] %v28
            %v30 = vld [vmem:[%s24 + $0x10] sm:%s17]
            %31 = vst [vmem:[%s25 + $0x8] sm:%s17] %v30
            %v32 = vld [vmem:[%s24 + $0x18] sm:%s17]
            %33 = vst [vmem:[%s25 + $0xc] sm:%s17] %v32
            %v34 = vld [vmem:[%s24 + $0x20] sm:%s17]
            %35 = vst [vmem:[%s25 + $0x10] sm:%s17] %v34
            %v36 = vld [vmem:[%s24 + $0x28] sm:%s17]
            %37 = vst [vmem:[%s25 + $0x14] sm:%s17] %v36
            %v38 = vld [vmem:[%s24 + $0x30] sm:%s17]
            %39 = vst [vmem:[%s25 + $0x18] sm:%s17] %v38
            %v40 = vld [vmem:[%s24 + $0x38] sm:%s17]
            %41 = vst [vmem:[%s25 + $0x1c] sm:%s17] %v40
            %v42 = vld [vmem:[%s24 + $0x40] sm:%s17]
            %43 = vst [vmem:[%s25 + $0x20] sm:%s17] %v42
            %v44 = vld [vmem:[%s24 + $0x48] sm:%s17]
            %45 = vst [vmem:[%s25 + $0x24] sm:%s17] %v44
            %v46 = vld [vmem:[%s24 + $0x50] sm:%s17]
            %47 = vst [vmem:[%s25 + $0x28] sm:%s17] %v46
            %v48 = vld [vmem:[%s24 + $0x58] sm:%s17]
            %49 = vst [vmem:[%s25 + $0x2c] sm:%s17] %v48
            %v50 = vld [vmem:[%s24 + $0x60] sm:%s17]
            %51 = vst [vmem:[%s25 + $0x30] sm:%s17] %v50
            %v52 = vld [vmem:[%s24 + $0x68] sm:%s17]
            %53 = vst [vmem:[%s25 + $0x34] sm:%s17] %v52
            %v54 = vld [vmem:[%s24 + $0x70] sm:%s17]
            %55 = vst [vmem:[%s25 + $0x38] sm:%s17] %v54
            %v56 = vld [vmem:[%s24 + $0x78] sm:%s17]
            %57 = vst [vmem:[%s25 + $0x3c] sm:%s17] %v56
          $region22: #{residual_block_forward.5} parent=16 // loop_footer
            %s23 = sadd.s32 1, %s19
          $region23: #{residual_block_forward.5} parent=16 // loop_footer_branch
            %18 = sbr.rel target = $region19
          $region24: #{residual_block_forward.5} parent=16 // loop_exit
            _
        $region17: #{residual_block_forward.5} parent=8 // pred_fallthru
          _
      $region9: #{residual_block_forward.5} parent=4 // pred_fallthru
        _
      %110 = vnop
    $region5: #{residual_block_forward.5} parent=1 // pred_fallthru
      _
    // Predicated region
    $region43: #{residual_block_forward.5} parent=1 // pred_check
      _
    $region44: #{residual_block_forward.5} parent=1 // pred_check_branch
      %112 = sbr.rel (0) target = $region46
    $region45: #{residual_block_forward.5} parent=1 // pred_region
      _
    $region46: #{residual_block_forward.5} parent=1 // pred_fallthru
      _
    // Predicated region
    $region47: #{residual_block_forward.5} parent=1 // pred_check
      _
    $region48: #{residual_block_forward.5} parent=1 // pred_check_branch
      %114 = sbr.rel (0) target = $region50
    $region49: #{residual_block_forward.5} parent=1 // pred_region
      _
    $region50: #{residual_block_forward.5} parent=1 // pred_fallthru
      _
    // Predicated region
    $region51: #{residual_block_forward.5} parent=1 // pred_check
      _
    $region52: #{residual_block_forward.5} parent=1 // pred_check_branch
      %116 = sbr.rel (0) target = $region54
    $region53: #{residual_block_forward.5} parent=1 // pred_region
      _
    $region54: #{residual_block_forward.5} parent=1 // pred_fallthru
      _
    %v117 = vld [vmem:[#allocation2] sm:$0xf]
    %v118 = vld [vmem:[#allocation2 + $0x4] sm:$0xf]
    %v119 = vld [vmem:[#allocation2 + $0x8] sm:$0xf]
    %v120 = vld [vmem:[#allocation2 + $0xc] sm:$0xf]
    %v121 = vld [vmem:[#allocation2 + $0x10] sm:$0xf]
    %v122 = vld [vmem:[#allocation2 + $0x14] sm:$0xf]
    %v123 = vld [vmem:[#allocation2 + $0x18] sm:$0xf]
    %v124 = vld [vmem:[#allocation2 + $0x1c] sm:$0xf]
    %v125 = vld [vmem:[#allocation2 + $0x20] sm:$0xf]
    %v126 = vld [vmem:[#allocation2 + $0x24] sm:$0xf]
    %v127 = vld [vmem:[#allocation2 + $0x28] sm:$0xf]
    %v128 = vld [vmem:[#allocation2 + $0x2c] sm:$0xf]
    %v129 = vld [vmem:[#allocation2 + $0x30] sm:$0xf]
    %v130 = vld [vmem:[#allocation2 + $0x34] sm:$0xf]
    %v131 = vld [vmem:[#allocation2 + $0x38] sm:$0xf]
    %v132 = vld [vmem:[#allocation2 + $0x3c] sm:$0xf]
    %v133 = vunpack.c.l.bf16 %v117
    %v134 = vunpack.c.l.bf16 %v118
    %v135 = vunpack.c.l.bf16 %v119
    %v136 = vunpack.c.l.bf16 %v120
    %v137 = vunpack.c.l.bf16 %v121
    %v138 = vunpack.c.l.bf16 %v122
    %v139 = vunpack.c.l.bf16 %v123
    %v140 = vunpack.c.l.bf16 %v124
    %v141 = vunpack.c.l.bf16 %v125
    %v142 = vunpack.c.l.bf16 %v126
    %v143 = vunpack.c.l.bf16 %v127
    %v144 = vunpack.c.l.bf16 %v128
    %v145 = vunpack.c.l.bf16 %v129
    %v146 = vunpack.c.l.bf16 %v130
    %v147 = vunpack.c.l.bf16 %v131
    %v148 = vunpack.c.l.bf16 %v132
    %v149 = vld [vmem:[%s1] sm:$0x1]
    %v151 = vlaneseq
    %v152 = vshrl.u32 %v151, 7
    %v153 = vsub.s32 0, %v152
    %v154 = vrot.slane %v149, %v153
    %v156 = vmul.f32 %v133, %v154
    %v157 = vmul.f32 %v134, %v154
    %v158 = vmul.f32 %v135, %v154
    %v159 = vmul.f32 %v136, %v154
    %v160 = vmul.f32 %v137, %v154
    %v161 = vmul.f32 %v138, %v154
    %v162 = vmul.f32 %v139, %v154
    %v163 = vmul.f32 %v140, %v154
    %v164 = vmul.f32 %v141, %v154
    %v165 = vmul.f32 %v142, %v154
    %v166 = vmul.f32 %v143, %v154
    %v167 = vmul.f32 %v144, %v154
    %v168 = vmul.f32 %v145, %v154
    %v169 = vmul.f32 %v146, %v154
    %v170 = vmul.f32 %v147, %v154
    %v171 = vmul.f32 %v148, %v154
    %v172 = vld [vmem:[%s2] sm:$0x1]
    %v174 = vlaneseq
    %v175 = vshrl.u32 %v174, 7
    %v176 = vsub.s32 0, %v175
    %v177 = vrot.slane %v172, %v176
    %v179 = vadd.f32 %v156, %v177
    %v180 = vadd.f32 %v157, %v177
    %v181 = vadd.f32 %v158, %v177
    %v182 = vadd.f32 %v159, %v177
    %v183 = vadd.f32 %v160, %v177
    %v184 = vadd.f32 %v161, %v177
    %v185 = vadd.f32 %v162, %v177
    %v186 = vadd.f32 %v163, %v177
    %v187 = vadd.f32 %v164, %v177
    %v188 = vadd.f32 %v165, %v177
    %v189 = vadd.f32 %v166, %v177
    %v190 = vadd.f32 %v167, %v177
    %v191 = vadd.f32 %v168, %v177
    %v192 = vadd.f32 %v169, %v177
    %v193 = vadd.f32 %v170, %v177
    %v194 = vadd.f32 %v171, %v177
    %v195 = vmax.f32 %v179, 0.0
    %v196 = vmax.f32 %v180, 0.0
    %v197 = vmax.f32 %v181, 0.0
    %v198 = vmax.f32 %v182, 0.0
    %v199 = vmax.f32 %v183, 0.0
    %v200 = vmax.f32 %v184, 0.0
    %v201 = vmax.f32 %v185, 0.0
    %v202 = vmax.f32 %v186, 0.0
    %v203 = vmax.f32 %v187, 0.0
    %v204 = vmax.f32 %v188, 0.0
    %v205 = vmax.f32 %v189, 0.0
    %v206 = vmax.f32 %v190, 0.0
    %v207 = vmax.f32 %v191, 0.0
    %v208 = vmax.f32 %v192, 0.0
    %v209 = vmax.f32 %v193, 0.0
    %v210 = vmax.f32 %v194, 0.0
    %v211 = vpack.c.bf16 %v196, %v195
    %v212 = vpack.c.bf16 %v198, %v197
    %v213 = vpack.c.bf16 %v200, %v199
    %v214 = vpack.c.bf16 %v202, %v201
    %v215 = vpack.c.bf16 %v204, %v203
    %v216 = vpack.c.bf16 %v206, %v205
    %v217 = vpack.c.bf16 %v208, %v207
    %v218 = vpack.c.bf16 %v210, %v209
    %v227 = vunpack.c.l.b16 %v211
    %v228 = vunpack.c.h.b16 %v211
    %v229 = vunpack.c.l.b16 %v212
    %v230 = vunpack.c.h.b16 %v212
    %v231 = vunpack.c.l.b16 %v213
    %v232 = vunpack.c.h.b16 %v213
    %v233 = vunpack.c.l.b16 %v214
    %v234 = vunpack.c.h.b16 %v214
    %v235 = vunpack.c.l.b16 %v215
    %v236 = vunpack.c.h.b16 %v215
    %v237 = vunpack.c.l.b16 %v216
    %v238 = vunpack.c.h.b16 %v216
    %v239 = vunpack.c.l.b16 %v217
    %v240 = vunpack.c.h.b16 %v217
    %v241 = vunpack.c.l.b16 %v218
    %v242 = vunpack.c.h.b16 %v218
    %v243 = vpack.c.b16 %v227, %v227
    %v244 = vpack.c.b16 %v228, %v228
    %v245 = vpack.c.b16 %v229, %v229
    %v246 = vpack.c.b16 %v230, %v230
    %v247 = vpack.c.b16 %v231, %v231
    %v248 = vpack.c.b16 %v232, %v232
    %v249 = vpack.c.b16 %v233, %v233
    %v250 = vpack.c.b16 %v234, %v234
    %v251 = vpack.c.b16 %v235, %v235
    %v252 = vpack.c.b16 %v236, %v236
    %v253 = vpack.c.b16 %v237, %v237
    %v254 = vpack.c.b16 %v238, %v238
    %v255 = vpack.c.b16 %v239, %v239
    %v256 = vpack.c.b16 %v240, %v240
    %v257 = vpack.c.b16 %v241, %v241
    %v258 = vpack.c.b16 %v242, %v242
    %275 = vst [vmem:[%s3] sm:$0xf] %v243
    %276 = vst [vmem:[%s3 + $0x4] sm:$0xf] %v244
    %277 = vst [vmem:[%s3 + $0x8] sm:$0xf] %v245
    %278 = vst [vmem:[%s3 + $0xc] sm:$0xf] %v246
    %279 = vst [vmem:[%s3 + $0x10] sm:$0xf] %v247
    %280 = vst [vmem:[%s3 + $0x14] sm:$0xf] %v248
    %281 = vst [vmem:[%s3 + $0x18] sm:$0xf] %v249
    %282 = vst [vmem:[%s3 + $0x1c] sm:$0xf] %v250
    %283 = vst [vmem:[%s3 + $0x20] sm:$0xf] %v251
    %284 = vst [vmem:[%s3 + $0x24] sm:$0xf] %v252
    %285 = vst [vmem:[%s3 + $0x28] sm:$0xf] %v253
    %286 = vst [vmem:[%s3 + $0x2c] sm:$0xf] %v254
    %287 = vst [vmem:[%s3 + $0x30] sm:$0xf] %v255
    %288 = vst [vmem:[%s3 + $0x34] sm:$0xf] %v256
    %289 = vst [vmem:[%s3 + $0x38] sm:$0xf] %v257
    %290 = vst [vmem:[%s3 + $0x3c] sm:$0xf] %v258
    // Predicated region
    $region55: #{residual_block_forward.5} parent=1 // pred_check
      _
    $region56: #{residual_block_forward.5} parent=1 // pred_check_branch
      %292 = sbr.rel (0) target = $region58
    $region57: #{residual_block_forward.5} parent=1 // pred_region
      _
    $region58: #{residual_block_forward.5} parent=1 // pred_fallthru
      _
    // Predicated region
    $region59: #{residual_block_forward.5} parent=1 // pred_check
      _
    $region60: #{residual_block_forward.5} parent=1 // pred_check_branch
      %294 = sbr.rel (0) target = $region62
    $region61: #{residual_block_forward.5} parent=1 // pred_region
      _
    $region62: #{residual_block_forward.5} parent=1 // pred_fallthru
      _

// kernel: residual_block_forward.4
$region0: #{residual_block_forward.4}
  #allocation0 [shape = 'u32[]', space=smem, size = 0x4, offset = 0x4, fixed_abs, tag = 'smem constant byte address 0x4 - core index']
  #allocation1 [shape = 'u32[144,128]{1,0:T(1,128)}', space=vmem, size = 0x12000, scoped, tag = 'internal scratch']
  #allocation2 [shape = 'f32[64,256]{1,0:T(8,128)}', space=vmem, size = 0x10000, scoped, tag = 'scratch operand']
  %s0 = inlined_call_operand.vmem [shape: bf16[2,18,3,8,4], index: 0, kind: input, shape index: {}]
  %s1 = inlined_call_operand.vmem [shape: bf16[3,3,4,256], index: 1, kind: input, shape index: {}]
  %s2 = inlined_call_operand.vmem [shape: bf16[2,64,256], index: 2, kind: output, shape index: {0}]
  %s3 = inlined_call_operand.vmem [shape: f32[16,256], index: 3, kind: output, shape index: {1}]
  %s4 = inlined_call_operand.vmem [shape: f32[16,256], index: 4, kind: output, shape index: {2}]
  %5 = xla_tuple %s2, %s3, %s4
  %s6 = sld [smem:[#allocation0]]
  $region106: #{residual_block_forward.4} parent=0
    _
  %s8 = ssub.s32 1, %s6
  %s9 = scalar_select 0, %s8, %s6
  $region1: #{residual_block_forward.4} parent=0
    #allocation3 [shape = 'u8[73728]{0}', space=vmem, size = 0x12000, scoped, tag = 'input window, operand 0']
    loop: start=0, step=1, limit=8
    $region2: #{residual_block_forward.4} parent=1 // loop_pre_header
      _
    $region3: #{residual_block_forward.4} parent=1 // loop_header
      %s11 = sphi 0, %s15
      %p12 = scmp.ge.s32.totalorder %s11, 8
      %s18 = sphi 0, %s30
      %s19 = sphi 0, %s26
      %s20 = sphi 0, %s18
      %s21 = sphi 0, %s19
      %s22 = sphi 0, %s20
      %s23 = sphi 0, %s21
      %s35 = sphi 0, %s37
      %s38 = sphi 0, %s35
      %s39 = sphi 0, %s38
      %s55 = sphi 0, %s39
      %s61 = sphi 0, %s63
      %s64 = sphi 0, %s61
      %s65 = sphi 0, %s64
      %s81 = sphi 0, %s65
      %s87 = sphi 0, %s89
      %s90 = sphi 0, %s87
      %s91 = sphi 0, %s90
      %s107 = sphi 0, %s91
      %s113 = sphi 0, %s115
      %s116 = sphi 0, %s113
      %s117 = sphi 0, %s116
      %s133 = sphi 0, %s117
      %s139 = sphi 0, %s141
      %s142 = sphi 0, %s139
      %s143 = sphi 0, %s142
      %s159 = sphi 0, %s143
    $region4: #{residual_block_forward.4} parent=1 // loop_header_branch
      %14 = sbr.rel (%p12) target = $region8
    $region5: #{residual_block_forward.4} parent=1 // loop_body
      %s16 = ssub.s32 %s11, 1
      %s17 = ssub.s32 %s11, 2
      %s24 = sadd.s32 1, %s19
      %p25 = scmp.ge.s32.totalorder %s24, 3
      %s26 = scalar_select %p25, 0, %s24
      %s27 = sadd.s32 1, %s18
      %s28 = scalar_select %p25, %s27, %s18
      %p29 = scmp.ge.s32.totalorder %s28, 2
      %s30 = scalar_select %p29, 0, %s28
      %s31 = ssub.s32 %s18, %s30
      %s32 = ssub.s32 %s19, %s26
      %s33 = sor.u32 %s31, %s32
      %p34 = scmp.eq.s32.totalorder %s33, 0
      %s36 = sadd.s32 %s35, 1
      %s37 = scalar_select %p34, %s35, %s36
      %p40 = pneg %p34
      %p41 = scmp.eq.s32.totalorder %s11, 5
      %p42 = por %p40, %p41
      %p43 = scmp.ne.s32.totalorder %s35, %s38
      %p44 = scmp.eq.s32.totalorder %s11, 0
      %p45 = por %p43, %p44
      %p46 = scmp.ne.s32.totalorder %s35, %s38
      %p47 = scmp.eq.s32.totalorder %s16, 5
      %p48 = por %p46, %p47
      %p49 = scmp.ne.s32.totalorder %s38, %s39
      %p50 = scmp.eq.s32.totalorder %s16, 0
      %p51 = por %p49, %p50
      %p52 = scmp.ne.s32.totalorder %s38, %s39
      %p53 = scmp.eq.s32.totalorder %s17, 5
      %p54 = por %p52, %p53
      %p56 = scmp.ne.s32.totalorder %s39, %s55
      %p57 = scmp.eq.s32.totalorder %s17, 0
      %p58 = por %p56, %p57
      %s59 = ssub.s32 %s19, %s26
      %p60 = scmp.eq.s32.totalorder %s59, 0
      %s62 = sadd.s32 %s61, 1
      %s63 = scalar_select %p60, %s61, %s62
      %p66 = pneg %p60
      %p67 = scmp.eq.s32.totalorder %s11, 5
      %p68 = por %p66, %p67
      %p69 = scmp.ne.s32.totalorder %s61, %s64
      %p70 = scmp.eq.s32.totalorder %s11, 0
      %p71 = por %p69, %p70
      %p72 = scmp.ne.s32.totalorder %s61, %s64
      %p73 = scmp.eq.s32.totalorder %s16, 5
      %p74 = por %p72, %p73
      %p75 = scmp.ne.s32.totalorder %s64, %s65
      %p76 = scmp.eq.s32.totalorder %s16, 0
      %p77 = por %p75, %p76
      %p78 = scmp.ne.s32.totalorder %s64, %s65
      %p79 = scmp.eq.s32.totalorder %s17, 5
      %p80 = por %p78, %p79
      %p82 = scmp.ne.s32.totalorder %s65, %s81
      %p83 = scmp.eq.s32.totalorder %s17, 0
      %p84 = por %p82, %p83
      %s85 = ssub.s32 %s18, %s30
      %p86 = scmp.eq.s32.totalorder %s85, 0
      %s88 = sadd.s32 %s87, 1
      %s89 = scalar_select %p86, %s87, %s88
      %p92 = pneg %p86
      %p93 = scmp.eq.s32.totalorder %s11, 5
      %p94 = por %p92, %p93
      %p95 = scmp.ne.s32.totalorder %s87, %s90
      %p96 = scmp.eq.s32.totalorder %s11, 0
      %p97 = por %p95, %p96
      %p98 = scmp.ne.s32.totalorder %s87, %s90
      %p99 = scmp.eq.s32.totalorder %s16, 5
      %p100 = por %p98, %p99
      %p101 = scmp.ne.s32.totalorder %s90, %s91
      %p102 = scmp.eq.s32.totalorder %s16, 0
      %p103 = por %p101, %p102
      %p104 = scmp.ne.s32.totalorder %s90, %s91
      %p105 = scmp.eq.s32.totalorder %s17, 5
      %p106 = por %p104, %p105
      %p108 = scmp.ne.s32.totalorder %s91, %s107
      %p109 = scmp.eq.s32.totalorder %s17, 0
      %p110 = por %p108, %p109
      %s111 = ssub.s32 %s18, %s30
      %p112 = scmp.eq.s32.totalorder %s111, 0
      %s114 = sadd.s32 %s113, 1
      %s115 = scalar_select %p112, %s113, %s114
      %p118 = pneg %p112
      %p119 = scmp.eq.s32.totalorder %s11, 5
      %p120 = por %p118, %p119
      %p121 = scmp.ne.s32.totalorder %s113, %s116
      %p122 = scmp.eq.s32.totalorder %s11, 0
      %p123 = por %p121, %p122
      %p124 = scmp.ne.s32.totalorder %s113, %s116
      %p125 = scmp.eq.s32.totalorder %s16, 5
      %p126 = por %p124, %p125
      %p127 = scmp.ne.s32.totalorder %s116, %s117
      %p128 = scmp.eq.s32.totalorder %s16, 0
      %p129 = por %p127, %p128
      %p130 = scmp.ne.s32.totalorder %s116, %s117
      %p131 = scmp.eq.s32.totalorder %s17, 5
      %p132 = por %p130, %p131
      %p134 = scmp.ne.s32.totalorder %s117, %s133
      %p135 = scmp.eq.s32.totalorder %s17, 0
      %p136 = por %p134, %p135
      %s137 = ssub.s32 %s18, %s30
      %p138 = scmp.eq.s32.totalorder %s137, 0
      %s140 = sadd.s32 %s139, 1
      %s141 = scalar_select %p138, %s139, %s140
      %p144 = pneg %p138
      %p145 = scmp.eq.s32.totalorder %s11, 5
      %p146 = por %p144, %p145
      %p147 = scmp.ne.s32.totalorder %s139, %s142
      %p148 = scmp.eq.s32.totalorder %s11, 0
      %p149 = por %p147, %p148
      %p150 = scmp.ne.s32.totalorder %s139, %s142
      %p151 = scmp.eq.s32.totalorder %s16, 5
      %p152 = por %p150, %p151
      %p153 = scmp.ne.s32.totalorder %s142, %s143
      %p154 = scmp.eq.s32.totalorder %s16, 0
      %p155 = por %p153, %p154
      %p156 = scmp.ne.s32.totalorder %s142, %s143
      %p157 = scmp.eq.s32.totalorder %s17, 5
      %p158 = por %p156, %p157
      %p160 = scmp.ne.s32.totalorder %s143, %s159
      %p161 = scmp.eq.s32.totalorder %s17, 0
      %p162 = por %p160, %p161
      %p163 = scmp.le.s32.totalorder 1, %s11
      %p164 = scmp.lt.s32.totalorder %s11, 7
      %p165 = pnand %p163, %p164
      %p166 = pneg %p165
      // Predicated region
      $region9: #{residual_block_forward.4} parent=5 // pred_check
        _
      $region10: #{residual_block_forward.4} parent=5 // pred_check_branch
        %168 = sbr.rel (%p165) target = $region12
      $region11: #{residual_block_forward.4} parent=5 // pred_region
        %s169 = ssub.s32 %s11, 1
      $region12: #{residual_block_forward.4} parent=5 // pred_fallthru
        _
      %p170 = scmp.lt.s32.totalorder %s11, 6
      // Predicated region
      $region13: #{residual_block_forward.4} parent=5 // pred_check
        %p171 = pneg %p170
      $region14: #{residual_block_forward.4} parent=5 // pred_check_branch
        %173 = sbr.rel (%p171) target = $region16
      $region15: #{residual_block_forward.4} parent=5 // pred_region
        // Predicated region
        $region17: #{residual_block_forward.4} parent=15 // pred_check
          %p174 = pneg %p45
        $region18: #{residual_block_forward.4} parent=15 // pred_check_branch
          %176 = sbr.rel (%p174) target = $region20
        $region19: #{residual_block_forward.4} parent=15 // pred_region
          %s177 = sand.u32 %s35, 1
          %s178 = sand.u32 %s35, 1
          %s179 = smul.addr %s178, 72
          %s180 = scalar_lea.vmem [#allocation3], %s179
          %s181 = smul.addr %s18, 54
          %s182 = sadd.s32 %s19, %s181
          %s183 = smul.addr %s182, 4
          %s184 = scalar_lea.vmem %s0, %s183
          // Predicated region
          $region21: #{residual_block_forward.4} parent=19 // pred_check
            _
          $region22: #{residual_block_forward.4} parent=19 // pred_check_branch
            %186 = sbr.rel (0) target = $region24
          $region23: #{residual_block_forward.4} parent=19 // pred_region
            // Predicated region
            $region25: #{residual_block_forward.4} parent=23 // pred_check
              _
            $region26: #{residual_block_forward.4} parent=23 // pred_check_branch
              %188 = sbr.rel target = $region28
            $region27: #{residual_block_forward.4} parent=23 // pred_region
              // Predicated region
              $region40: #{residual_block_forward.4} parent=27 // pred_check
                _
              $region41: #{residual_block_forward.4} parent=27 // pred_check_branch
                %238 = sbr.rel (0) target = $region43
              $region42: #{residual_block_forward.4} parent=27 // pred_region
                loop: start=0, step=1, limit=1
                $region44: #{residual_block_forward.4} parent=42 // loop_pre_header
                  _
                $region45: #{residual_block_forward.4} parent=42 // loop_header
                  %s240 = sphi 0, %s244
                  %p241 = scmp.ge.s32.totalorder %s240, 1
                  %s245 = sphi %s184, %s184
                  %s246 = sphi %s180, %s180
                $region46: #{residual_block_forward.4} parent=42 // loop_header_branch
                  %243 = sbr.rel (%p241) target = $region50
                $region47: #{residual_block_forward.4} parent=42 // loop_body
                  _
                $region48: #{residual_block_forward.4} parent=42 // loop_footer
                  %s244 = sadd.s32 1, %s240
                $region49: #{residual_block_forward.4} parent=42 // loop_footer_branch
                  %239 = sbr.rel target = $region45
                $region50: #{residual_block_forward.4} parent=42 // loop_exit
                  _
                %s248 = ssub.s32 16, 1
                loop: start=0, step=1, limit=1
                $region51: #{residual_block_forward.4} parent=42 // loop_pre_header
                  _
                $region52: #{residual_block_forward.4} parent=42 // loop_header
                  %s250 = sphi 0, %s254
                  %p251 = scmp.ge.s32.totalorder %s250, 1
                  %s255 = sphi %s184, %s184
                  %s256 = sphi %s180, %s180
                $region53: #{residual_block_forward.4} parent=42 // loop_header_branch
                  %253 = sbr.rel (%p251) target = $region57
                $region54: #{residual_block_forward.4} parent=42 // loop_body
                  %v257 = vld [vmem:[%s255] sm:%s248]
                  %258 = vst [vmem:[%s256] sm:%s248] %v257
                  %v259 = vld [vmem:[%s255 + $0xc] sm:%s248]
                  %260 = vst [vmem:[%s256 + $0x4] sm:%s248] %v259
                  %v261 = vld [vmem:[%s255 + $0x18] sm:%s248]
                  %262 = vst [vmem:[%s256 + $0x8] sm:%s248] %v261
                  %v263 = vld [vmem:[%s255 + $0x24] sm:%s248]
                  %264 = vst [vmem:[%s256 + $0xc] sm:%s248] %v263
                  %v265 = vld [vmem:[%s255 + $0x30] sm:%s248]
                  %266 = vst [vmem:[%s256 + $0x10] sm:%s248] %v265
                  %v267 = vld [vmem:[%s255 + $0x3c] sm:%s248]
                  %268 = vst [vmem:[%s256 + $0x14] sm:%s248] %v267
                  %v269 = vld [vmem:[%s255 + $0x48] sm:%s248]
                  %270 = vst [vmem:[%s256 + $0x18] sm:%s248] %v269
                  %v271 = vld [vmem:[%s255 + $0x54] sm:%s248]
                  %272 = vst [vmem:[%s256 + $0x1c] sm:%s248] %v271
                  %v273 = vld [vmem:[%s255 + $0x60] sm:%s248]
                  %274 = vst [vmem:[%s256 + $0x20] sm:%s248] %v273
                  %v275 = vld [vmem:[%s255 + $0x6c] sm:%s248]
                  %276 = vst [vmem:[%s256 + $0x24] sm:%s248] %v275
                  %v277 = vld [vmem:[%s255 + $0x78] sm:%s248]
                  %278 = vst [vmem:[%s256 + $0x28] sm:%s248] %v277
                  %v279 = vld [vmem:[%s255 + $0x84] sm:%s248]
                  %280 = vst [vmem:[%s256 + $0x2c] sm:%s248] %v279
                  %v281 = vld [vmem:[%s255 + $0x90] sm:%s248]
                  %282 = vst [vmem:[%s256 + $0x30] sm:%s248] %v281
                  %v283 = vld [vmem:[%s255 + $0x9c] sm:%s248]
                  %284 = vst [vmem:[%s256 + $0x34] sm:%s248] %v283
                  %v285 = vld [vmem:[%s255 + $0xa8] sm:%s248]
                  %286 = vst [vmem:[%s256 + $0x38] sm:%s248] %v285
                  %v287 = vld [vmem:[%s255 + $0xb4] sm:%s248]
                  %288 = vst [vmem:[%s256 + $0x3c] sm:%s248] %v287
                  %v289 = vld [vmem:[%s255 + $0xc0] sm:%s248]
                  %290 = vst [vmem:[%s256 + $0x40] sm:%s248] %v289
                  %v291 = vld [vmem:[%s255 + $0xcc] sm:%s248]
                  %292 = vst [vmem:[%s256 + $0x44] sm:%s248] %v291
                $region55: #{residual_block_forward.4} parent=42 // loop_footer
                  %s254 = sadd.s32 1, %s250
                $region56: #{residual_block_forward.4} parent=42 // loop_footer_branch
                  %249 = sbr.rel target = $region52
                $region57: #{residual_block_forward.4} parent=42 // loop_exit
                  _
              $region43: #{residual_block_forward.4} parent=27 // pred_fallthru
                _
            $region28: #{residual_block_forward.4} parent=23 // pred_fallthru
              _
            // Predicated region
            $region29: #{residual_block_forward.4} parent=23 // pred_check
              _
            $region30: #{residual_block_forward.4} parent=23 // pred_check_branch
              %190 = sbr.rel (0) target = $region32
            $region31: #{residual_block_forward.4} parent=23 // pred_region
              %s192 = ssub.s32 16, 1
              loop: start=0, step=1, limit=1
              $region33: #{residual_block_forward.4} parent=31 // loop_pre_header
                _
              $region34: #{residual_block_forward.4} parent=31 // loop_header
                %s194 = sphi 0, %s198
                %p195 = scmp.ge.s32.totalorder %s194, 1
                %s199 = sphi %s184, %s184
                %s200 = sphi %s180, %s180
              $region35: #{residual_block_forward.4} parent=31 // loop_header_branch
                %197 = sbr.rel (%p195) target = $region39
              $region36: #{residual_block_forward.4} parent=31 // loop_body
                %v201 = vld [vmem:[%s199] sm:%s192]
                %202 = vst [vmem:[%s200] sm:%s192] %v201
                %v203 = vld [vmem:[%s199 + $0xc] sm:%s192]
                %204 = vst [vmem:[%s200 + $0x4] sm:%s192] %v203
                %v205 = vld [vmem:[%s199 + $0x18] sm:%s192]
                %206 = vst [vmem:[%s200 + $0x8] sm:%s192] %v205
                %v207 = vld [vmem:[%s199 + $0x24] sm:%s192]
                %208 = vst [vmem:[%s200 + $0xc] sm:%s192] %v207
                %v209 = vld [vmem:[%s199 + $0x30] sm:%s192]
                %210 = vst [vmem:[%s200 + $0x10] sm:%s192] %v209
                %v211 = vld [vmem:[%s199 + $0x3c] sm:%s192]
                %212 = vst [vmem:[%s200 + $0x14] sm:%s192] %v211
                %v213 = vld [vmem:[%s199 + $0x48] sm:%s192]
                %214 = vst [vmem:[%s200 + $0x18] sm:%s192] %v213
                %v215 = vld [vmem:[%s199 + $0x54] sm:%s192]
                %216 = vst [vmem:[%s200 + $0x1c] sm:%s192] %v215
                %v217 = vld [vmem:[%s199 + $0x60] sm:%s192]
                %218 = vst [vmem:[%s200 + $0x20] sm:%s192] %v217
                %v219 = vld [vmem:[%s199 + $0x6c] sm:%s192]
                %220 = vst [vmem:[%s200 + $0x24] sm:%s192] %v219
                %v221 = vld [vmem:[%s199 + $0x78] sm:%s192]
                %222 = vst [vmem:[%s200 + $0x28] sm:%s192] %v221
                %v223 = vld [vmem:[%s199 + $0x84] sm:%s192]
                %224 = vst [vmem:[%s200 + $0x2c] sm:%s192] %v223
                %v225 = vld [vmem:[%s199 + $0x90] sm:%s192]
                %226 = vst [vmem:[%s200 + $0x30] sm:%s192] %v225
                %v227 = vld [vmem:[%s199 + $0x9c] sm:%s192]
                %228 = vst [vmem:[%s200 + $0x34] sm:%s192] %v227
                %v229 = vld [vmem:[%s199 + $0xa8] sm:%s192]
                %230 = vst [vmem:[%s200 + $0x38] sm:%s192] %v229
                %v231 = vld [vmem:[%s199 + $0xb4] sm:%s192]
                %232 = vst [vmem:[%s200 + $0x3c] sm:%s192] %v231
                %v233 = vld [vmem:[%s199 + $0xc0] sm:%s192]
                %234 = vst [vmem:[%s200 + $0x40] sm:%s192] %v233
                %v235 = vld [vmem:[%s199 + $0xcc] sm:%s192]
                %236 = vst [vmem:[%s200 + $0x44] sm:%s192] %v235
              $region37: #{residual_block_forward.4} parent=31 // loop_footer
                %s198 = sadd.s32 1, %s194
              $region38: #{residual_block_forward.4} parent=31 // loop_footer_branch
                %193 = sbr.rel target = $region34
              $region39: #{residual_block_forward.4} parent=31 // loop_exit
                _
            $region32: #{residual_block_forward.4} parent=23 // pred_fallthru
              _
          $region24: #{residual_block_forward.4} parent=19 // pred_fallthru
            _
          %293 = vnop
        $region20: #{residual_block_forward.4} parent=15 // pred_fallthru
          _
        // Predicated region
        $region58: #{residual_block_forward.4} parent=15 // pred_check
          %p294 = pneg %p71
        $region59: #{residual_block_forward.4} parent=15 // pred_check_branch
          %296 = sbr.rel (%p294) target = $region61
        $region60: #{residual_block_forward.4} parent=15 // pred_region
          %p297 = scmp.lt.s32.totalorder %s19, 2
          %s298 = scalar_select %p297, %s19, 2
          %s299 = smul.addr %s298, 6
          %s300 = smul.addr %s299, 2
          %s301 = scalar_lea.vmem %s1, %s300
        $region61: #{residual_block_forward.4} parent=15 // pred_fallthru
          _
      $region16: #{residual_block_forward.4} parent=5 // pred_fallthru
        _
      %p302 = scmp.le.s32.totalorder 1, %s11
      %p303 = scmp.lt.s32.totalorder %s11, 7
      %p304 = pnand %p302, %p303
      %p305 = pneg %p304
      // Predicated region
      $region62: #{residual_block_forward.4} parent=5 // pred_check
        _
      $region63: #{residual_block_forward.4} parent=5 // pred_check_branch
        %307 = sbr.rel (%p304) target = $region65
      $region64: #{residual_block_forward.4} parent=5 // pred_region
        %s308 = ssub.s32 %s11, 1
        %s309 = sand.u32 %s38, 1
        %s310 = sand.u32 %s38, 1
        %s311 = smul.addr %s310, 72
        %s312 = scalar_lea.vmem [#allocation3], %s311
        // Predicated region
        $region66: #{residual_block_forward.4} parent=64 // pred_check
          %p313 = pneg %p51
        $region67: #{residual_block_forward.4} parent=64 // pred_check_branch
          %315 = sbr.rel (%p313) target = $region69
        $region68: #{residual_block_forward.4} parent=64 // pred_region
          _
        $region69: #{residual_block_forward.4} parent=64 // pred_fallthru
          _
        %s316 = sand.u32 %s38, 1
        %s317 = sand.u32 %s38, 1
        %s318 = smul.addr %s317, 72
        %s319 = scalar_lea.vmem [#allocation3], %s318
        %p320 = pneg %p51
        %p321 = pneg %p48
        %p322 = scmp.lt.s32.totalorder %s21, 2
        %s323 = scalar_select %p322, %s21, 2
        %s324 = smul.addr %s323, 6
        %s325 = smul.addr %s324, 2
        %s326 = scalar_lea.vmem %s1, %s325
        %p327 = pneg %p77
        %p328 = pneg %p74
        %p329 = pneg %p103
        %p330 = pneg %p100
        %p331 = scmp.lt.s32.totalorder %s20, 1
        %s332 = scalar_select %p331, %s20, 1
        %s333 = smul.addr %s332, 16
        %s334 = smul.addr %s333, 4
        %s335 = scalar_lea.vmem %s2, %s334
        %p336 = pneg %p129
        %p337 = pneg %p126
        %p338 = scmp.lt.s32.totalorder %s20, 1
        %s339 = scalar_select %p338, %s20, 1
        %s340 = smul.addr %s339, 2
        %s341 = smul.addr %s340, 8
        %s342 = scalar_lea.vmem %s3, %s341
        %p343 = pneg %p155
        %p344 = pneg %p152
        %p345 = scmp.lt.s32.totalorder %s20, 1
        %s346 = scalar_select %p345, %s20, 1
        %s347 = smul.addr %s346, 2
        %s348 = smul.addr %s347, 8
        %s349 = scalar_lea.vmem %s4, %s348
        %p350 = scmp.lt.s32.totalorder %s21, 2
        %s351 = scalar_select %p350, %s21, 2
        %s352 = smul.addr %s351, 6
        %s353 = smul.addr %s352, 2
        %s354 = scalar_lea.vmem %s1, %s353
        %p355 = scmp.lt.s32.totalorder %s20, 1
        %s356 = scalar_select %p355, %s20, 1
        %s357 = smul.addr %s356, 16
        %s358 = smul.addr %s357, 4
        %s359 = scalar_lea.vmem %s2, %s358
        %p360 = scmp.lt.s32.totalorder %s20, 1
        %s361 = scalar_select %p360, %s20, 1
        %s362 = smul.addr %s361, 2
        %s363 = smul.addr %s362, 8
        %s364 = scalar_lea.vmem %s3, %s363
        %p365 = scmp.lt.s32.totalorder %s20, 1
        %s366 = scalar_select %p365, %s20, 1
        %s367 = smul.addr %s366, 2
        %s368 = smul.addr %s367, 8
        %s369 = scalar_lea.vmem %s4, %s368
        %p371 = scmp.eq.s32.totalorder %s21, 0
        // Predicated region
        $region70: #{residual_block_forward.4} parent=64 // pred_check
          %p372 = pneg %p371
        $region71: #{residual_block_forward.4} parent=64 // pred_check_branch
          %374 = sbr.rel (%p372) target = $region73
        $region72: #{residual_block_forward.4} parent=64 // pred_region
          %375 = vst [vmem:[#allocation2] sm:$0xff] 0.0
          %376 = vst [vmem:[#allocation2 + $0x8] sm:$0xff] 0.0
          %377 = vst [vmem:[#allocation2 + $0x10] sm:$0xff] 0.0
          %378 = vst [vmem:[#allocation2 + $0x18] sm:$0xff] 0.0
          %379 = vst [vmem:[#allocation2 + $0x20] sm:$0xff] 0.0
          %380 = vst [vmem:[#allocation2 + $0x28] sm:$0xff] 0.0
          %381 = vst [vmem:[#allocation2 + $0x30] sm:$0xff] 0.0
          %382 = vst [vmem:[#allocation2 + $0x38] sm:$0xff] 0.0
          %383 = vst [vmem:[#allocation2 + $0x40] sm:$0xff] 0.0
          %384 = vst [vmem:[#allocation2 + $0x48] sm:$0xff] 0.0
          %385 = vst [vmem:[#allocation2 + $0x50] sm:$0xff] 0.0
          %386 = vst [vmem:[#allocation2 + $0x58] sm:$0xff] 0.0
          %387 = vst [vmem:[#allocation2 + $0x60] sm:$0xff] 0.0
          %388 = vst [vmem:[#allocation2 + $0x68] sm:$0xff] 0.0
          %389 = vst [vmem:[#allocation2 + $0x70] sm:$0xff] 0.0
          %390 = vst [vmem:[#allocation2 + $0x78] sm:$0xff] 0.0
        $region73: #{residual_block_forward.4} parent=64 // pred_fallthru
          _
        %v391 = vld [vmem:[%s312] sm:$0xf]
        %v392 = vld [vmem:[%s312 + $0x4] sm:$0xf]
        %v393 = vld [vmem:[%s312 + $0x8] sm:$0xf]
        %v394 = vld [vmem:[%s312 + $0xc] sm:$0xf]
        %v395 = vld [vmem:[%s312 + $0x10] sm:$0xf]
        %v396 = vld [vmem:[%s312 + $0x14] sm:$0xf]
        %v397 = vld [vmem:[%s312 + $0x18] sm:$0xf]
        %v398 = vld [vmem:[%s312 + $0x1c] sm:$0xf]
        %v399 = vld [vmem:[%s312 + $0x20] sm:$0xf]
        %v400 = vld [vmem:[%s312 + $0x24] sm:$0xf]
        %v401 = vld [vmem:[%s312 + $0x28] sm:$0xf]
        %v402 = vld [vmem:[%s312 + $0x2c] sm:$0xf]
        %v403 = vld [vmem:[%s312 + $0x30] sm:$0xf]
        %v404 = vld [vmem:[%s312 + $0x34] sm:$0xf]
        %v405 = vld [vmem:[%s312 + $0x38] sm:$0xf]
        %v406 = vld [vmem:[%s312 + $0x3c] sm:$0xf]
        %v407 = vld [vmem:[%s312 + $0x40] sm:$0xf]
        %v408 = vld [vmem:[%s354] sm:$0xf]
        %v409 = vld [vmem:[%s354 + $0x4] sm:$0xf]
        %v410 = vld [vmem:[%s354 + $0x8] sm:$0xf]
        %v419 = vunpack.c.l.b16 %v400
        %v420 = vunpack.c.l.b16 %v401
        %v421 = vunpack.c.l.b16 %v402
        %v422 = vunpack.c.l.b16 %v403
        %v423 = vunpack.c.l.b16 %v404
        %v424 = vunpack.c.l.b16 %v405
        %v425 = vunpack.c.l.b16 %v406
        %v426 = vunpack.c.l.b16 %v407
        %v427 = vpack.c.b16 %v420, %v419
        %v428 = vpack.c.b16 %v422, %v421
        %v429 = vpack.c.b16 %v424, %v423
        %v430 = vpack.c.b16 %v426, %v425
        %v433 = vunpack.c.l.s4 1983009808
        %v434 = vunpack.c.0.s8 %v433
        %v435 = vlaneseq
        %v436 = vshrl.u32 %v435, 7
        %v437 = vsub.s32 %v434, %v436
        %v438 = vrot.slane %v409, %v437
        %v439 = vcombine.high %v438, %v438
        %vm440 = vcmask 31744
        %v442 = vsel %vm440, %v427, 0
        %v445 = vsel %vm440, %v428, 0
        %v448 = vsel %vm440, %v429, 0
        %v451 = vsel %vm440, %v430, 0
        %vm453 = vcmask 1041408
        %v455 = vsel %vm453, %v438, 0
        %v458 = vsel %vm453, %v439, 0
        %460 = vmatprep.subr.bf16.mxu0 0
        %461 = vmatpush1.bf16.msra.mxu0 0
        %462 = vmatprep.subr.bf16.mxu0 0
        %463 = vmatpush1.bf16.msra.mxu0 0
        %464 = vmatprep.subr.bf16.mxu0 0
        %465 = vmatpush1.bf16.msra.mxu0 0
        %466 = vmatprep.subr.bf16.mxu0 0
        %467 = vmatpush1.bf16.msra.mxu0 0
        %468 = vmatprep.subr.bf16.mxu0 0
        %469 = vmatpush1.bf16.msra.mxu0 0
        %470 = vmatprep.subr.bf16.mxu0 0
        %471 = vmatpush1.bf16.msra.mxu0 0
        %472 = vmatprep.subr.bf16.mxu0 0
        %473 = vmatpush1.bf16.msra.mxu0 0
        %474 = vmatprep.subr.bf16.mxu0 %v458
        %475 = vmatpush1.bf16.msra.mxu0 %v455
        %476 = vmatprep.subr.bf16.mxu0 0
        %477 = vmatpush2.bf16.msra.mxu0 0
        %478 = vmatprep.subr.bf16.mxu0 0
        %479 = vmatpush2.bf16.msra.mxu0 0
        %480 = vmatprep.subr.bf16.mxu0 0
        %481 = vmatpush2.bf16.msra.mxu0 0
        %482 = vmatprep.subr.bf16.mxu0 0
        %483 = vmatpush2.bf16.msra.mxu0 0
        %484 = vmatprep.subr.bf16.mxu0 0
        %485 = vmatpush2.bf16.msra.mxu0 0
        %486 = vmatprep.subr.bf16.mxu0 0
        %487 = vmatpush2.bf16.msra.mxu0 0
        %488 = vmatprep.subr.bf16.mxu0 0
        %489 = vmatpush2.bf16.msra.mxu0 0
        %490 = vmatprep.subr.bf16.mxu0 0
        %491 = vmatpush2.bf16.msra.mxu0 0
        %492 = vmatprep.mubr.bf16.mxu0 0
        %493 = vmatmul.mubr.bf16.gmra.mxu0 %v442
        %v494 = vpop.f32.mrf.mxu0
        %v495 = vadd.f32 0.0, %v494
        %v496 = vpop.f32.mrf.mxu0
        %v497 = vadd.f32 0.0, %v496
        %v498 = vpop.f32.mrf.mxu0
        %v499 = vadd.f32 0.0, %v498
        %v500 = vpop.f32.mrf.mxu0
        %v501 = vadd.f32 0.0, %v500
        %502 = vmatprep.mubr.bf16.mxu0 0
        %503 = vmatmul.mubr.bf16.gmra.mxu0 %v445
        %v504 = vpop.f32.mrf.mxu0
        %v505 = vadd.f32 0.0, %v504
        %v506 = vpop.f32.mrf.mxu0
        %v507 = vadd.f32 0.0, %v506
        %v508 = vpop.f32.mrf.mxu0
        %v509 = vadd.f32 0.0, %v508
        %v510 = vpop.f32.mrf.mxu0
        %v511 = vadd.f32 0.0, %v510
        %512 = vmatprep.mubr.bf16.mxu0 0
        %513 = vmatmul.mubr.bf16.gmra.mxu0 %v448
        %v514 = vpop.f32.mrf.mxu0
        %v515 = vadd.f32 0.0, %v514
        %v516 = vpop.f32.mrf.mxu0
        %v517 = vadd.f32 0.0, %v516
        %v518 = vpop.f32.mrf.mxu0
        %v519 = vadd.f32 0.0, %v518
        %v520 = vpop.f32.mrf.mxu0
        %v521 = vadd.f32 0.0, %v520
        %522 = vmatprep.mubr.bf16.mxu0 0
        %523 = vmatmul.mubr.bf16.gmra.mxu0 %v451
        %v524 = vpop.f32.mrf.mxu0
        %v525 = vadd.f32 0.0, %v524
        %v526 = vpop.f32.mrf.mxu0
        %v527 = vadd.f32 0.0, %v526
        %v528 = vpop.f32.mrf.mxu0
        %v529 = vadd.f32 0.0, %v528
        %v530 = vpop.f32.mrf.mxu0
        %v531 = vadd.f32 0.0, %v530
        %532 = vdwg.mxu0
        %v541 = vunpack.c.l.b16 %v391
        %v542 = vunpack.c.l.b16 %v392
        %v543 = vunpack.c.l.b16 %v393
        %v544 = vunpack.c.l.b16 %v394
        %v545 = vunpack.c.l.b16 %v395
        %v546 = vunpack.c.l.b16 %v396
        %v547 = vunpack.c.l.b16 %v397
        %v548 = vunpack.c.l.b16 %v398
        %v549 = vpack.c.b16 %v542, %v541
        %v550 = vpack.c.b16 %v544, %v543
        %v551 = vpack.c.b16 %v546, %v545
        %v552 = vpack.c.b16 %v548, %v547
        %v555 = vunpack.c.l.s4 1983009808
        %v556 = vunpack.c.0.s8 %v555
        %v557 = vlaneseq
        %v558 = vshrl.u32 %v557, 7
        %v559 = vsub.s32 %v556, %v558
        %v560 = vrot.slane %v408, %v559
        %v561 = vcombine.high %v560, %v560
        %v563 = vsel %vm440, %v549, 0
        %v566 = vsel %vm440, %v550, 0
        %v569 = vsel %vm440, %v551, 0
        %v572 = vsel %vm440, %v552, 0
        %v575 = vsel %vm453, %v560, 0
        %v578 = vsel %vm453, %v561, 0
        %580 = vmatprep.subr.bf16.mxu0 0
        %581 = vmatpush1.bf16.msra.mxu0 0
        %582 = vmatprep.subr.bf16.mxu0 0
        %583 = vmatpush1.bf16.msra.mxu0 0
        %584 = vmatprep.subr.bf16.mxu0 0
        %585 = vmatpush1.bf16.msra.mxu0 0
        %586 = vmatprep.subr.bf16.mxu0 0
        %587 = vmatpush1.bf16.msra.mxu0 0
        %588 = vmatprep.subr.bf16.mxu0 0
        %589 = vmatpush1.bf16.msra.mxu0 0
        %590 = vmatprep.subr.bf16.mxu0 0
        %591 = vmatpush1.bf16.msra.mxu0 0
        %592 = vmatprep.subr.bf16.mxu0 0
        %593 = vmatpush1.bf16.msra.mxu0 0
        %594 = vmatprep.subr.bf16.mxu0 %v578
        %595 = vmatpush1.bf16.msra.mxu0 %v575
        %596 = vmatprep.subr.bf16.mxu0 0
        %597 = vmatpush2.bf16.msra.mxu0 0
        %598 = vmatprep.subr.bf16.mxu0 0
        %599 = vmatpush2.bf16.msra.mxu0 0
        %600 = vmatprep.subr.bf16.mxu0 0
        %601 = vmatpush2.bf16.msra.mxu0 0
        %602 = vmatprep.subr.bf16.mxu0 0
        %603 = vmatpush2.bf16.msra.mxu0 0
        %604 = vmatprep.subr.bf16.mxu0 0
        %605 = vmatpush2.bf16.msra.mxu0 0
        %606 = vmatprep.subr.bf16.mxu0 0
        %607 = vmatpush2.bf16.msra.mxu0 0
        %608 = vmatprep.subr.bf16.mxu0 0
        %609 = vmatpush2.bf16.msra.mxu0 0
        %610 = vmatprep.subr.bf16.mxu0 0
        %611 = vmatpush2.bf16.msra.mxu0 0
        %612 = vmatprep.mubr.bf16.mxu0 0
        %613 = vmatmul.mubr.bf16.gmra.mxu0 %v563
        %v614 = vpop.f32.mrf.mxu0
        %v615 = vadd.f32 %v495, %v614
        %v616 = vpop.f32.mrf.mxu0
        %v617 = vadd.f32 %v497, %v616
        %v618 = vpop.f32.mrf.mxu0
        %v619 = vadd.f32 %v499, %v618
        %v620 = vpop.f32.mrf.mxu0
        %v621 = vadd.f32 %v501, %v620
        %622 = vmatprep.mubr.bf16.mxu0 0
        %623 = vmatmul.mubr.bf16.gmra.mxu0 %v566
        %v624 = vpop.f32.mrf.mxu0
        %v625 = vadd.f32 %v505, %v624
        %v626 = vpop.f32.mrf.mxu0
        %v627 = vadd.f32 %v507, %v626
        %v628 = vpop.f32.mrf.mxu0
        %v629 = vadd.f32 %v509, %v628
        %v630 = vpop.f32.mrf.mxu0
        %v631 = vadd.f32 %v511, %v630
        %632 = vmatprep.mubr.bf16.mxu0 0
        %633 = vmatmul.mubr.bf16.gmra.mxu0 %v569
        %v634 = vpop.f32.mrf.mxu0
        %v635 = vadd.f32 %v515, %v634
        %v636 = vpop.f32.mrf.mxu0
        %v637 = vadd.f32 %v517, %v636
        %v638 = vpop.f32.mrf.mxu0
        %v639 = vadd.f32 %v519, %v638
        %v640 = vpop.f32.mrf.mxu0
        %v641 = vadd.f32 %v521, %v640
        %642 = vmatprep.mubr.bf16.mxu0 0
        %643 = vmatmul.mubr.bf16.gmra.mxu0 %v572
        %v644 = vpop.f32.mrf.mxu0
        %v645 = vadd.f32 %v525, %v644
        %v646 = vpop.f32.mrf.mxu0
        %v647 = vadd.f32 %v527, %v646
        %v648 = vpop.f32.mrf.mxu0
        %v649 = vadd.f32 %v529, %v648
        %v650 = vpop.f32.mrf.mxu0
        %v651 = vadd.f32 %v531, %v650
        %652 = vdwg.mxu0
        %v654 = vunpack.c.l.b16 %v399
        %v655 = vpack.c.b16 %v543, %v542
        %v656 = vpack.c.b16 %v545, %v544
        %v657 = vpack.c.b16 %v547, %v546
        %v658 = vpack.c.b16 %v654, %v548
        %v661 = vunpack.c.l.s4 1983009808
        %v662 = vunpack.c.0.s8 %v661
        %v663 = vlaneseq
        %v664 = vshrl.u32 %v663, 7
        %v665 = vsub.s32 %v662, %v664
        %v666 = vrot.slane %v410, %v665
        %v667 = vcombine.high %v666, %v666
        %v669 = vsel %vm440, %v655, 0
        %v672 = vsel %vm440, %v656, 0
        %v675 = vsel %vm440, %v657, 0
        %v678 = vsel %vm440, %v658, 0
        %v681 = vsel %vm453, %v666, 0
        %v684 = vsel %vm453, %v667, 0
        %686 = vmatprep.subr.bf16.mxu0 0
        %687 = vmatpush1.bf16.msra.mxu0 0
        %688 = vmatprep.subr.bf16.mxu0 0
        %689 = vmatpush1.bf16.msra.mxu0 0
        %690 = vmatprep.subr.bf16.mxu0 0
        %691 = vmatpush1.bf16.msra.mxu0 0
        %692 = vmatprep.subr.bf16.mxu0 0
        %693 = vmatpush1.bf16.msra.mxu0 0
        %694 = vmatprep.subr.bf16.mxu0 0
        %695 = vmatpush1.bf16.msra.mxu0 0
        %696 = vmatprep.subr.bf16.mxu0 0
        %697 = vmatpush1.bf16.msra.mxu0 0
        %698 = vmatprep.subr.bf16.mxu0 0
        %699 = vmatpush1.bf16.msra.mxu0 0
        %700 = vmatprep.subr.bf16.mxu0 %v684
        %701 = vmatpush1.bf16.msra.mxu0 %v681
        %702 = vmatprep.subr.bf16.mxu0 0
        %703 = vmatpush2.bf16.msra.mxu0 0
        %704 = vmatprep.subr.bf16.mxu0 0
        %705 = vmatpush2.bf16.msra.mxu0 0
        %706 = vmatprep.subr.bf16.mxu0 0
        %707 = vmatpush2.bf16.msra.mxu0 0
        %708 = vmatprep.subr.bf16.mxu0 0
        %709 = vmatpush2.bf16.msra.mxu0 0
        %710 = vmatprep.subr.bf16.mxu0 0
        %711 = vmatpush2.bf16.msra.mxu0 0
        %712 = vmatprep.subr.bf16.mxu0 0
        %713 = vmatpush2.bf16.msra.mxu0 0
        %714 = vmatprep.subr.bf16.mxu0 0
        %715 = vmatpush2.bf16.msra.mxu0 0
        %716 = vmatprep.subr.bf16.mxu0 0
        %717 = vmatpush2.bf16.msra.mxu0 0
        %718 = vmatprep.mubr.bf16.mxu0 0
        %719 = vmatmul.mubr.bf16.gmra.mxu0 %v669
        %v720 = vpop.f32.mrf.mxu0
        %v721 = vadd.f32 0.0, %v720
        %v722 = vpop.f32.mrf.mxu0
        %v723 = vadd.f32 0.0, %v722
        %v724 = vpop.f32.mrf.mxu0
        %v725 = vadd.f32 0.0, %v724
        %v726 = vpop.f32.mrf.mxu0
        %v727 = vadd.f32 0.0, %v726
        %728 = vmatprep.mubr.bf16.mxu0 0
        %729 = vmatmul.mubr.bf16.gmra.mxu0 %v672
        %v730 = vpop.f32.mrf.mxu0
        %v731 = vadd.f32 0.0, %v730
        %v732 = vpop.f32.mrf.mxu0
        %v733 = vadd.f32 0.0, %v732
        %v734 = vpop.f32.mrf.mxu0
        %v735 = vadd.f32 0.0, %v734
        %v736 = vpop.f32.mrf.mxu0
        %v737 = vadd.f32 0.0, %v736
        %738 = vmatprep.mubr.bf16.mxu0 0
        %739 = vmatmul.mubr.bf16.gmra.mxu0 %v675
        %v740 = vpop.f32.mrf.mxu0
        %v741 = vadd.f32 0.0, %v740
        %v742 = vpop.f32.mrf.mxu0
        %v743 = vadd.f32 0.0, %v742
        %v744 = vpop.f32.mrf.mxu0
        %v745 = vadd.f32 0.0, %v744
        %v746 = vpop.f32.mrf.mxu0
        %v747 = vadd.f32 0.0, %v746
        %748 = vmatprep.mubr.bf16.mxu0 0
        %749 = vmatmul.mubr.bf16.gmra.mxu0 %v678
        %v750 = vpop.f32.mrf.mxu0
        %v751 = vadd.f32 0.0, %v750
        %v752 = vpop.f32.mrf.mxu0
        %v753 = vadd.f32 0.0, %v752
        %v754 = vpop.f32.mrf.mxu0
        %v755 = vadd.f32 0.0, %v754
        %v756 = vpop.f32.mrf.mxu0
        %v757 = vadd.f32 0.0, %v756
        %758 = vdwg.mxu0
        %v759 = vadd.f32 %v615, %v721
        %v760 = vadd.f32 %v617, %v723
        %v761 = vadd.f32 %v619, %v725
        %v762 = vadd.f32 %v621, %v727
        %v763 = vadd.f32 %v625, %v731
        %v764 = vadd.f32 %v627, %v733
        %v765 = vadd.f32 %v629, %v735
        %v766 = vadd.f32 %v631, %v737
        %v767 = vadd.f32 %v635, %v741
        %v768 = vadd.f32 %v637, %v743
        %v769 = vadd.f32 %v639, %v745
        %v770 = vadd.f32 %v641, %v747
        %v771 = vadd.f32 %v645, %v751
        %v772 = vadd.f32 %v647, %v753
        %v773 = vadd.f32 %v649, %v755
        %v774 = vadd.f32 %v651, %v757
        %v775 = vld [vmem:[#allocation2] sm:$0xff]
        %v776 = vld [vmem:[#allocation2 + $0x8] sm:$0xff]
        %v777 = vld [vmem:[#allocation2 + $0x10] sm:$0xff]
        %v778 = vld [vmem:[#allocation2 + $0x18] sm:$0xff]
        %v779 = vld [vmem:[#allocation2 + $0x20] sm:$0xff]
        %v780 = vld [vmem:[#allocation2 + $0x28] sm:$0xff]
        %v781 = vld [vmem:[#allocation2 + $0x30] sm:$0xff]
        %v782 = vld [vmem:[#allocation2 + $0x38] sm:$0xff]
        %v783 = vld [vmem:[#allocation2 + $0x40] sm:$0xff]
        %v784 = vld [vmem:[#allocation2 + $0x48] sm:$0xff]
        %v785 = vld [vmem:[#allocation2 + $0x50] sm:$0xff]
        %v786 = vld [vmem:[#allocation2 + $0x58] sm:$0xff]
        %v787 = vld [vmem:[#allocation2 + $0x60] sm:$0xff]
        %v788 = vld [vmem:[#allocation2 + $0x68] sm:$0xff]
        %v789 = vld [vmem:[#allocation2 + $0x70] sm:$0xff]
        %v790 = vld [vmem:[#allocation2 + $0x78] sm:$0xff]
        %v791 = vadd.f32 %v775, %v759
        %v792 = vadd.f32 %v776, %v760
        %v793 = vadd.f32 %v777, %v761
        %v794 = vadd.f32 %v778, %v762
        %v795 = vadd.f32 %v779, %v763
        %v796 = vadd.f32 %v780, %v764
        %v797 = vadd.f32 %v781, %v765
        %v798 = vadd.f32 %v782, %v766
        %v799 = vadd.f32 %v783, %v767
        %v800 = vadd.f32 %v784, %v768
        %v801 = vadd.f32 %v785, %v769
        %v802 = vadd.f32 %v786, %v770
        %v803 = vadd.f32 %v787, %v771
        %v804 = vadd.f32 %v788, %v772
        %v805 = vadd.f32 %v789, %v773
        %v806 = vadd.f32 %v790, %v774
        %807 = vst [vmem:[#allocation2] sm:$0xff] %v791
        %808 = vst [vmem:[#allocation2 + $0x8] sm:$0xff] %v792
        %809 = vst [vmem:[#allocation2 + $0x10] sm:$0xff] %v793
        %810 = vst [vmem:[#allocation2 + $0x18] sm:$0xff] %v794
        %811 = vst [vmem:[#allocation2 + $0x20] sm:$0xff] %v795
        %812 = vst [vmem:[#allocation2 + $0x28] sm:$0xff] %v796
        %813 = vst [vmem:[#allocation2 + $0x30] sm:$0xff] %v797
        %814 = vst [vmem:[#allocation2 + $0x38] sm:$0xff] %v798
        %815 = vst [vmem:[#allocation2 + $0x40] sm:$0xff] %v799
        %816 = vst [vmem:[#allocation2 + $0x48] sm:$0xff] %v800
        %817 = vst [vmem:[#allocation2 + $0x50] sm:$0xff] %v801
        %818 = vst [vmem:[#allocation2 + $0x58] sm:$0xff] %v802
        %819 = vst [vmem:[#allocation2 + $0x60] sm:$0xff] %v803
        %820 = vst [vmem:[#allocation2 + $0x68] sm:$0xff] %v804
        %821 = vst [vmem:[#allocation2 + $0x70] sm:$0xff] %v805
        %822 = vst [vmem:[#allocation2 + $0x78] sm:$0xff] %v806
        %p823 = scmp.eq.s32.totalorder %s21, 2
        // Predicated region
        $region74: #{residual_block_forward.4} parent=64 // pred_check
          %p824 = pneg %p823
        $region75: #{residual_block_forward.4} parent=64 // pred_check_branch
          %826 = sbr.rel (%p824) target = $region77
        $region76: #{residual_block_forward.4} parent=64 // pred_region
          %v827 = vld [vmem:[#allocation2] sm:$0xff]
          %v828 = vld [vmem:[#allocation2 + $0x8] sm:$0xff]
          %v829 = vld [vmem:[#allocation2 + $0x10] sm:$0xff]
          %v830 = vld [vmem:[#allocation2 + $0x18] sm:$0xff]
          %v831 = vld [vmem:[#allocation2 + $0x20] sm:$0xff]
          %v832 = vld [vmem:[#allocation2 + $0x28] sm:$0xff]
          %v833 = vld [vmem:[#allocation2 + $0x30] sm:$0xff]
          %v834 = vld [vmem:[#allocation2 + $0x38] sm:$0xff]
          %v835 = vld [vmem:[#allocation2 + $0x40] sm:$0xff]
          %v836 = vld [vmem:[#allocation2 + $0x48] sm:$0xff]
          %v837 = vld [vmem:[#allocation2 + $0x50] sm:$0xff]
          %v838 = vld [vmem:[#allocation2 + $0x58] sm:$0xff]
          %v839 = vld [vmem:[#allocation2 + $0x60] sm:$0xff]
          %v840 = vld [vmem:[#allocation2 + $0x68] sm:$0xff]
          %v841 = vld [vmem:[#allocation2 + $0x70] sm:$0xff]
          %v842 = vld [vmem:[#allocation2 + $0x78] sm:$0xff]
          %v843 = vpack.c.bf16 %v829, %v827
          %v844 = vpack.c.bf16 %v830, %v828
          %v845 = vpack.c.bf16 %v833, %v831
          %v846 = vpack.c.bf16 %v834, %v832
          %v847 = vpack.c.bf16 %v837, %v835
          %v848 = vpack.c.bf16 %v838, %v836
          %v849 = vpack.c.bf16 %v841, %v839
          %v850 = vpack.c.bf16 %v842, %v840
          %v859 = vunpack.c.l.b16 %v843
          %v860 = vunpack.c.l.b16 %v844
          %v861 = vunpack.c.h.b16 %v843
          %v862 = vunpack.c.h.b16 %v844
          %v863 = vunpack.c.l.b16 %v845
          %v864 = vunpack.c.l.b16 %v846
          %v865 = vunpack.c.h.b16 %v845
          %v866 = vunpack.c.h.b16 %v846
          %v867 = vunpack.c.l.b16 %v847
          %v868 = vunpack.c.l.b16 %v848
          %v869 = vunpack.c.h.b16 %v847
          %v870 = vunpack.c.h.b16 %v848
          %v871 = vunpack.c.l.b16 %v849
          %v872 = vunpack.c.l.b16 %v850
          %v873 = vunpack.c.h.b16 %v849
          %v874 = vunpack.c.h.b16 %v850
          %v875 = vpack.c.b16 %v860, %v859
          %v876 = vpack.c.b16 %v862, %v861
          %v877 = vpack.c.b16 %v864, %v863
          %v878 = vpack.c.b16 %v866, %v865
          %v879 = vpack.c.b16 %v868, %v867
          %v880 = vpack.c.b16 %v870, %v869
          %v881 = vpack.c.b16 %v872, %v871
          %v882 = vpack.c.b16 %v874, %v873
          %891 = vst [vmem:[%s359] sm:$0xff] %v875
          %892 = vst [vmem:[%s359 + $0x8] sm:$0xff] %v876
          %893 = vst [vmem:[%s359 + $0x10] sm:$0xff] %v877
          %894 = vst [vmem:[%s359 + $0x18] sm:$0xff] %v878
          %895 = vst [vmem:[%s359 + $0x20] sm:$0xff] %v879
          %896 = vst [vmem:[%s359 + $0x28] sm:$0xff] %v880
          %897 = vst [vmem:[%s359 + $0x30] sm:$0xff] %v881
          %898 = vst [vmem:[%s359 + $0x38] sm:$0xff] %v882
          %v899 = vadd.f32 %v827, %v829
          %v900 = vadd.f32 %v899, %v831
          %v901 = vadd.f32 %v900, %v833
          %v902 = vadd.f32 %v901, %v835
          %v903 = vadd.f32 %v902, %v837
          %v904 = vadd.f32 %v903, %v839
          %v905 = vadd.f32 %v904, %v841
          %v906 = vrot.slane %v905, 4
          %v907 = vadd.f32 %v905, %v906
          %v908 = vrot.slane %v907, 2
          %v909 = vadd.f32 %v907, %v908
          %v910 = vrot.slane %v909, 1
          %v911 = vadd.f32 %v909, %v910
          %v912 = vadd.f32 %v828, %v830
          %v913 = vadd.f32 %v912, %v832
          %v914 = vadd.f32 %v913, %v834
          %v915 = vadd.f32 %v914, %v836
          %v916 = vadd.f32 %v915, %v838
          %v917 = vadd.f32 %v916, %v840
          %v918 = vadd.f32 %v917, %v842
          %v919 = vrot.slane %v918, 4
          %v920 = vadd.f32 %v918, %v919
          %v921 = vrot.slane %v920, 2
          %v922 = vadd.f32 %v920, %v921
          %v923 = vrot.slane %v922, 1
          %v924 = vadd.f32 %v922, %v923
          %v925 = vmul.f32 %v827, %v827
          %v926 = vmul.f32 %v828, %v828
          %v927 = vmul.f32 %v829, %v829
          %v928 = vmul.f32 %v830, %v830
          %v929 = vmul.f32 %v831, %v831
          %v930 = vmul.f32 %v832, %v832
          %v931 = vmul.f32 %v833, %v833
          %v932 = vmul.f32 %v834, %v834
          %v933 = vmul.f32 %v835, %v835
          %v934 = vmul.f32 %v836, %v836
          %v935 = vmul.f32 %v837, %v837
          %v936 = vmul.f32 %v838, %v838
          %v937 = vmul.f32 %v839, %v839
          %v938 = vmul.f32 %v840, %v840
          %v939 = vmul.f32 %v841, %v841
          %v940 = vmul.f32 %v842, %v842
          %v941 = vadd.f32 %v925, %v927
          %v942 = vadd.f32 %v941, %v929
          %v943 = vadd.f32 %v942, %v931
          %v944 = vadd.f32 %v943, %v933
          %v945 = vadd.f32 %v944, %v935
          %v946 = vadd.f32 %v945, %v937
          %v947 = vadd.f32 %v946, %v939
          %v948 = vrot.slane %v947, 4
          %v949 = vadd.f32 %v947, %v948
          %v950 = vrot.slane %v949, 2
          %v951 = vadd.f32 %v949, %v950
          %v952 = vrot.slane %v951, 1
          %v953 = vadd.f32 %v951, %v952
          %v954 = vadd.f32 %v926, %v928
          %v955 = vadd.f32 %v954, %v930
          %v956 = vadd.f32 %v955, %v932
          %v957 = vadd.f32 %v956, %v934
          %v958 = vadd.f32 %v957, %v936
          %v959 = vadd.f32 %v958, %v938
          %v960 = vadd.f32 %v959, %v940
          %v961 = vrot.slane %v960, 4
          %v962 = vadd.f32 %v960, %v961
          %v963 = vrot.slane %v962, 2
          %v964 = vadd.f32 %v962, %v963
          %v965 = vrot.slane %v964, 1
          %v966 = vadd.f32 %v964, %v965
          %967 = vst [vmem:[%s364] sm:$0xff] %v911
          %968 = vst [vmem:[%s364 + $0x8] sm:$0xff] %v924
          %969 = vst [vmem:[%s369] sm:$0xff] %v953
          %970 = vst [vmem:[%s369 + $0x8] sm:$0xff] %v966
        $region77: #{residual_block_forward.4} parent=64 // pred_fallthru
          _
        %p971 = scmp.lt.s32.totalorder %s20, 1
        %s972 = scalar_select %p971, %s20, 1
        %s973 = smul.addr %s972, 16
        %s974 = smul.addr %s973, 4
        %s975 = scalar_lea.vmem %s2, %s974
        %p976 = scmp.lt.s32.totalorder %s20, 1
        %s977 = scalar_select %p976, %s20, 1
        %s978 = smul.addr %s977, 2
        %s979 = smul.addr %s978, 8
        %s980 = scalar_lea.vmem %s3, %s979
        %p981 = scmp.lt.s32.totalorder %s20, 1
        %s982 = scalar_select %p981, %s20, 1
        %s983 = smul.addr %s982, 2
        %s984 = smul.addr %s983, 8
        %s985 = scalar_lea.vmem %s4, %s984
        // Predicated region
        $region78: #{residual_block_forward.4} parent=64 // pred_check
          %p986 = pneg %p100
        $region79: #{residual_block_forward.4} parent=64 // pred_check_branch
          %988 = sbr.rel (%p986) target = $region81
        $region80: #{residual_block_forward.4} parent=64 // pred_region
          _
        $region81: #{residual_block_forward.4} parent=64 // pred_fallthru
          _
        // Predicated region
        $region82: #{residual_block_forward.4} parent=64 // pred_check
          %p989 = pneg %p126
        $region83: #{residual_block_forward.4} parent=64 // pred_check_branch
          %991 = sbr.rel (%p989) target = $region85
        $region84: #{residual_block_forward.4} parent=64 // pred_region
          _
        $region85: #{residual_block_forward.4} parent=64 // pred_fallthru
          _
        // Predicated region
        $region86: #{residual_block_forward.4} parent=64 // pred_check
          %p992 = pneg %p152
        $region87: #{residual_block_forward.4} parent=64 // pred_check_branch
          %994 = sbr.rel (%p992) target = $region89
        $region88: #{residual_block_forward.4} parent=64 // pred_region
          _
        $region89: #{residual_block_forward.4} parent=64 // pred_fallthru
          _
      $region65: #{residual_block_forward.4} parent=5 // pred_fallthru
        _
      %p995 = scmp.le.s32.totalorder 2, %s11
      // Predicated region
      $region90: #{residual_block_forward.4} parent=5 // pred_check
        %p996 = pneg %p995
      $region91: #{residual_block_forward.4} parent=5 // pred_check_branch
        %998 = sbr.rel (%p996) target = $region93
      $region92: #{residual_block_forward.4} parent=5 // pred_region
        %s999 = ssub.s32 %s11, 2
        // Predicated region
        $region94: #{residual_block_forward.4} parent=92 // pred_check
          %p1000 = pneg %p106
        $region95: #{residual_block_forward.4} parent=92 // pred_check_branch
          %1002 = sbr.rel (%p1000) target = $region97
        $region96: #{residual_block_forward.4} parent=92 // pred_region
          %p1003 = scmp.lt.s32.totalorder %s22, 1
          %s1004 = scalar_select %p1003, %s22, 1
          %s1005 = smul.addr %s1004, 16
          %s1006 = smul.addr %s1005, 4
          %s1007 = scalar_lea.vmem %s2, %s1006
        $region97: #{residual_block_forward.4} parent=92 // pred_fallthru
          _
        // Predicated region
        $region98: #{residual_block_forward.4} parent=92 // pred_check
          %p1008 = pneg %p132
        $region99: #{residual_block_forward.4} parent=92 // pred_check_branch
          %1010 = sbr.rel (%p1008) target = $region101
        $region100: #{residual_block_forward.4} parent=92 // pred_region
          %p1011 = scmp.lt.s32.totalorder %s22, 1
          %s1012 = scalar_select %p1011, %s22, 1
          %s1013 = smul.addr %s1012, 2
          %s1014 = smul.addr %s1013, 8
          %s1015 = scalar_lea.vmem %s3, %s1014
        $region101: #{residual_block_forward.4} parent=92 // pred_fallthru
          _
        // Predicated region
        $region102: #{residual_block_forward.4} parent=92 // pred_check
          %p1016 = pneg %p158
        $region103: #{residual_block_forward.4} parent=92 // pred_check_branch
          %1018 = sbr.rel (%p1016) target = $region105
        $region104: #{residual_block_forward.4} parent=92 // pred_region
          %p1019 = scmp.lt.s32.totalorder %s22, 1
          %s1020 = scalar_select %p1019, %s22, 1
          %s1021 = smul.addr %s1020, 2
          %s1022 = smul.addr %s1021, 8
          %s1023 = scalar_lea.vmem %s4, %s1022
        $region105: #{residual_block_forward.4} parent=92 // pred_fallthru
          _
      $region93: #{residual_block_forward.4} parent=5 // pred_fallthru
        _
    $region6: #{residual_block_forward.4} parent=1 // loop_footer
      %s15 = sadd.s32 1, %s11
    $region7: #{residual_block_forward.4} parent=1 // loop_footer_branch
      %10 = sbr.rel target = $region3
    $region8: #{residual_block_forward.4} parent=1 // loop_exit
      _

// kernel: residual_block_forward.7
$region0: #{residual_block_forward.7}
  #allocation0 [shape = 'u32[]', space=smem, size = 0x4, offset = 0x4, fixed_abs, tag = 'smem constant byte address 0x4 - core index']
  #allocation1 [shape = 'u32[144,128]{1,0:T(1,128)}', space=vmem, size = 0x12000, scoped, tag = 'internal scratch']
  %s0 = inlined_call_operand.vmem [shape: bf16[128,128], index: 0, kind: input, shape index: {}]
  %s1 = inlined_call_operand.vmem [shape: f32[1,128], index: 1, kind: input, shape index: {}]
  %s2 = inlined_call_operand.vmem [shape: f32[1,128], index: 2, kind: input, shape index: {}]
  %s3 = inlined_call_operand.vmem [shape: bf16[128,256], index: 3, kind: input, shape index: {}]
  %s4 = inlined_call_operand.vmem [shape: f32[1,128], index: 4, kind: input, shape index: {}]
  %s5 = inlined_call_operand.vmem [shape: f32[1,128], index: 5, kind: input, shape index: {}]
  %s6 = inlined_call_operand.vmem [shape: f32[128,128], index: 6, kind: output, shape index: {}]
  %s7 = sld [smem:[#allocation0]]
  $region75: #{residual_block_forward.7} parent=0
    _
  %s9 = ssub.s32 1, %s7
  %s10 = scalar_select 0, %s9, %s7
  $region1: #{residual_block_forward.7} parent=0
    #allocation2 [shape = 'u8[32768]{0}', space=vmem, size = 0x8000, scoped, tag = 'input window, operand 3, single buffered']
    // Predicated region
    $region2: #{residual_block_forward.7} parent=1 // pred_check
      _
    $region3: #{residual_block_forward.7} parent=1 // pred_check_branch
      %12 = sbr.rel (0) target = $region5
    $region4: #{residual_block_forward.7} parent=1 // pred_region
      _
    $region5: #{residual_block_forward.7} parent=1 // pred_fallthru
      _
    // Predicated region
    $region6: #{residual_block_forward.7} parent=1 // pred_check
      _
    $region7: #{residual_block_forward.7} parent=1 // pred_check_branch
      %14 = sbr.rel (0) target = $region9
    $region8: #{residual_block_forward.7} parent=1 // pred_region
      _
    $region9: #{residual_block_forward.7} parent=1 // pred_fallthru
      _
    // Predicated region
    $region10: #{residual_block_forward.7} parent=1 // pred_check
      _
    $region11: #{residual_block_forward.7} parent=1 // pred_check_branch
      %16 = sbr.rel (0) target = $region13
    $region12: #{residual_block_forward.7} parent=1 // pred_region
      _
    $region13: #{residual_block_forward.7} parent=1 // pred_fallthru
      _
    // Predicated region
    $region14: #{residual_block_forward.7} parent=1 // pred_check
      _
    $region15: #{residual_block_forward.7} parent=1 // pred_check_branch
      %18 = sbr.rel (0) target = $region17
    $region16: #{residual_block_forward.7} parent=1 // pred_region
      %s19 = scalar_lea.vmem %s3, 4
      // Predicated region
      $region18: #{residual_block_forward.7} parent=16 // pred_check
        _
      $region19: #{residual_block_forward.7} parent=16 // pred_check_branch
        %21 = sbr.rel (0) target = $region21
      $region20: #{residual_block_forward.7} parent=16 // pred_region
        // Predicated region
        $region22: #{residual_block_forward.7} parent=20 // pred_check
          _
        $region23: #{residual_block_forward.7} parent=20 // pred_check_branch
          %23 = sbr.rel target = $region25
        $region24: #{residual_block_forward.7} parent=20 // pred_region
          // Predicated region
          $region37: #{residual_block_forward.7} parent=24 // pred_check
            _
          $region38: #{residual_block_forward.7} parent=24 // pred_check_branch
            %69 = sbr.rel (0) target = $region40
          $region39: #{residual_block_forward.7} parent=24 // pred_region
            loop: start=0, step=1, limit=1
            $region41: #{residual_block_forward.7} parent=39 // loop_pre_header
              _
            $region42: #{residual_block_forward.7} parent=39 // loop_header
              %s71 = sphi 0, %s75
              %p72 = scmp.ge.s32.totalorder %s71, 1
              %s76 = sphi %s19, %s19
              %s77 = sphi [#allocation2], [#allocation2]
            $region43: #{residual_block_forward.7} parent=39 // loop_header_branch
              %74 = sbr.rel (%p72) target = $region47
            $region44: #{residual_block_forward.7} parent=39 // loop_body
              _
            $region45: #{residual_block_forward.7} parent=39 // loop_footer
              %s75 = sadd.s32 1, %s71
            $region46: #{residual_block_forward.7} parent=39 // loop_footer_branch
              %70 = sbr.rel target = $region42
            $region47: #{residual_block_forward.7} parent=39 // loop_exit
              _
            %s79 = ssub.s32 16, 1
            loop: start=0, step=1, limit=1
            $region48: #{residual_block_forward.7} parent=39 // loop_pre_header
              _
            $region49: #{residual_block_forward.7} parent=39 // loop_header
              %s81 = sphi 0, %s85
              %p82 = scmp.ge.s32.totalorder %s81, 1
              %s86 = sphi %s19, %s19
              %s87 = sphi [#allocation2], [#allocation2]
            $region50: #{residual_block_forward.7} parent=39 // loop_header_branch
              %84 = sbr.rel (%p82) target = $region54
            $region51: #{residual_block_forward.7} parent=39 // loop_body
              %v88 = vld [vmem:[%s86] sm:%s79]
              %89 = vst [vmem:[%s87] sm:%s79] %v88
              %v90 = vld [vmem:[%s86 + $0x8] sm:%s79]
              %91 = vst [vmem:[%s87 + $0x4] sm:%s79] %v90
              %v92 = vld [vmem:[%s86 + $0x10] sm:%s79]
              %93 = vst [vmem:[%s87 + $0x8] sm:%s79] %v92
              %v94 = vld [vmem:[%s86 + $0x18] sm:%s79]
              %95 = vst [vmem:[%s87 + $0xc] sm:%s79] %v94
              %v96 = vld [vmem:[%s86 + $0x20] sm:%s79]
              %97 = vst [vmem:[%s87 + $0x10] sm:%s79] %v96
              %v98 = vld [vmem:[%s86 + $0x28] sm:%s79]
              %99 = vst [vmem:[%s87 + $0x14] sm:%s79] %v98
              %v100 = vld [vmem:[%s86 + $0x30] sm:%s79]
              %101 = vst [vmem:[%s87 + $0x18] sm:%s79] %v100
              %v102 = vld [vmem:[%s86 + $0x38] sm:%s79]
              %103 = vst [vmem:[%s87 + $0x1c] sm:%s79] %v102
              %v104 = vld [vmem:[%s86 + $0x40] sm:%s79]
              %105 = vst [vmem:[%s87 + $0x20] sm:%s79] %v104
              %v106 = vld [vmem:[%s86 + $0x48] sm:%s79]
              %107 = vst [vmem:[%s87 + $0x24] sm:%s79] %v106
              %v108 = vld [vmem:[%s86 + $0x50] sm:%s79]
              %109 = vst [vmem:[%s87 + $0x28] sm:%s79] %v108
              %v110 = vld [vmem:[%s86 + $0x58] sm:%s79]
              %111 = vst [vmem:[%s87 + $0x2c] sm:%s79] %v110
              %v112 = vld [vmem:[%s86 + $0x60] sm:%s79]
              %113 = vst [vmem:[%s87 + $0x30] sm:%s79] %v112
              %v114 = vld [vmem:[%s86 + $0x68] sm:%s79]
              %115 = vst [vmem:[%s87 + $0x34] sm:%s79] %v114
              %v116 = vld [vmem:[%s86 + $0x70] sm:%s79]
              %117 = vst [vmem:[%s87 + $0x38] sm:%s79] %v116
              %v118 = vld [vmem:[%s86 + $0x78] sm:%s79]
              %119 = vst [vmem:[%s87 + $0x3c] sm:%s79] %v118
            $region52: #{residual_block_forward.7} parent=39 // loop_footer
              %s85 = sadd.s32 1, %s81
            $region53: #{residual_block_forward.7} parent=39 // loop_footer_branch
              %80 = sbr.rel target = $region49
            $region54: #{residual_block_forward.7} parent=39 // loop_exit
              _
          $region40: #{residual_block_forward.7} parent=24 // pred_fallthru
            _
        $region25: #{residual_block_forward.7} parent=20 // pred_fallthru
          _
        // Predicated region
        $region26: #{residual_block_forward.7} parent=20 // pred_check
          _
        $region27: #{residual_block_forward.7} parent=20 // pred_check_branch
          %25 = sbr.rel (0) target = $region29
        $region28: #{residual_block_forward.7} parent=20 // pred_region
          %s27 = ssub.s32 16, 1
          loop: start=0, step=1, limit=1
          $region30: #{residual_block_forward.7} parent=28 // loop_pre_header
            _
          $region31: #{residual_block_forward.7} parent=28 // loop_header
            %s29 = sphi 0, %s33
            %p30 = scmp.ge.s32.totalorder %s29, 1
            %s34 = sphi %s19, %s19
            %s35 = sphi [#allocation2], [#allocation2]
          $region32: #{residual_block_forward.7} parent=28 // loop_header_branch
            %32 = sbr.rel (%p30) target = $region36
          $region33: #{residual_block_forward.7} parent=28 // loop_body
            %v36 = vld [vmem:[%s34] sm:%s27]
            %37 = vst [vmem:[%s35] sm:%s27] %v36
            %v38 = vld [vmem:[%s34 + $0x8] sm:%s27]
            %39 = vst [vmem:[%s35 + $0x4] sm:%s27] %v38
            %v40 = vld [vmem:[%s34 + $0x10] sm:%s27]
            %41 = vst [vmem:[%s35 + $0x8] sm:%s27] %v40
            %v42 = vld [vmem:[%s34 + $0x18] sm:%s27]
            %43 = vst [vmem:[%s35 + $0xc] sm:%s27] %v42
            %v44 = vld [vmem:[%s34 + $0x20] sm:%s27]
            %45 = vst [vmem:[%s35 + $0x10] sm:%s27] %v44
            %v46 = vld [vmem:[%s34 + $0x28] sm:%s27]
            %47 = vst [vmem:[%s35 + $0x14] sm:%s27] %v46
            %v48 = vld [vmem:[%s34 + $0x30] sm:%s27]
            %49 = vst [vmem:[%s35 + $0x18] sm:%s27] %v48
            %v50 = vld [vmem:[%s34 + $0x38] sm:%s27]
            %51 = vst [vmem:[%s35 + $0x1c] sm:%s27] %v50
            %v52 = vld [vmem:[%s34 + $0x40] sm:%s27]
            %53 = vst [vmem:[%s35 + $0x20] sm:%s27] %v52
            %v54 = vld [vmem:[%s34 + $0x48] sm:%s27]
            %55 = vst [vmem:[%s35 + $0x24] sm:%s27] %v54
            %v56 = vld [vmem:[%s34 + $0x50] sm:%s27]
            %57 = vst [vmem:[%s35 + $0x28] sm:%s27] %v56
            %v58 = vld [vmem:[%s34 + $0x58] sm:%s27]
            %59 = vst [vmem:[%s35 + $0x2c] sm:%s27] %v58
            %v60 = vld [vmem:[%s34 + $0x60] sm:%s27]
            %61 = vst [vmem:[%s35 + $0x30] sm:%s27] %v60
            %v62 = vld [vmem:[%s34 + $0x68] sm:%s27]
            %63 = vst [vmem:[%s35 + $0x34] sm:%s27] %v62
            %v64 = vld [vmem:[%s34 + $0x70] sm:%s27]
            %65 = vst [vmem:[%s35 + $0x38] sm:%s27] %v64
            %v66 = vld [vmem:[%s34 + $0x78] sm:%s27]
            %67 = vst [vmem:[%s35 + $0x3c] sm:%s27] %v66
          $region34: #{residual_block_forward.7} parent=28 // loop_footer
            %s33 = sadd.s32 1, %s29
          $region35: #{residual_block_forward.7} parent=28 // loop_footer_branch
            %28 = sbr.rel target = $region31
          $region36: #{residual_block_forward.7} parent=28 // loop_exit
            _
        $region29: #{residual_block_forward.7} parent=20 // pred_fallthru
          _
      $region21: #{residual_block_forward.7} parent=16 // pred_fallthru
        _
      %120 = vnop
    $region17: #{residual_block_forward.7} parent=1 // pred_fallthru
      _
    // Predicated region
    $region55: #{residual_block_forward.7} parent=1 // pred_check
      _
    $region56: #{residual_block_forward.7} parent=1 // pred_check_branch
      %122 = sbr.rel (0) target = $region58
    $region57: #{residual_block_forward.7} parent=1 // pred_region
      _
    $region58: #{residual_block_forward.7} parent=1 // pred_fallthru
      _
    // Predicated region
    $region59: #{residual_block_forward.7} parent=1 // pred_check
      _
    $region60: #{residual_block_forward.7} parent=1 // pred_check_branch
      %124 = sbr.rel (0) target = $region62
    $region61: #{residual_block_forward.7} parent=1 // pred_region
      _
    $region62: #{residual_block_forward.7} parent=1 // pred_fallthru
      _
    // Predicated region
    $region63: #{residual_block_forward.7} parent=1 // pred_check
      _
    $region64: #{residual_block_forward.7} parent=1 // pred_check_branch
      %126 = sbr.rel (0) target = $region66
    $region65: #{residual_block_forward.7} parent=1 // pred_region
      _
    $region66: #{residual_block_forward.7} parent=1 // pred_fallthru
      _
    %v127 = vld [vmem:[%s0] sm:$0xf]
    %v128 = vld [vmem:[%s0 + $0x4] sm:$0xf]
    %v129 = vld [vmem:[%s0 + $0x8] sm:$0xf]
    %v130 = vld [vmem:[%s0 + $0xc] sm:$0xf]
    %v131 = vld [vmem:[%s0 + $0x10] sm:$0xf]
    %v132 = vld [vmem:[%s0 + $0x14] sm:$0xf]
    %v133 = vld [vmem:[%s0 + $0x18] sm:$0xf]
    %v134 = vld [vmem:[%s0 + $0x1c] sm:$0xf]
    %v135 = vld [vmem:[%s0 + $0x20] sm:$0xf]
    %v136 = vld [vmem:[%s0 + $0x24] sm:$0xf]
    %v137 = vld [vmem:[%s0 + $0x28] sm:$0xf]
    %v138 = vld [vmem:[%s0 + $0x2c] sm:$0xf]
    %v139 = vld [vmem:[%s0 + $0x30] sm:$0xf]
    %v140 = vld [vmem:[%s0 + $0x34] sm:$0xf]
    %v141 = vld [vmem:[%s0 + $0x38] sm:$0xf]
    %v142 = vld [vmem:[%s0 + $0x3c] sm:$0xf]
    %v143 = vunpack.c.l.bf16 %v127
    %v144 = vunpack.c.l.bf16 %v128
    %v145 = vunpack.c.l.bf16 %v129
    %v146 = vunpack.c.l.bf16 %v130
    %v147 = vunpack.c.l.bf16 %v131
    %v148 = vunpack.c.l.bf16 %v132
    %v149 = vunpack.c.l.bf16 %v133
    %v150 = vunpack.c.l.bf16 %v134
    %v151 = vunpack.c.l.bf16 %v135
    %v152 = vunpack.c.l.bf16 %v136
    %v153 = vunpack.c.l.bf16 %v137
    %v154 = vunpack.c.l.bf16 %v138
    %v155 = vunpack.c.l.bf16 %v139
    %v156 = vunpack.c.l.bf16 %v140
    %v157 = vunpack.c.l.bf16 %v141
    %v158 = vunpack.c.l.bf16 %v142
    %v159 = vld [vmem:[%s1] sm:$0x1]
    %v161 = vlaneseq
    %v162 = vshrl.u32 %v161, 7
    %v163 = vsub.s32 0, %v162
    %v164 = vrot.slane %v159, %v163
    %v166 = vmul.f32 %v143, %v164
    %v167 = vmul.f32 %v144, %v164
    %v168 = vmul.f32 %v145, %v164
    %v169 = vmul.f32 %v146, %v164
    %v170 = vmul.f32 %v147, %v164
    %v171 = vmul.f32 %v148, %v164
    %v172 = vmul.f32 %v149, %v164
    %v173 = vmul.f32 %v150, %v164
    %v174 = vmul.f32 %v151, %v164
    %v175 = vmul.f32 %v152, %v164
    %v176 = vmul.f32 %v153, %v164
    %v177 = vmul.f32 %v154, %v164
    %v178 = vmul.f32 %v155, %v164
    %v179 = vmul.f32 %v156, %v164
    %v180 = vmul.f32 %v157, %v164
    %v181 = vmul.f32 %v158, %v164
    %v182 = vld [vmem:[%s2] sm:$0x1]
    %v184 = vlaneseq
    %v185 = vshrl.u32 %v184, 7
    %v186 = vsub.s32 0, %v185
    %v187 = vrot.slane %v182, %v186
    %v189 = vadd.f32 %v166, %v187
    %v190 = vadd.f32 %v167, %v187
    %v191 = vadd.f32 %v168, %v187
    %v192 = vadd.f32 %v169, %v187
    %v193 = vadd.f32 %v170, %v187
    %v194 = vadd.f32 %v171, %v187
    %v195 = vadd.f32 %v172, %v187
    %v196 = vadd.f32 %v173, %v187
    %v197 = vadd.f32 %v174, %v187
    %v198 = vadd.f32 %v175, %v187
    %v199 = vadd.f32 %v176, %v187
    %v200 = vadd.f32 %v177, %v187
    %v201 = vadd.f32 %v178, %v187
    %v202 = vadd.f32 %v179, %v187
    %v203 = vadd.f32 %v180, %v187
    %v204 = vadd.f32 %v181, %v187
    %v205 = vld [vmem:[#allocation2] sm:$0xf]
    %v206 = vld [vmem:[#allocation2 + $0x4] sm:$0xf]
    %v207 = vld [vmem:[#allocation2 + $0x8] sm:$0xf]
    %v208 = vld [vmem:[#allocation2 + $0xc] sm:$0xf]
    %v209 = vld [vmem:[#allocation2 + $0x10] sm:$0xf]
    %v210 = vld [vmem:[#allocation2 + $0x14] sm:$0xf]
    %v211 = vld [vmem:[#allocation2 + $0x18] sm:$0xf]
    %v212 = vld [vmem:[#allocation2 + $0x1c] sm:$0xf]
    %v213 = vld [vmem:[#allocation2 + $0x20] sm:$0xf]
    %v214 = vld [vmem:[#allocation2 + $0x24] sm:$0xf]
    %v215 = vld [vmem:[#allocation2 + $0x28] sm:$0xf]
    %v216 = vld [vmem:[#allocation2 + $0x2c] sm:$0xf]
    %v217 = vld [vmem:[#allocation2 + $0x30] sm:$0xf]
    %v218 = vld [vmem:[#allocation2 + $0x34] sm:$0xf]
    %v219 = vld [vmem:[#allocation2 + $0x38] sm:$0xf]
    %v220 = vld [vmem:[#allocation2 + $0x3c] sm:$0xf]
    %v221 = vunpack.c.l.bf16 %v205
    %v222 = vunpack.c.l.bf16 %v206
    %v223 = vunpack.c.l.bf16 %v207
    %v224 = vunpack.c.l.bf16 %v208
    %v225 = vunpack.c.l.bf16 %v209
    %v226 = vunpack.c.l.bf16 %v210
    %v227 = vunpack.c.l.bf16 %v211
    %v228 = vunpack.c.l.bf16 %v212
    %v229 = vunpack.c.l.bf16 %v213
    %v230 = vunpack.c.l.bf16 %v214
    %v231 = vunpack.c.l.bf16 %v215
    %v232 = vunpack.c.l.bf16 %v216
    %v233 = vunpack.c.l.bf16 %v217
    %v234 = vunpack.c.l.bf16 %v218
    %v235 = vunpack.c.l.bf16 %v219
    %v236 = vunpack.c.l.bf16 %v220
    %v237 = vld [vmem:[%s4] sm:$0x1]
    %v239 = vlaneseq
    %v240 = vshrl.u32 %v239, 7
    %v241 = vsub.s32 0, %v240
    %v242 = vrot.slane %v237, %v241
    %v244 = vmul.f32 %v221, %v242
    %v245 = vmul.f32 %v222, %v242
    %v246 = vmul.f32 %v223, %v242
    %v247 = vmul.f32 %v224, %v242
    %v248 = vmul.f32 %v225, %v242
    %v249 = vmul.f32 %v226, %v242
    %v250 = vmul.f32 %v227, %v242
    %v251 = vmul.f32 %v228, %v242
    %v252 = vmul.f32 %v229, %v242
    %v253 = vmul.f32 %v230, %v242
    %v254 = vmul.f32 %v231, %v242
    %v255 = vmul.f32 %v232, %v242
    %v256 = vmul.f32 %v233, %v242
    %v257 = vmul.f32 %v234, %v242
    %v258 = vmul.f32 %v235, %v242
    %v259 = vmul.f32 %v236, %v242
    %v260 = vld [vmem:[%s5] sm:$0x1]
    %v262 = vlaneseq
    %v263 = vshrl.u32 %v262, 7
    %v264 = vsub.s32 0, %v263
    %v265 = vrot.slane %v260, %v264
    %v267 = vadd.f32 %v244, %v265
    %v268 = vadd.f32 %v245, %v265
    %v269 = vadd.f32 %v246, %v265
    %v270 = vadd.f32 %v247, %v265
    %v271 = vadd.f32 %v248, %v265
    %v272 = vadd.f32 %v249, %v265
    %v273 = vadd.f32 %v250, %v265
    %v274 = vadd.f32 %v251, %v265
    %v275 = vadd.f32 %v252, %v265
    %v276 = vadd.f32 %v253, %v265
    %v277 = vadd.f32 %v254, %v265
    %v278 = vadd.f32 %v255, %v265
    %v279 = vadd.f32 %v256, %v265
    %v280 = vadd.f32 %v257, %v265
    %v281 = vadd.f32 %v258, %v265
    %v282 = vadd.f32 %v259, %v265
    %v283 = vadd.f32 %v189, %v267
    %v284 = vadd.f32 %v190, %v268
    %v285 = vadd.f32 %v191, %v269
    %v286 = vadd.f32 %v192, %v270
    %v287 = vadd.f32 %v193, %v271
    %v288 = vadd.f32 %v194, %v272
    %v289 = vadd.f32 %v195, %v273
    %v290 = vadd.f32 %v196, %v274
    %v291 = vadd.f32 %v197, %v275
    %v292 = vadd.f32 %v198, %v276
    %v293 = vadd.f32 %v199, %v277
    %v294 = vadd.f32 %v200, %v278
    %v295 = vadd.f32 %v201, %v279
    %v296 = vadd.f32 %v202, %v280
    %v297 = vadd.f32 %v203, %v281
    %v298 = vadd.f32 %v204, %v282
    %v299 = vmax.f32 %v283, 0.0
    %v300 = vmax.f32 %v284, 0.0
    %v301 = vmax.f32 %v285, 0.0
    %v302 = vmax.f32 %v286, 0.0
    %v303 = vmax.f32 %v287, 0.0
    %v304 = vmax.f32 %v288, 0.0
    %v305 = vmax.f32 %v289, 0.0
    %v306 = vmax.f32 %v290, 0.0
    %v307 = vmax.f32 %v291, 0.0
    %v308 = vmax.f32 %v292, 0.0
    %v309 = vmax.f32 %v293, 0.0
    %v310 = vmax.f32 %v294, 0.0
    %v311 = vmax.f32 %v295, 0.0
    %v312 = vmax.f32 %v296, 0.0
    %v313 = vmax.f32 %v297, 0.0
    %v314 = vmax.f32 %v298, 0.0
    %315 = vst [vmem:[%s6] sm:$0xff] %v299
    %316 = vst [vmem:[%s6 + $0x8] sm:$0xff] %v300
    %317 = vst [vmem:[%s6 + $0x10] sm:$0xff] %v301
    %318 = vst [vmem:[%s6 + $0x18] sm:$0xff] %v302
    %319 = vst [vmem:[%s6 + $0x20] sm:$0xff] %v303
    %320 = vst [vmem:[%s6 + $0x28] sm:$0xff] %v304
    %321 = vst [vmem:[%s6 + $0x30] sm:$0xff] %v305
    %322 = vst [vmem:[%s6 + $0x38] sm:$0xff] %v306
    %323 = vst [vmem:[%s6 + $0x40] sm:$0xff] %v307
    %324 = vst [vmem:[%s6 + $0x48] sm:$0xff] %v308
    %325 = vst [vmem:[%s6 + $0x50] sm:$0xff] %v309
    %326 = vst [vmem:[%s6 + $0x58] sm:$0xff] %v310
    %327 = vst [vmem:[%s6 + $0x60] sm:$0xff] %v311
    %328 = vst [vmem:[%s6 + $0x68] sm:$0xff] %v312
    %329 = vst [vmem:[%s6 + $0x70] sm:$0xff] %v313
    %330 = vst [vmem:[%s6 + $0x78] sm:$0xff] %v314
    // Predicated region
    $region67: #{residual_block_forward.7} parent=1 // pred_check
      _
    $region68: #{residual_block_forward.7} parent=1 // pred_check_branch
      %332 = sbr.rel (0) target = $region70
    $region69: #{residual_block_forward.7} parent=1 // pred_region
      _
    $region70: #{residual_block_forward.7} parent=1 // pred_fallthru
      _
    // Predicated region
    $region71: #{residual_block_forward.7} parent=1 // pred_check
      _
    $region72: #{residual_block_forward.7} parent=1 // pred_check_branch
      %334 = sbr.rel (0) target = $region74
    $region73: #{residual_block_forward.7} parent=1 // pred_region
      _
    $region74: #{residual_block_forward.7} parent=1 // pred_fallthru
      _

// kernel: residual_block_forward.6
$region0: #{residual_block_forward.6}
  #allocation0 [shape = 'u32[]', space=smem, size = 0x4, offset = 0x4, fixed_abs, tag = 'smem constant byte address 0x4 - core index']
  #allocation1 [shape = 'u32[144,128]{1,0:T(1,128)}', space=vmem, size = 0x12000, scoped, tag = 'internal scratch']
  #allocation2 [shape = 'f32[64,128]{1,0:T(8,128)}', space=vmem, size = 0x8000, scoped, tag = 'scratch operand']
  %s0 = inlined_call_operand.vmem [shape: bf16[2,10,3,8,128], index: 0, kind: input, shape index: {}]
  %s1 = inlined_call_operand.vmem [shape: bf16[3,3,128,128], index: 1, kind: input, shape index: {}]
  %s2 = inlined_call_operand.vmem [shape: bf16[2,64,128], index: 2, kind: output, shape index: {0}]
  %s3 = inlined_call_operand.vmem [shape: f32[16,128], index: 3, kind: output, shape index: {1}]
  %s4 = inlined_call_operand.vmem [shape: f32[16,128], index: 4, kind: output, shape index: {2}]
  %5 = xla_tuple %s2, %s3, %s4
  %s6 = sld [smem:[#allocation0]]
  $region106: #{residual_block_forward.6} parent=0
    _
  %s8 = ssub.s32 1, %s6
  %s9 = scalar_select 0, %s8, %s6
  $region1: #{residual_block_forward.6} parent=0
    #allocation3 [shape = 'u8[40960]{0}', space=vmem, size = 0xa000, scoped, tag = 'input window, operand 0']
    loop: start=0, step=1, limit=8
    $region2: #{residual_block_forward.6} parent=1 // loop_pre_header
      _
    $region3: #{residual_block_forward.6} parent=1 // loop_header
      %s11 = sphi 0, %s15
      %p12 = scmp.ge.s32.totalorder %s11, 8
      %s18 = sphi 0, %s30
      %s19 = sphi 0, %s26
      %s20 = sphi 0, %s18
      %s21 = sphi 0, %s19
      %s22 = sphi 0, %s20
      %s23 = sphi 0, %s21
      %s35 = sphi 0, %s37
      %s38 = sphi 0, %s35
      %s39 = sphi 0, %s38
      %s55 = sphi 0, %s39
      %s61 = sphi 0, %s63
      %s64 = sphi 0, %s61
      %s65 = sphi 0, %s64
      %s81 = sphi 0, %s65
      %s87 = sphi 0, %s89
      %s90 = sphi 0, %s87
      %s91 = sphi 0, %s90
      %s107 = sphi 0, %s91
      %s113 = sphi 0, %s115
      %s116 = sphi 0, %s113
      %s117 = sphi 0, %s116
      %s133 = sphi 0, %s117
      %s139 = sphi 0, %s141
      %s142 = sphi 0, %s139
      %s143 = sphi 0, %s142
      %s159 = sphi 0, %s143
    $region4: #{residual_block_forward.6} parent=1 // loop_header_branch
      %14 = sbr.rel (%p12) target = $region8
    $region5: #{residual_block_forward.6} parent=1 // loop_body
      %s16 = ssub.s32 %s11, 1
      %s17 = ssub.s32 %s11, 2
      %s24 = sadd.s32 1, %s19
      %p25 = scmp.ge.s32.totalorder %s24, 3
      %s26 = scalar_select %p25, 0, %s24
      %s27 = sadd.s32 1, %s18
      %s28 = scalar_select %p25, %s27, %s18
      %p29 = scmp.ge.s32.totalorder %s28, 2
      %s30 = scalar_select %p29, 0, %s28
      %s31 = ssub.s32 %s18, %s30
      %s32 = ssub.s32 %s19, %s26
      %s33 = sor.u32 %s31, %s32
      %p34 = scmp.eq.s32.totalorder %s33, 0
      %s36 = sadd.s32 %s35, 1
      %s37 = scalar_select %p34, %s35, %s36
      %p40 = pneg %p34
      %p41 = scmp.eq.s32.totalorder %s11, 5
      %p42 = por %p40, %p41
      %p43 = scmp.ne.s32.totalorder %s35, %s38
      %p44 = scmp.eq.s32.totalorder %s11, 0
      %p45 = por %p43, %p44
      %p46 = scmp.ne.s32.totalorder %s35, %s38
      %p47 = scmp.eq.s32.totalorder %s16, 5
      %p48 = por %p46, %p47
      %p49 = scmp.ne.s32.totalorder %s38, %s39
      %p50 = scmp.eq.s32.totalorder %s16, 0
      %p51 = por %p49, %p50
      %p52 = scmp.ne.s32.totalorder %s38, %s39
      %p53 = scmp.eq.s32.totalorder %s17, 5
      %p54 = por %p52, %p53
      %p56 = scmp.ne.s32.totalorder %s39, %s55
      %p57 = scmp.eq.s32.totalorder %s17, 0
      %p58 = por %p56, %p57
      %s59 = ssub.s32 %s19, %s26
      %p60 = scmp.eq.s32.totalorder %s59, 0
      %s62 = sadd.s32 %s61, 1
      %s63 = scalar_select %p60, %s61, %s62
      %p66 = pneg %p60
      %p67 = scmp.eq.s32.totalorder %s11, 5
      %p68 = por %p66, %p67
      %p69 = scmp.ne.s32.totalorder %s61, %s64
      %p70 = scmp.eq.s32.totalorder %s11, 0
      %p71 = por %p69, %p70
      %p72 = scmp.ne.s32.totalorder %s61, %s64
      %p73 = scmp.eq.s32.totalorder %s16, 5
      %p74 = por %p72, %p73
      %p75 = scmp.ne.s32.totalorder %s64, %s65
      %p76 = scmp.eq.s32.totalorder %s16, 0
      %p77 = por %p75, %p76
      %p78 = scmp.ne.s32.totalorder %s64, %s65
      %p79 = scmp.eq.s32.totalorder %s17, 5
      %p80 = por %p78, %p79
      %p82 = scmp.ne.s32.totalorder %s65, %s81
      %p83 = scmp.eq.s32.totalorder %s17, 0
      %p84 = por %p82, %p83
      %s85 = ssub.s32 %s18, %s30
      %p86 = scmp.eq.s32.totalorder %s85, 0
      %s88 = sadd.s32 %s87, 1
      %s89 = scalar_select %p86, %s87, %s88
      %p92 = pneg %p86
      %p93 = scmp.eq.s32.totalorder %s11, 5
      %p94 = por %p92, %p93
      %p95 = scmp.ne.s32.totalorder %s87, %s90
      %p96 = scmp.eq.s32.totalorder %s11, 0
      %p97 = por %p95, %p96
      %p98 = scmp.ne.s32.totalorder %s87, %s90
      %p99 = scmp.eq.s32.totalorder %s16, 5
      %p100 = por %p98, %p99
      %p101 = scmp.ne.s32.totalorder %s90, %s91
      %p102 = scmp.eq.s32.totalorder %s16, 0
      %p103 = por %p101, %p102
      %p104 = scmp.ne.s32.totalorder %s90, %s91
      %p105 = scmp.eq.s32.totalorder %s17, 5
      %p106 = por %p104, %p105
      %p108 = scmp.ne.s32.totalorder %s91, %s107
      %p109 = scmp.eq.s32.totalorder %s17, 0
      %p110 = por %p108, %p109
      %s111 = ssub.s32 %s18, %s30
      %p112 = scmp.eq.s32.totalorder %s111, 0
      %s114 = sadd.s32 %s113, 1
      %s115 = scalar_select %p112, %s113, %s114
      %p118 = pneg %p112
      %p119 = scmp.eq.s32.totalorder %s11, 5
      %p120 = por %p118, %p119
      %p121 = scmp.ne.s32.totalorder %s113, %s116
      %p122 = scmp.eq.s32.totalorder %s11, 0
      %p123 = por %p121, %p122
      %p124 = scmp.ne.s32.totalorder %s113, %s116
      %p125 = scmp.eq.s32.totalorder %s16, 5
      %p126 = por %p124, %p125
      %p127 = scmp.ne.s32.totalorder %s116, %s117
      %p128 = scmp.eq.s32.totalorder %s16, 0
      %p129 = por %p127, %p128
      %p130 = scmp.ne.s32.totalorder %s116, %s117
      %p131 = scmp.eq.s32.totalorder %s17, 5
      %p132 = por %p130, %p131
      %p134 = scmp.ne.s32.totalorder %s117, %s133
      %p135 = scmp.eq.s32.totalorder %s17, 0
      %p136 = por %p134, %p135
      %s137 = ssub.s32 %s18, %s30
      %p138 = scmp.eq.s32.totalorder %s137, 0
      %s140 = sadd.s32 %s139, 1
      %s141 = scalar_select %p138, %s139, %s140
      %p144 = pneg %p138
      %p145 = scmp.eq.s32.totalorder %s11, 5
      %p146 = por %p144, %p145
      %p147 = scmp.ne.s32.totalorder %s139, %s142
      %p148 = scmp.eq.s32.totalorder %s11, 0
      %p149 = por %p147, %p148
      %p150 = scmp.ne.s32.totalorder %s139, %s142
      %p151 = scmp.eq.s32.totalorder %s16, 5
      %p152 = por %p150, %p151
      %p153 = scmp.ne.s32.totalorder %s142, %s143
      %p154 = scmp.eq.s32.totalorder %s16, 0
      %p155 = por %p153, %p154
      %p156 = scmp.ne.s32.totalorder %s142, %s143
      %p157 = scmp.eq.s32.totalorder %s17, 5
      %p158 = por %p156, %p157
      %p160 = scmp.ne.s32.totalorder %s143, %s159
      %p161 = scmp.eq.s32.totalorder %s17, 0
      %p162 = por %p160, %p161
      %p163 = scmp.le.s32.totalorder 1, %s11
      %p164 = scmp.lt.s32.totalorder %s11, 7
      %p165 = pnand %p163, %p164
      %p166 = pneg %p165
      // Predicated region
      $region9: #{residual_block_forward.6} parent=5 // pred_check
        _
      $region10: #{residual_block_forward.6} parent=5 // pred_check_branch
        %168 = sbr.rel (%p165) target = $region12
      $region11: #{residual_block_forward.6} parent=5 // pred_region
        %s169 = ssub.s32 %s11, 1
      $region12: #{residual_block_forward.6} parent=5 // pred_fallthru
        _
      %p170 = scmp.lt.s32.totalorder %s11, 6
      // Predicated region
      $region13: #{residual_block_forward.6} parent=5 // pred_check
        %p171 = pneg %p170
      $region14: #{residual_block_forward.6} parent=5 // pred_check_branch
        %173 = sbr.rel (%p171) target = $region16
      $region15: #{residual_block_forward.6} parent=5 // pred_region
        // Predicated region
        $region17: #{residual_block_forward.6} parent=15 // pred_check
          %p174 = pneg %p45
        $region18: #{residual_block_forward.6} parent=15 // pred_check_branch
          %176 = sbr.rel (%p174) target = $region20
        $region19: #{residual_block_forward.6} parent=15 // pred_region
          %s177 = sand.u32 %s35, 1
          %s178 = sand.u32 %s35, 1
          %s179 = smul.addr %s178, 40
          %s180 = scalar_lea.vmem [#allocation3], %s179
          %s181 = smul.addr %s18, 30
          %s182 = sadd.s32 %s19, %s181
          %s183 = smul.addr %s182, 4
          %s184 = scalar_lea.vmem %s0, %s183
          // Predicated region
          $region21: #{residual_block_forward.6} parent=19 // pred_check
            _
          $region22: #{residual_block_forward.6} parent=19 // pred_check_branch
            %186 = sbr.rel (0) target = $region24
          $region23: #{residual_block_forward.6} parent=19 // pred_region
            // Predicated region
            $region25: #{residual_block_forward.6} parent=23 // pred_check
              _
            $region26: #{residual_block_forward.6} parent=23 // pred_check_branch
              %188 = sbr.rel target = $region28
            $region27: #{residual_block_forward.6} parent=23 // pred_region
              // Predicated region
              $region40: #{residual_block_forward.6} parent=27 // pred_check
                _
              $region41: #{residual_block_forward.6} parent=27 // pred_check_branch
                %222 = sbr.rel (0) target = $region43
              $region42: #{residual_block_forward.6} parent=27 // pred_region
                loop: start=0, step=1, limit=1
                $region44: #{residual_block_forward.6} parent=42 // loop_pre_header
                  _
                $region45: #{residual_block_forward.6} parent=42 // loop_header
                  %s224 = sphi 0, %s228
                  %p225 = scmp.ge.s32.totalorder %s224, 1
                  %s229 = sphi %s184, %s184
                  %s230 = sphi %s180, %s180
                $region46: #{residual_block_forward.6} parent=42 // loop_header_branch
                  %227 = sbr.rel (%p225) target = $region50
                $region47: #{residual_block_forward.6} parent=42 // loop_body
                  _
                $region48: #{residual_block_forward.6} parent=42 // loop_footer
                  %s228 = sadd.s32 1, %s224
                $region49: #{residual_block_forward.6} parent=42 // loop_footer_branch
                  %223 = sbr.rel target = $region45
                $region50: #{residual_block_forward.6} parent=42 // loop_exit
                  _
                %s232 = ssub.s32 16, 1
                loop: start=0, step=1, limit=1
                $region51: #{residual_block_forward.6} parent=42 // loop_pre_header
                  _
                $region52: #{residual_block_forward.6} parent=42 // loop_header
                  %s234 = sphi 0, %s238
                  %p235 = scmp.ge.s32.totalorder %s234, 1
                  %s239 = sphi %s184, %s184
                  %s240 = sphi %s180, %s180
                $region53: #{residual_block_forward.6} parent=42 // loop_header_branch
                  %237 = sbr.rel (%p235) target = $region57
                $region54: #{residual_block_forward.6} parent=42 // loop_body
                  %v241 = vld [vmem:[%s239] sm:%s232]
                  %242 = vst [vmem:[%s240] sm:%s232] %v241
                  %v243 = vld [vmem:[%s239 + $0xc] sm:%s232]
                  %244 = vst [vmem:[%s240 + $0x4] sm:%s232] %v243
                  %v245 = vld [vmem:[%s239 + $0x18] sm:%s232]
                  %246 = vst [vmem:[%s240 + $0x8] sm:%s232] %v245
                  %v247 = vld [vmem:[%s239 + $0x24] sm:%s232]
                  %248 = vst [vmem:[%s240 + $0xc] sm:%s232] %v247
                  %v249 = vld [vmem:[%s239 + $0x30] sm:%s232]
                  %250 = vst [vmem:[%s240 + $0x10] sm:%s232] %v249
                  %v251 = vld [vmem:[%s239 + $0x3c] sm:%s232]
                  %252 = vst [vmem:[%s240 + $0x14] sm:%s232] %v251
                  %v253 = vld [vmem:[%s239 + $0x48] sm:%s232]
                  %254 = vst [vmem:[%s240 + $0x18] sm:%s232] %v253
                  %v255 = vld [vmem:[%s239 + $0x54] sm:%s232]
                  %256 = vst [vmem:[%s240 + $0x1c] sm:%s232] %v255
                  %v257 = vld [vmem:[%s239 + $0x60] sm:%s232]
                  %258 = vst [vmem:[%s240 + $0x20] sm:%s232] %v257
                  %v259 = vld [vmem:[%s239 + $0x6c] sm:%s232]
                  %260 = vst [vmem:[%s240 + $0x24] sm:%s232] %v259
                $region55: #{residual_block_forward.6} parent=42 // loop_footer
                  %s238 = sadd.s32 1, %s234
                $region56: #{residual_block_forward.6} parent=42 // loop_footer_branch
                  %233 = sbr.rel target = $region52
                $region57: #{residual_block_forward.6} parent=42 // loop_exit
                  _
              $region43: #{residual_block_forward.6} parent=27 // pred_fallthru
                _
            $region28: #{residual_block_forward.6} parent=23 // pred_fallthru
              _
            // Predicated region
            $region29: #{residual_block_forward.6} parent=23 // pred_check
              _
            $region30: #{residual_block_forward.6} parent=23 // pred_check_branch
              %190 = sbr.rel (0) target = $region32
            $region31: #{residual_block_forward.6} parent=23 // pred_region
              %s192 = ssub.s32 16, 1
              loop: start=0, step=1, limit=1
              $region33: #{residual_block_forward.6} parent=31 // loop_pre_header
                _
              $region34: #{residual_block_forward.6} parent=31 // loop_header
                %s194 = sphi 0, %s198
                %p195 = scmp.ge.s32.totalorder %s194, 1
                %s199 = sphi %s184, %s184
                %s200 = sphi %s180, %s180
              $region35: #{residual_block_forward.6} parent=31 // loop_header_branch
                %197 = sbr.rel (%p195) target = $region39
              $region36: #{residual_block_forward.6} parent=31 // loop_body
                %v201 = vld [vmem:[%s199] sm:%s192]
                %202 = vst [vmem:[%s200] sm:%s192] %v201
                %v203 = vld [vmem:[%s199 + $0xc] sm:%s192]
                %204 = vst [vmem:[%s200 + $0x4] sm:%s192] %v203
                %v205 = vld [vmem:[%s199 + $0x18] sm:%s192]
                %206 = vst [vmem:[%s200 + $0x8] sm:%s192] %v205
                %v207 = vld [vmem:[%s199 + $0x24] sm:%s192]
                %208 = vst [vmem:[%s200 + $0xc] sm:%s192] %v207
                %v209 = vld [vmem:[%s199 + $0x30] sm:%s192]
                %210 = vst [vmem:[%s200 + $0x10] sm:%s192] %v209
                %v211 = vld [vmem:[%s199 + $0x3c] sm:%s192]
                %212 = vst [vmem:[%s200 + $0x14] sm:%s192] %v211
                %v213 = vld [vmem:[%s199 + $0x48] sm:%s192]
                %214 = vst [vmem:[%s200 + $0x18] sm:%s192] %v213
                %v215 = vld [vmem:[%s199 + $0x54] sm:%s192]
                %216 = vst [vmem:[%s200 + $0x1c] sm:%s192] %v215
                %v217 = vld [vmem:[%s199 + $0x60] sm:%s192]
                %218 = vst [vmem:[%s200 + $0x20] sm:%s192] %v217
                %v219 = vld [vmem:[%s199 + $0x6c] sm:%s192]
                %220 = vst [vmem:[%s200 + $0x24] sm:%s192] %v219
              $region37: #{residual_block_forward.6} parent=31 // loop_footer
                %s198 = sadd.s32 1, %s194
              $region38: #{residual_block_forward.6} parent=31 // loop_footer_branch
                %193 = sbr.rel target = $region34
              $region39: #{residual_block_forward.6} parent=31 // loop_exit
                _
            $region32: #{residual_block_forward.6} parent=23 // pred_fallthru
              _
          $region24: #{residual_block_forward.6} parent=19 // pred_fallthru
            _
          %261 = vnop
        $region20: #{residual_block_forward.6} parent=15 // pred_fallthru
          _
        // Predicated region
        $region58: #{residual_block_forward.6} parent=15 // pred_check
          %p262 = pneg %p71
        $region59: #{residual_block_forward.6} parent=15 // pred_check_branch
          %264 = sbr.rel (%p262) target = $region61
        $region60: #{residual_block_forward.6} parent=15 // pred_region
          %p265 = scmp.lt.s32.totalorder %s19, 2
          %s266 = scalar_select %p265, %s19, 2
          %s267 = smul.addr %s266, 48
          %s268 = smul.addr %s267, 4
          %s269 = scalar_lea.vmem %s1, %s268
        $region61: #{residual_block_forward.6} parent=15 // pred_fallthru
          _
      $region16: #{residual_block_forward.6} parent=5 // pred_fallthru
        _
      %p270 = scmp.le.s32.totalorder 1, %s11
      %p271 = scmp.lt.s32.totalorder %s11, 7
      %p272 = pnand %p270, %p271
      %p273 = pneg %p272
      // Predicated region
      $region62: #{residual_block_forward.6} parent=5 // pred_check
        _
      $region63: #{residual_block_forward.6} parent=5 // pred_check_branch
        %275 = sbr.rel (%p272) target = $region65
      $region64: #{residual_block_forward.6} parent=5 // pred_region
        %s276 = ssub.s32 %s11, 1
        %s277 = sand.u32 %s38, 1
        %s278 = sand.u32 %s38, 1
        %s279 = smul.addr %s278, 40
        %s280 = scalar_lea.vmem [#allocation3], %s279
        // Predicated region
        $region66: #{residual_block_forward.6} parent=64 // pred_check
          %p281 = pneg %p51
        $region67: #{residual_block_forward.6} parent=64 // pred_check_branch
          %283 = sbr.rel (%p281) target = $region69
        $region68: #{residual_block_forward.6} parent=64 // pred_region
          _
        $region69: #{residual_block_forward.6} parent=64 // pred_fallthru
          _
        %s284 = sand.u32 %s38, 1
        %s285 = sand.u32 %s38, 1
        %s286 = smul.addr %s285, 40
        %s287 = scalar_lea.vmem [#allocation3], %s286
        %p288 = pneg %p51
        %p289 = pneg %p48
        %p290 = scmp.lt.s32.totalorder %s21, 2
        %s291 = scalar_select %p290, %s21, 2
        %s292 = smul.addr %s291, 48
        %s293 = smul.addr %s292, 4
        %s294 = scalar_lea.vmem %s1, %s293
        %p295 = pneg %p77
        %p296 = pneg %p74
        %p297 = pneg %p103
        %p298 = pneg %p100
        %p299 = scmp.lt.s32.totalorder %s20, 1
        %s300 = scalar_select %p299, %s20, 1
        %s301 = smul.addr %s300, 8
        %s302 = smul.addr %s301, 4
        %s303 = scalar_lea.vmem %s2, %s302
        %p304 = pneg %p129
        %p305 = pneg %p126
        %p306 = scmp.lt.s32.totalorder %s20, 1
        %s307 = scalar_select %p306, %s20, 1
        %s308 = smul.addr %s307, 8
        %s309 = scalar_lea.vmem %s3, %s308
        %p310 = pneg %p155
        %p311 = pneg %p152
        %p312 = scmp.lt.s32.totalorder %s20, 1
        %s313 = scalar_select %p312, %s20, 1
        %s314 = smul.addr %s313, 8
        %s315 = scalar_lea.vmem %s4, %s314
        %p316 = scmp.lt.s32.totalorder %s21, 2
        %s317 = scalar_select %p316, %s21, 2
        %s318 = smul.addr %s317, 48
        %s319 = smul.addr %s318, 4
        %s320 = scalar_lea.vmem %s1, %s319
        %p321 = scmp.lt.s32.totalorder %s20, 1
        %s322 = scalar_select %p321, %s20, 1
        %s323 = smul.addr %s322, 8
        %s324 = smul.addr %s323, 4
        %s325 = scalar_lea.vmem %s2, %s324
        %p326 = scmp.lt.s32.totalorder %s20, 1
        %s327 = scalar_select %p326, %s20, 1
        %s328 = smul.addr %s327, 8
        %s329 = scalar_lea.vmem %s3, %s328
        %p330 = scmp.lt.s32.totalorder %s20, 1
        %s331 = scalar_select %p330, %s20, 1
        %s332 = smul.addr %s331, 8
        %s333 = scalar_lea.vmem %s4, %s332
        %p335 = scmp.eq.s32.totalorder %s21, 0
        // Predicated region
        $region70: #{residual_block_forward.6} parent=64 // pred_check
          %p336 = pneg %p335
        $region71: #{residual_block_forward.6} parent=64 // pred_check_branch
          %338 = sbr.rel (%p336) target = $region73
        $region72: #{residual_block_forward.6} parent=64 // pred_region
          %339 = vst [vmem:[#allocation2] sm:$0xff] 0.0
          %340 = vst [vmem:[#allocation2 + $0x8] sm:$0xff] 0.0
          %341 = vst [vmem:[#allocation2 + $0x10] sm:$0xff] 0.0
          %342 = vst [vmem:[#allocation2 + $0x18] sm:$0xff] 0.0
          %343 = vst [vmem:[#allocation2 + $0x20] sm:$0xff] 0.0
          %344 = vst [vmem:[#allocation2 + $0x28] sm:$0xff] 0.0
          %345 = vst [vmem:[#allocation2 + $0x30] sm:$0xff] 0.0
          %346 = vst [vmem:[#allocation2 + $0x38] sm:$0xff] 0.0
        $region73: #{residual_block_forward.6} parent=64 // pred_fallthru
          _
        %v347 = vld [vmem:[%s280] sm:$0xf]
        %v348 = vld [vmem:[%s280 + $0x4] sm:$0xf]
        %v349 = vld [vmem:[%s280 + $0x8] sm:$0xf]
        %v350 = vld [vmem:[%s280 + $0xc] sm:$0xf]
        %v351 = vld [vmem:[%s280 + $0x10] sm:$0xf]
        %v352 = vld [vmem:[%s280 + $0x14] sm:$0xf]
        %v353 = vld [vmem:[%s280 + $0x18] sm:$0xf]
        %v354 = vld [vmem:[%s280 + $0x1c] sm:$0xf]
        %v355 = vld [vmem:[%s280 + $0x20] sm:$0xf]
        %v356 = vld [vmem:[%s280 + $0x24] sm:$0xf]
        %v357 = vld [vmem:[%s320] sm:$0xf]
        %v358 = vld [vmem:[%s320 + $0x4] sm:$0xf]
        %v359 = vld [vmem:[%s320 + $0x8] sm:$0xf]
        %v360 = vld [vmem:[%s320 + $0xc] sm:$0xf]
        %v361 = vld [vmem:[%s320 + $0x10] sm:$0xf]
        %v362 = vld [vmem:[%s320 + $0x14] sm:$0xf]
        %v363 = vld [vmem:[%s320 + $0x18] sm:$0xf]
        %v364 = vld [vmem:[%s320 + $0x1c] sm:$0xf]
        %v365 = vld [vmem:[%s320 + $0x20] sm:$0xf]
        %v366 = vld [vmem:[%s320 + $0x24] sm:$0xf]
        %v367 = vld [vmem:[%s320 + $0x28] sm:$0xf]
        %v368 = vld [vmem:[%s320 + $0x2c] sm:$0xf]
        %v369 = vld [vmem:[%s320 + $0x30] sm:$0xf]
        %v370 = vld [vmem:[%s320 + $0x34] sm:$0xf]
        %v371 = vld [vmem:[%s320 + $0x38] sm:$0xf]
        %v372 = vld [vmem:[%s320 + $0x3c] sm:$0xf]
        %v373 = vld [vmem:[%s320 + $0x40] sm:$0xf]
        %v374 = vld [vmem:[%s320 + $0x44] sm:$0xf]
        %v375 = vld [vmem:[%s320 + $0x48] sm:$0xf]
        %v376 = vld [vmem:[%s320 + $0x4c] sm:$0xf]
        %v377 = vld [vmem:[%s320 + $0x50] sm:$0xf]
        %v378 = vld [vmem:[%s320 + $0x54] sm:$0xf]
        %v379 = vld [vmem:[%s320 + $0x58] sm:$0xf]
        %v380 = vld [vmem:[%s320 + $0x5c] sm:$0xf]
        %v381 = vld [vmem:[%s320 + $0x60] sm:$0xf]
        %v382 = vld [vmem:[%s320 + $0x64] sm:$0xf]
        %v383 = vld [vmem:[%s320 + $0x68] sm:$0xf]
        %v384 = vld [vmem:[%s320 + $0x6c] sm:$0xf]
        %v385 = vld [vmem:[%s320 + $0x70] sm:$0xf]
        %v386 = vld [vmem:[%s320 + $0x74] sm:$0xf]
        %v387 = vld [vmem:[%s320 + $0x78] sm:$0xf]
        %v388 = vld [vmem:[%s320 + $0x7c] sm:$0xf]
        %v389 = vld [vmem:[%s320 + $0x80] sm:$0xf]
        %v390 = vld [vmem:[%s320 + $0x84] sm:$0xf]
        %v391 = vld [vmem:[%s320 + $0x88] sm:$0xf]
        %v392 = vld [vmem:[%s320 + $0x8c] sm:$0xf]
        %v393 = vld [vmem:[%s320 + $0x90] sm:$0xf]
        %v394 = vld [vmem:[%s320 + $0x94] sm:$0xf]
        %v395 = vld [vmem:[%s320 + $0x98] sm:$0xf]
        %v396 = vld [vmem:[%s320 + $0x9c] sm:$0xf]
        %v397 = vld [vmem:[%s320 + $0xa0] sm:$0xf]
        %v398 = vld [vmem:[%s320 + $0xa4] sm:$0xf]
        %v399 = vld [vmem:[%s320 + $0xa8] sm:$0xf]
        %v400 = vld [vmem:[%s320 + $0xac] sm:$0xf]
        %v401 = vld [vmem:[%s320 + $0xb0] sm:$0xf]
        %v402 = vld [vmem:[%s320 + $0xb4] sm:$0xf]
        %v403 = vld [vmem:[%s320 + $0xb8] sm:$0xf]
        %v404 = vld [vmem:[%s320 + $0xbc] sm:$0xf]
        %v413 = vunpack.c.l.b16 %v348
        %v414 = vunpack.c.l.b16 %v349
        %v415 = vunpack.c.l.b16 %v350
        %v416 = vunpack.c.l.b16 %v351
        %v417 = vunpack.c.l.b16 %v352
        %v418 = vunpack.c.l.b16 %v353
        %v419 = vunpack.c.l.b16 %v354
        %v420 = vunpack.c.l.b16 %v355
        %v421 = vpack.c.b16 %v414, %v413
        %v422 = vpack.c.b16 %v416, %v415
        %v423 = vpack.c.b16 %v418, %v417
        %v424 = vpack.c.b16 %v420, %v419
        %v445 = vunpack.c.l.b16 %v373
        %v446 = vunpack.c.l.b16 %v374
        %v447 = vunpack.c.l.b16 %v375
        %v448 = vunpack.c.l.b16 %v376
        %v449 = vunpack.c.l.b16 %v377
        %v450 = vunpack.c.l.b16 %v378
        %v451 = vunpack.c.l.b16 %v379
        %v452 = vunpack.c.l.b16 %v380
        %v453 = vunpack.c.l.b16 %v381
        %v454 = vunpack.c.l.b16 %v382
        %v455 = vunpack.c.l.b16 %v383
        %v456 = vunpack.c.l.b16 %v384
        %v457 = vunpack.c.l.b16 %v385
        %v458 = vunpack.c.l.b16 %v386
        %v459 = vunpack.c.l.b16 %v387
        %v460 = vunpack.c.l.b16 %v388
        %v461 = vpack.c.b16 %v446, %v445
        %v462 = vpack.c.b16 %v448, %v447
        %v463 = vpack.c.b16 %v450, %v449
        %v464 = vpack.c.b16 %v452, %v451
        %v465 = vpack.c.b16 %v454, %v453
        %v466 = vpack.c.b16 %v456, %v455
        %v467 = vpack.c.b16 %v458, %v457
        %v468 = vpack.c.b16 %v460, %v459
        %477 = vmatprep.subr.bf16.mxu0 0
        %478 = vmatpush1.bf16.msra.mxu0 %v468
        %479 = vmatprep.subr.bf16.mxu0 0
        %480 = vmatpush1.bf16.msra.mxu0 %v467
        %481 = vmatprep.subr.bf16.mxu0 0
        %482 = vmatpush1.bf16.msra.mxu0 %v466
        %483 = vmatprep.subr.bf16.mxu0 0
        %484 = vmatpush1.bf16.msra.mxu0 %v465
        %485 = vmatprep.subr.bf16.mxu0 0
        %486 = vmatpush1.bf16.msra.mxu0 %v464
        %487 = vmatprep.subr.bf16.mxu0 0
        %488 = vmatpush1.bf16.msra.mxu0 %v463
        %489 = vmatprep.subr.bf16.mxu0 0
        %490 = vmatpush1.bf16.msra.mxu0 %v462
        %491 = vmatprep.subr.bf16.mxu0 0
        %492 = vmatpush1.bf16.msra.mxu0 %v461
        %493 = vmatprep.subr.bf16.mxu0 0
        %494 = vmatpush2.bf16.msra.mxu0 0
        %495 = vmatprep.subr.bf16.mxu0 0
        %496 = vmatpush2.bf16.msra.mxu0 0
        %497 = vmatprep.subr.bf16.mxu0 0
        %498 = vmatpush2.bf16.msra.mxu0 0
        %499 = vmatprep.subr.bf16.mxu0 0
        %500 = vmatpush2.bf16.msra.mxu0 0
        %501 = vmatprep.subr.bf16.mxu0 0
        %502 = vmatpush2.bf16.msra.mxu0 0
        %503 = vmatprep.subr.bf16.mxu0 0
        %504 = vmatpush2.bf16.msra.mxu0 0
        %505 = vmatprep.subr.bf16.mxu0 0
        %506 = vmatpush2.bf16.msra.mxu0 0
        %507 = vmatprep.subr.bf16.mxu0 0
        %508 = vmatpush2.bf16.msra.mxu0 0
        %509 = vmatprep.mubr.bf16.mxu0 0
        %510 = vmatmul.mubr.bf16.gmra.mxu0 %v421
        %v511 = vpop.f32.mrf.mxu0
        %v512 = vadd.f32 0.0, %v511
        %v513 = vpop.f32.mrf.mxu0
        %v514 = vpop.f32.mrf.mxu0
        %v515 = vadd.f32 0.0, %v514
        %v516 = vpop.f32.mrf.mxu0
        %517 = vmatprep.mubr.bf16.mxu0 0
        %518 = vmatmul.mubr.bf16.gmra.mxu0 %v422
        %v519 = vpop.f32.mrf.mxu0
        %v520 = vadd.f32 0.0, %v519
        %v521 = vpop.f32.mrf.mxu0
        %v522 = vpop.f32.mrf.mxu0
        %v523 = vadd.f32 0.0, %v522
        %v524 = vpop.f32.mrf.mxu0
        %525 = vmatprep.mubr.bf16.mxu0 0
        %526 = vmatmul.mubr.bf16.gmra.mxu0 %v423
        %v527 = vpop.f32.mrf.mxu0
        %v528 = vadd.f32 0.0, %v527
        %v529 = vpop.f32.mrf.mxu0
        %v530 = vpop.f32.mrf.mxu0
        %v531 = vadd.f32 0.0, %v530
        %v532 = vpop.f32.mrf.mxu0
        %533 = vmatprep.mubr.bf16.mxu0 0
        %534 = vmatmul.mubr.bf16.gmra.mxu0 %v424
        %v535 = vpop.f32.mrf.mxu0
        %v536 = vadd.f32 0.0, %v535
        %v537 = vpop.f32.mrf.mxu0
        %v538 = vpop.f32.mrf.mxu0
        %v539 = vadd.f32 0.0, %v538
        %v540 = vpop.f32.mrf.mxu0
        %541 = vdwg.mxu0
        %v543 = vunpack.c.l.b16 %v347
        %v544 = vpack.c.b16 %v413, %v543
        %v545 = vpack.c.b16 %v415, %v414
        %v546 = vpack.c.b16 %v417, %v416
        %v547 = vpack.c.b16 %v419, %v418
        %v568 = vunpack.c.l.b16 %v357
        %v569 = vunpack.c.l.b16 %v358
        %v570 = vunpack.c.l.b16 %v359
        %v571 = vunpack.c.l.b16 %v360
        %v572 = vunpack.c.l.b16 %v361
        %v573 = vunpack.c.l.b16 %v362
        %v574 = vunpack.c.l.b16 %v363
        %v575 = vunpack.c.l.b16 %v364
        %v576 = vunpack.c.l.b16 %v365
        %v577 = vunpack.c.l.b16 %v366
        %v578 = vunpack.c.l.b16 %v367
        %v579 = vunpack.c.l.b16 %v368
        %v580 = vunpack.c.l.b16 %v369
        %v581 = vunpack.c.l.b16 %v370
        %v582 = vunpack.c.l.b16 %v371
        %v583 = vunpack.c.l.b16 %v372
        %v584 = vpack.c.b16 %v569, %v568
        %v585 = vpack.c.b16 %v571, %v570
        %v586 = vpack.c.b16 %v573, %v572
        %v587 = vpack.c.b16 %v575, %v574
        %v588 = vpack.c.b16 %v577, %v576
        %v589 = vpack.c.b16 %v579, %v578
        %v590 = vpack.c.b16 %v581, %v580
        %v591 = vpack.c.b16 %v583, %v582
        %600 = vmatprep.subr.bf16.mxu0 0
        %601 = vmatpush1.bf16.msra.mxu0 %v591
        %602 = vmatprep.subr.bf16.mxu0 0
        %603 = vmatpush1.bf16.msra.mxu0 %v590
        %604 = vmatprep.subr.bf16.mxu0 0
        %605 = vmatpush1.bf16.msra.mxu0 %v589
        %606 = vmatprep.subr.bf16.mxu0 0
        %607 = vmatpush1.bf16.msra.mxu0 %v588
        %608 = vmatprep.subr.bf16.mxu0 0
        %609 = vmatpush1.bf16.msra.mxu0 %v587
        %610 = vmatprep.subr.bf16.mxu0 0
        %611 = vmatpush1.bf16.msra.mxu0 %v586
        %612 = vmatprep.subr.bf16.mxu0 0
        %613 = vmatpush1.bf16.msra.mxu0 %v585
        %614 = vmatprep.subr.bf16.mxu0 0
        %615 = vmatpush1.bf16.msra.mxu0 %v584
        %616 = vmatprep.subr.bf16.mxu0 0
        %617 = vmatpush2.bf16.msra.mxu0 0
        %618 = vmatprep.subr.bf16.mxu0 0
        %619 = vmatpush2.bf16.msra.mxu0 0
        %620 = vmatprep.subr.bf16.mxu0 0
        %621 = vmatpush2.bf16.msra.mxu0 0
        %622 = vmatprep.subr.bf16.mxu0 0
        %623 = vmatpush2.bf16.msra.mxu0 0
        %624 = vmatprep.subr.bf16.mxu0 0
        %625 = vmatpush2.bf16.msra.mxu0 0
        %626 = vmatprep.subr.bf16.mxu0 0
        %627 = vmatpush2.bf16.msra.mxu0 0
        %628 = vmatprep.subr.bf16.mxu0 0
        %629 = vmatpush2.bf16.msra.mxu0 0
        %630 = vmatprep.subr.bf16.mxu0 0
        %631 = vmatpush2.bf16.msra.mxu0 0
        %632 = vmatprep.mubr.bf16.mxu0 0
        %633 = vmatmul.mubr.bf16.gmra.mxu0 %v544
        %v634 = vpop.f32.mrf.mxu0
        %v635 = vadd.f32 %v512, %v634
        %v636 = vpop.f32.mrf.mxu0
        %v637 = vpop.f32.mrf.mxu0
        %v638 = vadd.f32 %v515, %v637
        %v639 = vpop.f32.mrf.mxu0
        %640 = vmatprep.mubr.bf16.mxu0 0
        %641 = vmatmul.mubr.bf16.gmra.mxu0 %v545
        %v642 = vpop.f32.mrf.mxu0
        %v643 = vadd.f32 %v520, %v642
        %v644 = vpop.f32.mrf.mxu0
        %v645 = vpop.f32.mrf.mxu0
        %v646 = vadd.f32 %v523, %v645
        %v647 = vpop.f32.mrf.mxu0
        %648 = vmatprep.mubr.bf16.mxu0 0
        %649 = vmatmul.mubr.bf16.gmra.mxu0 %v546
        %v650 = vpop.f32.mrf.mxu0
        %v651 = vadd.f32 %v528, %v650
        %v652 = vpop.f32.mrf.mxu0
        %v653 = vpop.f32.mrf.mxu0
        %v654 = vadd.f32 %v531, %v653
        %v655 = vpop.f32.mrf.mxu0
        %656 = vmatprep.mubr.bf16.mxu0 0
        %657 = vmatmul.mubr.bf16.gmra.mxu0 %v547
        %v658 = vpop.f32.mrf.mxu0
        %v659 = vadd.f32 %v536, %v658
        %v660 = vpop.f32.mrf.mxu0
        %v661 = vpop.f32.mrf.mxu0
        %v662 = vadd.f32 %v539, %v661
        %v663 = vpop.f32.mrf.mxu0
        %664 = vdwg.mxu0
        %v666 = vunpack.c.l.b16 %v356
        %v667 = vpack.c.b16 %v666, %v420
        %v685 = vunpack.c.l.b16 %v389
        %v686 = vunpack.c.l.b16 %v390
        %v687 = vunpack.c.l.b16 %v391
        %v688 = vunpack.c.l.b16 %v392
        %v689 = vunpack.c.l.b16 %v393
        %v690 = vunpack.c.l.b16 %v394
        %v691 = vunpack.c.l.b16 %v395
        %v692 = vunpack.c.l.b16 %v396
        %v693 = vunpack.c.l.b16 %v397
        %v694 = vunpack.c.l.b16 %v398
        %v695 = vunpack.c.l.b16 %v399
        %v696 = vunpack.c.l.b16 %v400
        %v697 = vunpack.c.l.b16 %v401
        %v698 = vunpack.c.l.b16 %v402
        %v699 = vunpack.c.l.b16 %v403
        %v700 = vunpack.c.l.b16 %v404
        %v701 = vpack.c.b16 %v686, %v685
        %v702 = vpack.c.b16 %v688, %v687
        %v703 = vpack.c.b16 %v690, %v689
        %v704 = vpack.c.b16 %v692, %v691
        %v705 = vpack.c.b16 %v694, %v693
        %v706 = vpack.c.b16 %v696, %v695
        %v707 = vpack.c.b16 %v698, %v697
        %v708 = vpack.c.b16 %v700, %v699
        %717 = vmatprep.subr.bf16.mxu0 0
        %718 = vmatpush1.bf16.msra.mxu0 %v708
        %719 = vmatprep.subr.bf16.mxu0 0
        %720 = vmatpush1.bf16.msra.mxu0 %v707
        %721 = vmatprep.subr.bf16.mxu0 0
        %722 = vmatpush1.bf16.msra.mxu0 %v706
        %723 = vmatprep.subr.bf16.mxu0 0
        %724 = vmatpush1.bf16.msra.mxu0 %v705
        %725 = vmatprep.subr.bf16.mxu0 0
        %726 = vmatpush1.bf16.msra.mxu0 %v704
        %727 = vmatprep.subr.bf16.mxu0 0
        %728 = vmatpush1.bf16.msra.mxu0 %v703
        %729 = vmatprep.subr.bf16.mxu0 0
        %730 = vmatpush1.bf16.msra.mxu0 %v702
        %731 = vmatprep.subr.bf16.mxu0 0
        %732 = vmatpush1.bf16.msra.mxu0 %v701
        %733 = vmatprep.subr.bf16.mxu0 0
        %734 = vmatpush2.bf16.msra.mxu0 0
        %735 = vmatprep.subr.bf16.mxu0 0
        %736 = vmatpush2.bf16.msra.mxu0 0
        %737 = vmatprep.subr.bf16.mxu0 0
        %738 = vmatpush2.bf16.msra.mxu0 0
        %739 = vmatprep.subr.bf16.mxu0 0
        %740 = vmatpush2.bf16.msra.mxu0 0
        %741 = vmatprep.subr.bf16.mxu0 0
        %742 = vmatpush2.bf16.msra.mxu0 0
        %743 = vmatprep.subr.bf16.mxu0 0
        %744 = vmatpush2.bf16.msra.mxu0 0
        %745 = vmatprep.subr.bf16.mxu0 0
        %746 = vmatpush2.bf16.msra.mxu0 0
        %747 = vmatprep.subr.bf16.mxu0 0
        %748 = vmatpush2.bf16.msra.mxu0 0
        %749 = vmatprep.mubr.bf16.mxu0 0
        %750 = vmatmul.mubr.bf16.gmra.mxu0 %v545
        %v751 = vpop.f32.mrf.mxu0
        %v752 = vadd.f32 0.0, %v751
        %v753 = vpop.f32.mrf.mxu0
        %v754 = vpop.f32.mrf.mxu0
        %v755 = vadd.f32 0.0, %v754
        %v756 = vpop.f32.mrf.mxu0
        %757 = vmatprep.mubr.bf16.mxu0 0
        %758 = vmatmul.mubr.bf16.gmra.mxu0 %v546
        %v759 = vpop.f32.mrf.mxu0
        %v760 = vadd.f32 0.0, %v759
        %v761 = vpop.f32.mrf.mxu0
        %v762 = vpop.f32.mrf.mxu0
        %v763 = vadd.f32 0.0, %v762
        %v764 = vpop.f32.mrf.mxu0
        %765 = vmatprep.mubr.bf16.mxu0 0
        %766 = vmatmul.mubr.bf16.gmra.mxu0 %v547
        %v767 = vpop.f32.mrf.mxu0
        %v768 = vadd.f32 0.0, %v767
        %v769 = vpop.f32.mrf.mxu0
        %v770 = vpop.f32.mrf.mxu0
        %v771 = vadd.f32 0.0, %v770
        %v772 = vpop.f32.mrf.mxu0
        %773 = vmatprep.mubr.bf16.mxu0 0
        %774 = vmatmul.mubr.bf16.gmra.mxu0 %v667
        %v775 = vpop.f32.mrf.mxu0
        %v776 = vadd.f32 0.0, %v775
        %v777 = vpop.f32.mrf.mxu0
        %v778 = vpop.f32.mrf.mxu0
        %v779 = vadd.f32 0.0, %v778
        %v780 = vpop.f32.mrf.mxu0
        %781 = vdwg.mxu0
        %v782 = vadd.f32 %v635, %v752
        %v783 = vadd.f32 %v638, %v755
        %v784 = vadd.f32 %v643, %v760
        %v785 = vadd.f32 %v646, %v763
        %v786 = vadd.f32 %v651, %v768
        %v787 = vadd.f32 %v654, %v771
        %v788 = vadd.f32 %v659, %v776
        %v789 = vadd.f32 %v662, %v779
        %v790 = vld [vmem:[#allocation2] sm:$0xff]
        %v791 = vld [vmem:[#allocation2 + $0x8] sm:$0xff]
        %v792 = vld [vmem:[#allocation2 + $0x10] sm:$0xff]
        %v793 = vld [vmem:[#allocation2 + $0x18] sm:$0xff]
        %v794 = vld [vmem:[#allocation2 + $0x20] sm:$0xff]
        %v795 = vld [vmem:[#allocation2 + $0x28] sm:$0xff]
        %v796 = vld [vmem:[#allocation2 + $0x30] sm:$0xff]
        %v797 = vld [vmem:[#allocation2 + $0x38] sm:$0xff]
        %v798 = vadd.f32 %v790, %v782
        %v799 = vadd.f32 %v791, %v783
        %v800 = vadd.f32 %v792, %v784
        %v801 = vadd.f32 %v793, %v785
        %v802 = vadd.f32 %v794, %v786
        %v803 = vadd.f32 %v795, %v787
        %v804 = vadd.f32 %v796, %v788
        %v805 = vadd.f32 %v797, %v789
        %806 = vst [vmem:[#allocation2] sm:$0xff] %v798
        %807 = vst [vmem:[#allocation2 + $0x8] sm:$0xff] %v799
        %808 = vst [vmem:[#allocation2 + $0x10] sm:$0xff] %v800
        %809 = vst [vmem:[#allocation2 + $0x18] sm:$0xff] %v801
        %810 = vst [vmem:[#allocation2 + $0x20] sm:$0xff] %v802
        %811 = vst [vmem:[#allocation2 + $0x28] sm:$0xff] %v803
        %812 = vst [vmem:[#allocation2 + $0x30] sm:$0xff] %v804
        %813 = vst [vmem:[#allocation2 + $0x38] sm:$0xff] %v805
        %p814 = scmp.eq.s32.totalorder %s21, 2
        // Predicated region
        $region74: #{residual_block_forward.6} parent=64 // pred_check
          %p815 = pneg %p814
        $region75: #{residual_block_forward.6} parent=64 // pred_check_branch
          %817 = sbr.rel (%p815) target = $region77
        $region76: #{residual_block_forward.6} parent=64 // pred_region
          %v818 = vld [vmem:[#allocation2] sm:$0xff]
          %v819 = vld [vmem:[#allocation2 + $0x8] sm:$0xff]
          %v820 = vld [vmem:[#allocation2 + $0x10] sm:$0xff]
          %v821 = vld [vmem:[#allocation2 + $0x18] sm:$0xff]
          %v822 = vld [vmem:[#allocation2 + $0x20] sm:$0xff]
          %v823 = vld [vmem:[#allocation2 + $0x28] sm:$0xff]
          %v824 = vld [vmem:[#allocation2 + $0x30] sm:$0xff]
          %v825 = vld [vmem:[#allocation2 + $0x38] sm:$0xff]
          %v826 = vpack.c.bf16 %v819, %v818
          %v827 = vpack.c.bf16 %v821, %v820
          %v828 = vpack.c.bf16 %v823, %v822
          %v829 = vpack.c.bf16 %v825, %v824
          %v834 = vunpack.c.l.b16 %v826
          %v835 = vunpack.c.h.b16 %v826
          %v836 = vunpack.c.l.b16 %v827
          %v837 = vunpack.c.h.b16 %v827
          %v838 = vunpack.c.l.b16 %v828
          %v839 = vunpack.c.h.b16 %v828
          %v840 = vunpack.c.l.b16 %v829
          %v841 = vunpack.c.h.b16 %v829
          %v842 = vpack.c.b16 %v834, %v834
          %v843 = vpack.c.b16 %v835, %v835
          %v844 = vpack.c.b16 %v836, %v836
          %v845 = vpack.c.b16 %v837, %v837
          %v846 = vpack.c.b16 %v838, %v838
          %v847 = vpack.c.b16 %v839, %v839
          %v848 = vpack.c.b16 %v840, %v840
          %v849 = vpack.c.b16 %v841, %v841
          %858 = vst [vmem:[%s325] sm:$0xf] %v842
          %859 = vst [vmem:[%s325 + $0x4] sm:$0xf] %v843
          %860 = vst [vmem:[%s325 + $0x8] sm:$0xf] %v844
          %861 = vst [vmem:[%s325 + $0xc] sm:$0xf] %v845
          %862 = vst [vmem:[%s325 + $0x10] sm:$0xf] %v846
          %863 = vst [vmem:[%s325 + $0x14] sm:$0xf] %v847
          %864 = vst [vmem:[%s325 + $0x18] sm:$0xf] %v848
          %865 = vst [vmem:[%s325 + $0x1c] sm:$0xf] %v849
          %v866 = vadd.f32 %v818, %v819
          %v867 = vadd.f32 %v866, %v820
          %v868 = vadd.f32 %v867, %v821
          %v869 = vadd.f32 %v868, %v822
          %v870 = vadd.f32 %v869, %v823
          %v871 = vadd.f32 %v870, %v824
          %v872 = vadd.f32 %v871, %v825
          %v873 = vrot.slane %v872, 4
          %v874 = vadd.f32 %v872, %v873
          %v875 = vrot.slane %v874, 2
          %v876 = vadd.f32 %v874, %v875
          %v877 = vrot.slane %v876, 1
          %v878 = vadd.f32 %v876, %v877
          %v879 = vmul.f32 %v818, %v818
          %v880 = vmul.f32 %v819, %v819
          %v881 = vmul.f32 %v820, %v820
          %v882 = vmul.f32 %v821, %v821
          %v883 = vmul.f32 %v822, %v822
          %v884 = vmul.f32 %v823, %v823
          %v885 = vmul.f32 %v824, %v824
          %v886 = vmul.f32 %v825, %v825
          %v887 = vadd.f32 %v879, %v880
          %v888 = vadd.f32 %v887, %v881
          %v889 = vadd.f32 %v888, %v882
          %v890 = vadd.f32 %v889, %v883
          %v891 = vadd.f32 %v890, %v884
          %v892 = vadd.f32 %v891, %v885
          %v893 = vadd.f32 %v892, %v886
          %v894 = vrot.slane %v893, 4
          %v895 = vadd.f32 %v893, %v894
          %v896 = vrot.slane %v895, 2
          %v897 = vadd.f32 %v895, %v896
          %v898 = vrot.slane %v897, 1
          %v899 = vadd.f32 %v897, %v898
          %900 = vst [vmem:[%s329] sm:$0xff] %v878
          %901 = vst [vmem:[%s333] sm:$0xff] %v899
        $region77: #{residual_block_forward.6} parent=64 // pred_fallthru
          _
        %p902 = scmp.lt.s32.totalorder %s20, 1
        %s903 = scalar_select %p902, %s20, 1
        %s904 = smul.addr %s903, 8
        %s905 = smul.addr %s904, 4
        %s906 = scalar_lea.vmem %s2, %s905
        %p907 = scmp.lt.s32.totalorder %s20, 1
        %s908 = scalar_select %p907, %s20, 1
        %s909 = smul.addr %s908, 8
        %s910 = scalar_lea.vmem %s3, %s909
        %p911 = scmp.lt.s32.totalorder %s20, 1
        %s912 = scalar_select %p911, %s20, 1
        %s913 = smul.addr %s912, 8
        %s914 = scalar_lea.vmem %s4, %s913
        // Predicated region
        $region78: #{residual_block_forward.6} parent=64 // pred_check
          %p915 = pneg %p100
        $region79: #{residual_block_forward.6} parent=64 // pred_check_branch
          %917 = sbr.rel (%p915) target = $region81
        $region80: #{residual_block_forward.6} parent=64 // pred_region
          _
        $region81: #{residual_block_forward.6} parent=64 // pred_fallthru
          _
        // Predicated region
        $region82: #{residual_block_forward.6} parent=64 // pred_check
          %p918 = pneg %p126
        $region83: #{residual_block_forward.6} parent=64 // pred_check_branch
          %920 = sbr.rel (%p918) target = $region85
        $region84: #{residual_block_forward.6} parent=64 // pred_region
          _
        $region85: #{residual_block_forward.6} parent=64 // pred_fallthru
          _
        // Predicated region
        $region86: #{residual_block_forward.6} parent=64 // pred_check
          %p921 = pneg %p152
        $region87: #{residual_block_forward.6} parent=64 // pred_check_branch
          %923 = sbr.rel (%p921) target = $region89
        $region88: #{residual_block_forward.6} parent=64 // pred_region
          _
        $region89: #{residual_block_forward.6} parent=64 // pred_fallthru
          _
      $region65: #{residual_block_forward.6} parent=5 // pred_fallthru
        _
      %p924 = scmp.le.s32.totalorder 2, %s11
      // Predicated region
      $region90: #{residual_block_forward.6} parent=5 // pred_check
        %p925 = pneg %p924
      $region91: #{residual_block_forward.6} parent=5 // pred_check_branch
        %927 = sbr.rel (%p925) target = $region93
      $region92: #{residual_block_forward.6} parent=5 // pred_region
        %s928 = ssub.s32 %s11, 2
        // Predicated region
        $region94: #{residual_block_forward.6} parent=92 // pred_check
          %p929 = pneg %p106
        $region95: #{residual_block_forward.6} parent=92 // pred_check_branch
          %931 = sbr.rel (%p929) target = $region97
        $region96: #{residual_block_forward.6} parent=92 // pred_region
          %p932 = scmp.lt.s32.totalorder %s22, 1
          %s933 = scalar_select %p932, %s22, 1
          %s934 = smul.addr %s933, 8
          %s935 = smul.addr %s934, 4
          %s936 = scalar_lea.vmem %s2, %s935
        $region97: #{residual_block_forward.6} parent=92 // pred_fallthru
          _
        // Predicated region
        $region98: #{residual_block_forward.6} parent=92 // pred_check
          %p937 = pneg %p132
        $region99: #{residual_block_forward.6} parent=92 // pred_check_branch
          %939 = sbr.rel (%p937) target = $region101
        $region100: #{residual_block_forward.6} parent=92 // pred_region
          %p940 = scmp.lt.s32.totalorder %s22, 1
          %s941 = scalar_select %p940, %s22, 1
          %s942 = smul.addr %s941, 8
          %s943 = scalar_lea.vmem %s3, %s942
        $region101: #{residual_block_forward.6} parent=92 // pred_fallthru
          _
        // Predicated region
        $region102: #{residual_block_forward.6} parent=92 // pred_check
          %p944 = pneg %p158
        $region103: #{residual_block_forward.6} parent=92 // pred_check_branch
          %946 = sbr.rel (%p944) target = $region105
        $region104: #{residual_block_forward.6} parent=92 // pred_region
          %p947 = scmp.lt.s32.totalorder %s22, 1
          %s948 = scalar_select %p947, %s22, 1
          %s949 = smul.addr %s948, 8
          %s950 = scalar_lea.vmem %s4, %s949
        $region105: #{residual_block_forward.6} parent=92 // pred_fallthru
          _
      $region93: #{residual_block_forward.6} parent=5 // pred_fallthru
        _
    $region6: #{residual_block_forward.6} parent=1 // loop_footer
      %s15 = sadd.s32 1, %s11
    $region7: #{residual_block_forward.6} parent=1 // loop_footer_branch
      %10 = sbr.rel target = $region3
    $region8: #{residual_block_forward.6} parent=1 // loop_exit
      _

</llo_original>
